<compile_context>
chip_gen: v5e
topology: v5e:2x2
jax: 0.10.0
libtpu: 0.0.40
codegen_flags: <defaults>
</compile_context>

<pallas_src>
import functools

import numpy as np

import jax
import jax.numpy as jnp
from jax.experimental import pallas as pl
from jax.experimental.pallas import tpu as pltpu


BT = 8  # images processed per grid step (stacked along sublanes)


# ---------------------------------------------------------------------------
# Fused kernel: BT images per grid step, everything stays in VMEM/vregs.
#
# Activation layouts inside the kernel (rows are batch-stacked):
#   x            : (BT*28, 28)        row = b*28 + image_row
#   conv1 acc y1 : (BT*28-4, 144)     col = c*6  + oc
#   pool1 out p1 : (BT*12,   72)      row = b*12 + pr ; col = pc*6  + ic
#   conv2 acc y2 : (BT*12-4, 128)     col = c*16 + oc   (lane-dense!)
#   pool2 out p2 : (BT*4,    64)      row = pr*BT + b ; col = pc*16 + oc
#   fc outputs   : (BT, 120) / (BT, 84) / (BT, ncp=128)
# ---------------------------------------------------------------------------
def _lenet_kernel(x_ref, k1_ref, b1_ref, r1_ref, c1_ref,
                  k2_ref, b2_ref, r2_ref, c2_ref,
                  w1_ref, fb1_ref, w2_ref, fb2_ref, w3_ref, fb3_ref,
                  o_ref):
    f32 = jnp.float32
    n1 = r1_ref.shape[2]          # BT*28 - 4 conv1 accumulator rows
    n2 = r2_ref.shape[2]          # BT*12 - 4 conv2 accumulator rows
    bt = o_ref.shape[0]           # images per step

    x = x_ref[...]                                                # (BT*28, 28)

    # ---- conv1: sum over 5 kernel-row offsets of (n1,28) @ (28,144) ----
    acc1 = jnp.dot(x[0:n1, :], k1_ref[0], preferred_element_type=f32)
    for i in range(1, 5):
        acc1 = acc1 + jnp.dot(x[i:i + n1, :], k1_ref[i],
                              preferred_element_type=f32)
    y1 = jnp.maximum(acc1 + b1_ref[...], 0.0)                     # (n1, 144)

    # ---- pool1 (2x2 max): row-pair max (also drops invalid rows) then
    #      column-pair max; selectors are 0/1 matrices precomputed on host ----
    yr1 = jnp.maximum(jnp.dot(r1_ref[0], y1, preferred_element_type=f32),
                      jnp.dot(r1_ref[1], y1, preferred_element_type=f32))
    p1 = jnp.maximum(jnp.dot(yr1, c1_ref[0], preferred_element_type=f32),
                     jnp.dot(yr1, c1_ref[1], preferred_element_type=f32))
    # p1: (BT*12, 72)

    # ---- conv2: sum over 5 kernel-row offsets of (n2,72) @ (72,128) ----
    acc2 = jnp.dot(p1[0:n2, :], k2_ref[0], preferred_element_type=f32)
    for i in range(1, 5):
        acc2 = acc2 + jnp.dot(p1[i:i + n2, :], k2_ref[i],
                              preferred_element_type=f32)
    y2 = jnp.maximum(acc2 + b2_ref[...], 0.0)                     # (n2, 128)

    # ---- pool2: row selector emits rows pr-major (row = pr*BT + b) ----
    yr2 = jnp.maximum(jnp.dot(r2_ref[0], y2, preferred_element_type=f32),
                      jnp.dot(r2_ref[1], y2, preferred_element_type=f32))
    p2 = jnp.maximum(jnp.dot(yr2, c2_ref[0], preferred_element_type=f32),
                     jnp.dot(yr2, c2_ref[1], preferred_element_type=f32))
    # p2: (BT*4, 64)

    # ---- fc1 (torch channel-major flatten folded into w1_ref); pr-major rows
    #      give contiguous, 8-aligned BT-row slices ----
    h1 = fb1_ref[...]                                             # (1, 120)
    for pr in range(4):
        h1 = h1 + jnp.dot(p2[pr * bt:(pr + 1) * bt, :], w1_ref[pr],
                          preferred_element_type=f32)
    h1 = jnp.maximum(h1, 0.0)                                     # (BT, 120)

    # ---- fc2 / fc3 (fc3 output zero-padded to 128 lanes -> dense store) ----
    h2 = jnp.maximum(jnp.dot(h1, w2_ref[...], preferred_element_type=f32)
                     + fb2_ref[...], 0.0)                         # (BT, 84)
    h3 = jnp.dot(h2, w3_ref[...], preferred_element_type=f32) + fb3_ref[...]
    o_ref[...] = h3.astype(o_ref.dtype)


# ---------------------------------------------------------------------------
# Host-side packing of the PyTorch-layout parameters into MXU-friendly,
# VMEM-resident matrices.  Done once, outside jit.
# ---------------------------------------------------------------------------
def pack_params(params, num_classes, bt=BT):
    w1 = np.asarray(params["conv1_w"], np.float32)   # (6, 1, 5, 5)
    b1 = np.asarray(params["conv1_b"], np.float32)   # (6,)
    w2 = np.asarray(params["conv2_w"], np.float32)   # (16, 6, 5, 5)
    b2 = np.asarray(params["conv2_b"], np.float32)   # (16,)
    fw1 = np.asarray(params["fc1_w"], np.float32)    # (256, 120)
    fb1 = np.asarray(params["fc1_b"], np.float32)    # (120,)
    fw2 = np.asarray(params["fc2_w"], np.float32)    # (120, 84)
    fb2 = np.asarray(params["fc2_b"], np.float32)    # (84,)
    fw3 = np.asarray(params["fc3_w"], np.float32)    # (84, NC)
    fb3 = np.asarray(params["fc3_b"], np.float32)    # (NC,)

    C1N, C2N = 6, 16      # conv output channels
    S1, S2 = 24, 8        # conv output spatial extents (per image)
    P1, P2 = 12, 4        # pooled spatial extents (per image)
    KS = 5                # kernel size
    H1 = 28               # per-image row pitch of the stacked conv1 input
    H2 = P1               # per-image row pitch of the stacked conv2 input

    # conv1 column-packed weights:  K1[i, c+j, c*6+oc] = w1[oc, 0, i, j]
    K1 = np.zeros((KS, 28, S1 * C1N), np.float32)
    for i in range(KS):
        for c in range(S1):
            for j in range(KS):
                K1[i, c + j, c * C1N:(c + 1) * C1N] = w1[:, 0, i, j]
    b1row = np.tile(b1, S1)[None, :]                               # (1, 144)

    # pool1 row selectors over the batch-stacked conv1 accumulator rows
    # (also drop the 4 invalid rows per image), batch-major output rows.
    n1 = bt * H1 - (KS - 1)
    R1 = np.zeros((2, bt * P1, n1), np.float32)
    for b in range(bt):
        for p in range(P1):
            R1[0, b * P1 + p, b * H1 + 2 * p] = 1.0
            R1[1, b * P1 + p, b * H1 + 2 * p + 1] = 1.0
    # pool1 column selectors (per-image column layout, batch-independent)
    C1sel = np.zeros((2, S1 * C1N, P1 * C1N), np.float32)
    for p in range(P1):
        for ch in range(C1N):
            C1sel[0, (2 * p) * C1N + ch, p * C1N + ch] = 1.0
            C1sel[1, (2 * p + 1) * C1N + ch, p * C1N + ch] = 1.0

    # conv2 column-packed weights:  K2[i, (c+j)*6+ic, c*16+oc] = w2[oc, ic, i, j]
    K2 = np.zeros((KS, P1 * C1N, S2 * C2N), np.float32)
    for i in range(KS):
        for c in range(S2):
            for j in range(KS):
                for ic in range(C1N):
                    K2[i, (c + j) * C1N + ic,
                       c * C2N:(c + 1) * C2N] = w2[:, ic, i, j]
    b2row = np.tile(b2, S2)[None, :]                               # (1, 128)

    # pool2 row selectors: output rows pr-major (row = pr*bt + b) so the fc1
    # flatten-fold below only needs contiguous bt-row slices.
    n2 = bt * H2 - (KS - 1)
    R2 = np.zeros((2, bt * P2, n2), np.float32)
    for b in range(bt):
        for p in range(P2):
            R2[0, p * bt + b, b * H2 + 2 * p] = 1.0
            R2[1, p * bt + b, b * H2 + 2 * p + 1] = 1.0
    C2sel = np.zeros((2, S2 * C2N, P2 * C2N), np.float32)
    for p in range(P2):
        for ch in range(C2N):
            C2sel[0, (2 * p) * C2N + ch, p * C2N + ch] = 1.0
            C2sel[1, (2 * p + 1) * C2N + ch, p * C2N + ch] = 1.0

    # fc1 with the torch NCHW flatten permutation folded in:
    #   p2 slice for pr has column layout  pc*16 + oc
    #   torch flat index                   f = oc*16 + pr*4 + pc
    W1p = np.zeros((P2, P2 * C2N, 120), np.float32)
    for pr in range(P2):
        for pc in range(P2):
            for oc in range(C2N):
                W1p[pr, pc * C2N + oc, :] = fw1[oc * (P2 * P2) + pr * P2 + pc, :]

    # fc3 padded to a lane-dense multiple of 128 output columns
    ncp = ((num_classes + 127) // 128) * 128
    W3p = np.zeros((84, ncp), np.float32)
    W3p[:, :num_classes] = fw3
    b3p = np.zeros((1, ncp), np.float32)
    b3p[0, :num_classes] = fb3

    j = jnp.asarray
    return {"K1": j(K1), "b1": j(b1row), "R1": j(R1), "C1": j(C1sel),
            "K2": j(K2), "b2": j(b2row), "R2": j(R2), "C2": j(C2sel),
            "W1": j(W1p), "fb1": j(fb1[None, :]),
            "W2": j(fw2), "fb2": j(fb2[None, :]),
            "W3": j(W3p), "fb3": j(b3p)}


def _const_spec(a):
    """Whole-array block, constant block index -> VMEM-resident, no re-DMA."""
    nd = a.ndim
    return pl.BlockSpec(a.shape, lambda g, nd=nd: (0,) * nd)


@functools.partial(jax.jit, static_argnames=("num_classes",))
def net_forward(packed, x, *, num_classes):
    """x: (B, 1, 28, 28) float -> logits (B, num_classes). One pallas_call."""
    B = x.shape[0]
    ncp = packed["W3"].shape[1]

    x = x.astype(jnp.float32).reshape(B, 28, 28)
    Bp = ((B + BT - 1) // BT) * BT            # pad batch to a multiple of BT
    if Bp != B:
        x = jnp.pad(x, ((0, Bp - B), (0, 0), (0, 0)))
    xs = x.reshape(Bp * 28, 28)               # batch-stacked rows (contiguous)

    operands = (xs, packed["K1"], packed["b1"], packed["R1"], packed["C1"],
                packed["K2"], packed["b2"], packed["R2"], packed["C2"],
                packed["W1"], packed["fb1"], packed["W2"], packed["fb2"],
                packed["W3"], packed["fb3"])

    in_specs = [pl.BlockSpec((BT * 28, 28), lambda g: (g, 0))]
    in_specs += [_const_spec(a) for a in operands[1:]]

    out = pl.pallas_call(
        _lenet_kernel,
        grid=(Bp // BT,),
        in_specs=in_specs,
        out_specs=pl.BlockSpec((BT, ncp), lambda g: (g, 0)),
        out_shape=jax.ShapeDtypeStruct((Bp, ncp), jnp.float32),
        compiler_params=pltpu.CompilerParams(
            dimension_semantics=("parallel",)),   # megacore sharding on v7x
    )(*operands)

    return out[:B, :num_classes]


# ---------------------------------------------------------------------------
# Parameters (deterministic, PyTorch-default-like uniform init)
# ---------------------------------------------------------------------------
def init_params(key, num_classes):
    ks = jax.random.split(key, 10)

    def u(k, shape, fan_in):
        bound = 1.0 / float(np.sqrt(fan_in))
        return jax.random.uniform(k, shape, jnp.float32, -bound, bound)

    return {
        "conv1_w": u(ks[0], (6, 1, 5, 5), 1 * 5 * 5),
        "conv1_b": u(ks[1], (6,), 1 * 5 * 5),
        "conv2_w": u(ks[2], (16, 6, 5, 5), 6 * 5 * 5),
        "conv2_b": u(ks[3], (16,), 6 * 5 * 5),
        # Linear weights stored as (in_features, out_features) == torch weight.T
        "fc1_w": u(ks[4], (16 * 4 * 4, 120), 16 * 4 * 4),
        "fc1_b": u(ks[5], (120,), 16 * 4 * 4),
        "fc2_w": u(ks[6], (120, 84), 120),
        "fc2_b": u(ks[7], (84,), 120),
        "fc3_w": u(ks[8], (84, num_classes), 84),
        "fc3_b": u(ks[9], (num_classes,), 84),
    }


# ---------------------------------------------------------------------------
# Pure-JAX reference (for correctness check)
# ---------------------------------------------------------------------------
def net_forward_ref(params, x):
    def conv(x, w, b):
        y = jax.lax.conv_general_dilated(
            x, w, window_strides=(1, 1), padding="VALID",
            dimension_numbers=("NCHW", "OIHW", "NCHW"))
        return jax.nn.relu(y + b[None, :, None, None])

    def pool(x):
        return jax.lax.reduce_window(
            x, -jnp.inf, jax.lax.max, (1, 1, 2, 2), (1, 1, 2, 2), "VALID")

    x = pool(conv(x, params["conv1_w"], params["conv1_b"]))
    x = pool(conv(x, params["conv2_w"], params["conv2_b"]))
    x = x.reshape(x.shape[0], -1)
    x = jax.nn.relu(x @ params["fc1_w"] + params["fc1_b"])
    x = jax.nn.relu(x @ params["fc2_w"] + params["fc2_b"])
    return x @ params["fc3_w"] + params["fc3_b"]


if __name__ == "__main__":
    num_classes = 10

    key = jax.random.PRNGKey(0)
    pkey, xkey1, xkey2 = jax.random.split(key, 3)

    params = init_params(pkey, num_classes)
    packed = pack_params(params, num_classes)

    # batch=2 (padded to one BT=8 grid step)
    x = jax.random.normal(xkey1, (2, 1, 28, 28), jnp.float32)
    out = jax.block_until_ready(net_forward(packed, x, num_classes=num_classes))
    assert out.shape == (2, num_classes), out.shape
    ref = jax.block_until_ready(net_forward_ref(params, x))
    err = float(jnp.max(jnp.abs(out - ref)))
    assert jnp.allclose(out, ref, atol=2e-3, rtol=2e-3), err

    # batch=11 (exercises multi-step grid + batch padding)
    x2 = jax.random.normal(xkey2, (11, 1, 28, 28), jnp.float32)
    out2 = jax.block_until_ready(net_forward(packed, x2, num_classes=num_classes))
    assert out2.shape == (11, num_classes), out2.shape
    ref2 = jax.block_until_ready(net_forward_ref(params, x2))
    err2 = float(jnp.max(jnp.abs(out2 - ref2)))
    assert jnp.allclose(out2, ref2, atol=2e-3, rtol=2e-3), err2

    print("KERNEL_OK")
</pallas_src>

<mosaic_0001>
module attributes {stable_mosaic.version = 11 : i64} {
  func.func @_lenet_kernel(%arg0: i32, %arg1: memref<224x28xf32, #tpu.memory_space<vmem>>, %arg2: memref<5x28x144xf32, #tpu.memory_space<vmem>>, %arg3: memref<1x144xf32, #tpu.memory_space<vmem>>, %arg4: memref<2x96x220xf32, #tpu.memory_space<vmem>>, %arg5: memref<2x144x72xf32, #tpu.memory_space<vmem>>, %arg6: memref<5x72x128xf32, #tpu.memory_space<vmem>>, %arg7: memref<1x128xf32, #tpu.memory_space<vmem>>, %arg8: memref<2x32x92xf32, #tpu.memory_space<vmem>>, %arg9: memref<2x128x64xf32, #tpu.memory_space<vmem>>, %arg10: memref<4x64x120xf32, #tpu.memory_space<vmem>>, %arg11: memref<1x120xf32, #tpu.memory_space<vmem>>, %arg12: memref<120x84xf32, #tpu.memory_space<vmem>>, %arg13: memref<1x84xf32, #tpu.memory_space<vmem>>, %arg14: memref<84x128xf32, #tpu.memory_space<vmem>>, %arg15: memref<1x128xf32, #tpu.memory_space<vmem>>, %arg16: memref<8x128xf32, #tpu.memory_space<vmem>>) attributes {dimension_semantics = [#tpu.dimension_semantics<parallel>], iteration_bounds = array<i64: 1>, scalar_prefetch = 0 : i64, scratch_operands = 0 : i64, tpu.core_type = #tpu.core_type<tc>, window_params = [{transform_indices = @transform_0, window_bounds = array<i64: 224, 28>}, {pipeline_mode = #tpu.pipeline_mode<synchronous>, transform_indices = @transform_1, window_bounds = array<i64: 5, 28, 144>}, {pipeline_mode = #tpu.pipeline_mode<synchronous>, transform_indices = @transform_2, window_bounds = array<i64: 1, 144>}, {pipeline_mode = #tpu.pipeline_mode<synchronous>, transform_indices = @transform_3, window_bounds = array<i64: 2, 96, 220>}, {pipeline_mode = #tpu.pipeline_mode<synchronous>, transform_indices = @transform_4, window_bounds = array<i64: 2, 144, 72>}, {pipeline_mode = #tpu.pipeline_mode<synchronous>, transform_indices = @transform_5, window_bounds = array<i64: 5, 72, 128>}, {pipeline_mode = #tpu.pipeline_mode<synchronous>, transform_indices = @transform_6, window_bounds = array<i64: 1, 128>}, {pipeline_mode = #tpu.pipeline_mode<synchronous>, transform_indices = @transform_7, window_bounds = array<i64: 2, 32, 92>}, {pipeline_mode = #tpu.pipeline_mode<synchronous>, transform_indices = @transform_8, window_bounds = array<i64: 2, 128, 64>}, {pipeline_mode = #tpu.pipeline_mode<synchronous>, transform_indices = @transform_9, window_bounds = array<i64: 4, 64, 120>}, {pipeline_mode = #tpu.pipeline_mode<synchronous>, transform_indices = @transform_10, window_bounds = array<i64: 1, 120>}, {pipeline_mode = #tpu.pipeline_mode<synchronous>, transform_indices = @transform_11, window_bounds = array<i64: 120, 84>}, {pipeline_mode = #tpu.pipeline_mode<synchronous>, transform_indices = @transform_12, window_bounds = array<i64: 1, 84>}, {pipeline_mode = #tpu.pipeline_mode<synchronous>, transform_indices = @transform_13, window_bounds = array<i64: 84, 128>}, {pipeline_mode = #tpu.pipeline_mode<synchronous>, transform_indices = @transform_14, window_bounds = array<i64: 1, 128>}, {transform_indices = @transform_15, window_bounds = array<i64: 8, 128>}]} {
    %c0 = arith.constant 0 : index
    %c0_0 = arith.constant 0 : index
    %0 = vector.load %arg1[%c0, %c0_0] : memref<224x28xf32, #tpu.memory_space<vmem>>, vector<224x28xf32>
    %1 = vector.extract_strided_slice %0 {offsets = [0, 0], sizes = [220, 28], strides = [1, 1]} : vector<224x28xf32> to vector<220x28xf32>
    %c0_1 = arith.constant 0 : index
    %c0_2 = arith.constant 0 : index
    %c0_3 = arith.constant 0 : index
    %2 = vector.load %arg2[%c0_1, %c0_2, %c0_3] : memref<5x28x144xf32, #tpu.memory_space<vmem>>, vector<1x28x144xf32>
    %3 = vector.shape_cast %2 : vector<1x28x144xf32> to vector<28x144xf32>
    %cst = arith.constant dense<0.000000e+00> : vector<220x144xf32>
    %4 = tpu.matmul %1, %3, %cst {dimension_numbers = #tpu.dot_dimension_numbers<[1], [0], [0], [1], [0, 0, 1, 1], [], []>} : vector<220x28xf32>, vector<28x144xf32>, vector<220x144xf32> -> vector<220x144xf32>
    %5 = vector.extract_strided_slice %0 {offsets = [1, 0], sizes = [220, 28], strides = [1, 1]} : vector<224x28xf32> to vector<220x28xf32>
    %c1 = arith.constant 1 : index
    %c0_4 = arith.constant 0 : index
    %c0_5 = arith.constant 0 : index
    %6 = vector.load %arg2[%c1, %c0_4, %c0_5] : memref<5x28x144xf32, #tpu.memory_space<vmem>>, vector<1x28x144xf32>
    %7 = vector.shape_cast %6 : vector<1x28x144xf32> to vector<28x144xf32>
    %cst_6 = arith.constant dense<0.000000e+00> : vector<220x144xf32>
    %8 = tpu.matmul %5, %7, %cst_6 {dimension_numbers = #tpu.dot_dimension_numbers<[1], [0], [0], [1], [0, 0, 1, 1], [], []>} : vector<220x28xf32>, vector<28x144xf32>, vector<220x144xf32> -> vector<220x144xf32>
    %9 = arith.addf %4, %8 : vector<220x144xf32>
    %10 = vector.extract_strided_slice %0 {offsets = [2, 0], sizes = [220, 28], strides = [1, 1]} : vector<224x28xf32> to vector<220x28xf32>
    %c2 = arith.constant 2 : index
    %c0_7 = arith.constant 0 : index
    %c0_8 = arith.constant 0 : index
    %11 = vector.load %arg2[%c2, %c0_7, %c0_8] : memref<5x28x144xf32, #tpu.memory_space<vmem>>, vector<1x28x144xf32>
    %12 = vector.shape_cast %11 : vector<1x28x144xf32> to vector<28x144xf32>
    %cst_9 = arith.constant dense<0.000000e+00> : vector<220x144xf32>
    %13 = tpu.matmul %10, %12, %cst_9 {dimension_numbers = #tpu.dot_dimension_numbers<[1], [0], [0], [1], [0, 0, 1, 1], [], []>} : vector<220x28xf32>, vector<28x144xf32>, vector<220x144xf32> -> vector<220x144xf32>
    %14 = arith.addf %9, %13 : vector<220x144xf32>
    %15 = vector.extract_strided_slice %0 {offsets = [3, 0], sizes = [220, 28], strides = [1, 1]} : vector<224x28xf32> to vector<220x28xf32>
    %c3 = arith.constant 3 : index
    %c0_10 = arith.constant 0 : index
    %c0_11 = arith.constant 0 : index
    %16 = vector.load %arg2[%c3, %c0_10, %c0_11] : memref<5x28x144xf32, #tpu.memory_space<vmem>>, vector<1x28x144xf32>
    %17 = vector.shape_cast %16 : vector<1x28x144xf32> to vector<28x144xf32>
    %cst_12 = arith.constant dense<0.000000e+00> : vector<220x144xf32>
    %18 = tpu.matmul %15, %17, %cst_12 {dimension_numbers = #tpu.dot_dimension_numbers<[1], [0], [0], [1], [0, 0, 1, 1], [], []>} : vector<220x28xf32>, vector<28x144xf32>, vector<220x144xf32> -> vector<220x144xf32>
    %19 = arith.addf %14, %18 : vector<220x144xf32>
    %20 = vector.extract_strided_slice %0 {offsets = [4, 0], sizes = [220, 28], strides = [1, 1]} : vector<224x28xf32> to vector<220x28xf32>
    %c4 = arith.constant 4 : index
    %c0_13 = arith.constant 0 : index
    %c0_14 = arith.constant 0 : index
    %21 = vector.load %arg2[%c4, %c0_13, %c0_14] : memref<5x28x144xf32, #tpu.memory_space<vmem>>, vector<1x28x144xf32>
    %22 = vector.shape_cast %21 : vector<1x28x144xf32> to vector<28x144xf32>
    %cst_15 = arith.constant dense<0.000000e+00> : vector<220x144xf32>
    %23 = tpu.matmul %20, %22, %cst_15 {dimension_numbers = #tpu.dot_dimension_numbers<[1], [0], [0], [1], [0, 0, 1, 1], [], []>} : vector<220x28xf32>, vector<28x144xf32>, vector<220x144xf32> -> vector<220x144xf32>
    %24 = arith.addf %19, %23 : vector<220x144xf32>
    %c0_16 = arith.constant 0 : index
    %c0_17 = arith.constant 0 : index
    %25 = vector.load %arg3[%c0_16, %c0_17] : memref<1x144xf32, #tpu.memory_space<vmem>>, vector<1x144xf32>
    %26 = vector.broadcast %25 : vector<1x144xf32> to vector<220x144xf32>
    %27 = arith.addf %24, %26 : vector<220x144xf32>
    %cst_18 = arith.constant 0.000000e+00 : f32
    %28 = vector.broadcast %cst_18 : f32 to vector<220x144xf32>
    %29 = arith.maximumf %27, %28 : vector<220x144xf32>
    %c0_19 = arith.constant 0 : index
    %c0_20 = arith.constant 0 : index
    %c0_21 = arith.constant 0 : index
    %30 = vector.load %arg4[%c0_19, %c0_20, %c0_21] : memref<2x96x220xf32, #tpu.memory_space<vmem>>, vector<1x96x220xf32>
    %31 = vector.shape_cast %30 : vector<1x96x220xf32> to vector<96x220xf32>
    %cst_22 = arith.constant dense<0.000000e+00> : vector<96x144xf32>
    %32 = tpu.matmul %31, %29, %cst_22 {dimension_numbers = #tpu.dot_dimension_numbers<[1], [0], [0], [1], [0, 0, 1, 1], [], []>} : vector<96x220xf32>, vector<220x144xf32>, vector<96x144xf32> -> vector<96x144xf32>
    %c1_23 = arith.constant 1 : index
    %c0_24 = arith.constant 0 : index
    %c0_25 = arith.constant 0 : index
    %33 = vector.load %arg4[%c1_23, %c0_24, %c0_25] : memref<2x96x220xf32, #tpu.memory_space<vmem>>, vector<1x96x220xf32>
    %34 = vector.shape_cast %33 : vector<1x96x220xf32> to vector<96x220xf32>
    %cst_26 = arith.constant dense<0.000000e+00> : vector<96x144xf32>
    %35 = tpu.matmul %34, %29, %cst_26 {dimension_numbers = #tpu.dot_dimension_numbers<[1], [0], [0], [1], [0, 0, 1, 1], [], []>} : vector<96x220xf32>, vector<220x144xf32>, vector<96x144xf32> -> vector<96x144xf32>
    %36 = arith.maximumf %32, %35 : vector<96x144xf32>
    %c0_27 = arith.constant 0 : index
    %c0_28 = arith.constant 0 : index
    %c0_29 = arith.constant 0 : index
    %37 = vector.load %arg5[%c0_27, %c0_28, %c0_29] : memref<2x144x72xf32, #tpu.memory_space<vmem>>, vector<1x144x72xf32>
    %38 = vector.shape_cast %37 : vector<1x144x72xf32> to vector<144x72xf32>
    %cst_30 = arith.constant dense<0.000000e+00> : vector<96x72xf32>
    %39 = tpu.matmul %36, %38, %cst_30 {dimension_numbers = #tpu.dot_dimension_numbers<[1], [0], [0], [1], [0, 0, 1, 1], [], []>} : vector<96x144xf32>, vector<144x72xf32>, vector<96x72xf32> -> vector<96x72xf32>
    %c1_31 = arith.constant 1 : index
    %c0_32 = arith.constant 0 : index
    %c0_33 = arith.constant 0 : index
    %40 = vector.load %arg5[%c1_31, %c0_32, %c0_33] : memref<2x144x72xf32, #tpu.memory_space<vmem>>, vector<1x144x72xf32>
    %41 = vector.shape_cast %40 : vector<1x144x72xf32> to vector<144x72xf32>
    %cst_34 = arith.constant dense<0.000000e+00> : vector<96x72xf32>
    %42 = tpu.matmul %36, %41, %cst_34 {dimension_numbers = #tpu.dot_dimension_numbers<[1], [0], [0], [1], [0, 0, 1, 1], [], []>} : vector<96x144xf32>, vector<144x72xf32>, vector<96x72xf32> -> vector<96x72xf32>
    %43 = arith.maximumf %39, %42 : vector<96x72xf32>
    %44 = vector.extract_strided_slice %43 {offsets = [0, 0], sizes = [92, 72], strides = [1, 1]} : vector<96x72xf32> to vector<92x72xf32>
    %c0_35 = arith.constant 0 : index
    %c0_36 = arith.constant 0 : index
    %c0_37 = arith.constant 0 : index
    %45 = vector.load %arg6[%c0_35, %c0_36, %c0_37] : memref<5x72x128xf32, #tpu.memory_space<vmem>>, vector<1x72x128xf32>
    %46 = vector.shape_cast %45 : vector<1x72x128xf32> to vector<72x128xf32>
    %cst_38 = arith.constant dense<0.000000e+00> : vector<92x128xf32>
    %47 = tpu.matmul %44, %46, %cst_38 {dimension_numbers = #tpu.dot_dimension_numbers<[1], [0], [0], [1], [0, 0, 1, 1], [], []>} : vector<92x72xf32>, vector<72x128xf32>, vector<92x128xf32> -> vector<92x128xf32>
    %48 = vector.extract_strided_slice %43 {offsets = [1, 0], sizes = [92, 72], strides = [1, 1]} : vector<96x72xf32> to vector<92x72xf32>
    %c1_39 = arith.constant 1 : index
    %c0_40 = arith.constant 0 : index
    %c0_41 = arith.constant 0 : index
    %49 = vector.load %arg6[%c1_39, %c0_40, %c0_41] : memref<5x72x128xf32, #tpu.memory_space<vmem>>, vector<1x72x128xf32>
    %50 = vector.shape_cast %49 : vector<1x72x128xf32> to vector<72x128xf32>
    %cst_42 = arith.constant dense<0.000000e+00> : vector<92x128xf32>
    %51 = tpu.matmul %48, %50, %cst_42 {dimension_numbers = #tpu.dot_dimension_numbers<[1], [0], [0], [1], [0, 0, 1, 1], [], []>} : vector<92x72xf32>, vector<72x128xf32>, vector<92x128xf32> -> vector<92x128xf32>
    %52 = arith.addf %47, %51 : vector<92x128xf32>
    %53 = vector.extract_strided_slice %43 {offsets = [2, 0], sizes = [92, 72], strides = [1, 1]} : vector<96x72xf32> to vector<92x72xf32>
    %c2_43 = arith.constant 2 : index
    %c0_44 = arith.constant 0 : index
    %c0_45 = arith.constant 0 : index
    %54 = vector.load %arg6[%c2_43, %c0_44, %c0_45] : memref<5x72x128xf32, #tpu.memory_space<vmem>>, vector<1x72x128xf32>
    %55 = vector.shape_cast %54 : vector<1x72x128xf32> to vector<72x128xf32>
    %cst_46 = arith.constant dense<0.000000e+00> : vector<92x128xf32>
    %56 = tpu.matmul %53, %55, %cst_46 {dimension_numbers = #tpu.dot_dimension_numbers<[1], [0], [0], [1], [0, 0, 1, 1], [], []>} : vector<92x72xf32>, vector<72x128xf32>, vector<92x128xf32> -> vector<92x128xf32>
    %57 = arith.addf %52, %56 : vector<92x128xf32>
    %58 = vector.extract_strided_slice %43 {offsets = [3, 0], sizes = [92, 72], strides = [1, 1]} : vector<96x72xf32> to vector<92x72xf32>
    %c3_47 = arith.constant 3 : index
    %c0_48 = arith.constant 0 : index
    %c0_49 = arith.constant 0 : index
    %59 = vector.load %arg6[%c3_47, %c0_48, %c0_49] : memref<5x72x128xf32, #tpu.memory_space<vmem>>, vector<1x72x128xf32>
    %60 = vector.shape_cast %59 : vector<1x72x128xf32> to vector<72x128xf32>
    %cst_50 = arith.constant dense<0.000000e+00> : vector<92x128xf32>
    %61 = tpu.matmul %58, %60, %cst_50 {dimension_numbers = #tpu.dot_dimension_numbers<[1], [0], [0], [1], [0, 0, 1, 1], [], []>} : vector<92x72xf32>, vector<72x128xf32>, vector<92x128xf32> -> vector<92x128xf32>
    %62 = arith.addf %57, %61 : vector<92x128xf32>
    %63 = vector.extract_strided_slice %43 {offsets = [4, 0], sizes = [92, 72], strides = [1, 1]} : vector<96x72xf32> to vector<92x72xf32>
    %c4_51 = arith.constant 4 : index
    %c0_52 = arith.constant 0 : index
    %c0_53 = arith.constant 0 : index
    %64 = vector.load %arg6[%c4_51, %c0_52, %c0_53] : memref<5x72x128xf32, #tpu.memory_space<vmem>>, vector<1x72x128xf32>
    %65 = vector.shape_cast %64 : vector<1x72x128xf32> to vector<72x128xf32>
    %cst_54 = arith.constant dense<0.000000e+00> : vector<92x128xf32>
    %66 = tpu.matmul %63, %65, %cst_54 {dimension_numbers = #tpu.dot_dimension_numbers<[1], [0], [0], [1], [0, 0, 1, 1], [], []>} : vector<92x72xf32>, vector<72x128xf32>, vector<92x128xf32> -> vector<92x128xf32>
    %67 = arith.addf %62, %66 : vector<92x128xf32>
    %c0_55 = arith.constant 0 : index
    %c0_56 = arith.constant 0 : index
    %68 = vector.load %arg7[%c0_55, %c0_56] : memref<1x128xf32, #tpu.memory_space<vmem>>, vector<1x128xf32>
    %69 = vector.broadcast %68 : vector<1x128xf32> to vector<92x128xf32>
    %70 = arith.addf %67, %69 : vector<92x128xf32>
    %cst_57 = arith.constant 0.000000e+00 : f32
    %71 = vector.broadcast %cst_57 : f32 to vector<92x128xf32>
    %72 = arith.maximumf %70, %71 : vector<92x128xf32>
    %c0_58 = arith.constant 0 : index
    %c0_59 = arith.constant 0 : index
    %c0_60 = arith.constant 0 : index
    %73 = vector.load %arg8[%c0_58, %c0_59, %c0_60] : memref<2x32x92xf32, #tpu.memory_space<vmem>>, vector<1x32x92xf32>
    %74 = vector.shape_cast %73 : vector<1x32x92xf32> to vector<32x92xf32>
    %cst_61 = arith.constant dense<0.000000e+00> : vector<32x128xf32>
    %75 = tpu.matmul %74, %72, %cst_61 {dimension_numbers = #tpu.dot_dimension_numbers<[1], [0], [0], [1], [0, 0, 1, 1], [], []>} : vector<32x92xf32>, vector<92x128xf32>, vector<32x128xf32> -> vector<32x128xf32>
    %c1_62 = arith.constant 1 : index
    %c0_63 = arith.constant 0 : index
    %c0_64 = arith.constant 0 : index
    %76 = vector.load %arg8[%c1_62, %c0_63, %c0_64] : memref<2x32x92xf32, #tpu.memory_space<vmem>>, vector<1x32x92xf32>
    %77 = vector.shape_cast %76 : vector<1x32x92xf32> to vector<32x92xf32>
    %cst_65 = arith.constant dense<0.000000e+00> : vector<32x128xf32>
    %78 = tpu.matmul %77, %72, %cst_65 {dimension_numbers = #tpu.dot_dimension_numbers<[1], [0], [0], [1], [0, 0, 1, 1], [], []>} : vector<32x92xf32>, vector<92x128xf32>, vector<32x128xf32> -> vector<32x128xf32>
    %79 = arith.maximumf %75, %78 : vector<32x128xf32>
    %c0_66 = arith.constant 0 : index
    %c0_67 = arith.constant 0 : index
    %c0_68 = arith.constant 0 : index
    %80 = vector.load %arg9[%c0_66, %c0_67, %c0_68] : memref<2x128x64xf32, #tpu.memory_space<vmem>>, vector<1x128x64xf32>
    %81 = vector.shape_cast %80 : vector<1x128x64xf32> to vector<128x64xf32>
    %cst_69 = arith.constant dense<0.000000e+00> : vector<32x64xf32>
    %82 = tpu.matmul %79, %81, %cst_69 {dimension_numbers = #tpu.dot_dimension_numbers<[1], [0], [0], [1], [0, 0, 1, 1], [], []>} : vector<32x128xf32>, vector<128x64xf32>, vector<32x64xf32> -> vector<32x64xf32>
    %c1_70 = arith.constant 1 : index
    %c0_71 = arith.constant 0 : index
    %c0_72 = arith.constant 0 : index
    %83 = vector.load %arg9[%c1_70, %c0_71, %c0_72] : memref<2x128x64xf32, #tpu.memory_space<vmem>>, vector<1x128x64xf32>
    %84 = vector.shape_cast %83 : vector<1x128x64xf32> to vector<128x64xf32>
    %cst_73 = arith.constant dense<0.000000e+00> : vector<32x64xf32>
    %85 = tpu.matmul %79, %84, %cst_73 {dimension_numbers = #tpu.dot_dimension_numbers<[1], [0], [0], [1], [0, 0, 1, 1], [], []>} : vector<32x128xf32>, vector<128x64xf32>, vector<32x64xf32> -> vector<32x64xf32>
    %86 = arith.maximumf %82, %85 : vector<32x64xf32>
    %c0_74 = arith.constant 0 : index
    %c0_75 = arith.constant 0 : index
    %87 = vector.load %arg11[%c0_74, %c0_75] : memref<1x120xf32, #tpu.memory_space<vmem>>, vector<1x120xf32>
    %88 = vector.extract_strided_slice %86 {offsets = [0, 0], sizes = [8, 64], strides = [1, 1]} : vector<32x64xf32> to vector<8x64xf32>
    %c0_76 = arith.constant 0 : index
    %c0_77 = arith.constant 0 : index
    %c0_78 = arith.constant 0 : index
    %89 = vector.load %arg10[%c0_76, %c0_77, %c0_78] : memref<4x64x120xf32, #tpu.memory_space<vmem>>, vector<1x64x120xf32>
    %90 = vector.shape_cast %89 : vector<1x64x120xf32> to vector<64x120xf32>
    %cst_79 = arith.constant dense<0.000000e+00> : vector<8x120xf32>
    %91 = tpu.matmul %88, %90, %cst_79 {dimension_numbers = #tpu.dot_dimension_numbers<[1], [0], [0], [1], [0, 0, 1, 1], [], []>} : vector<8x64xf32>, vector<64x120xf32>, vector<8x120xf32> -> vector<8x120xf32>
    %92 = vector.broadcast %87 : vector<1x120xf32> to vector<8x120xf32>
    %93 = arith.addf %92, %91 : vector<8x120xf32>
    %94 = vector.extract_strided_slice %86 {offsets = [8, 0], sizes = [8, 64], strides = [1, 1]} : vector<32x64xf32> to vector<8x64xf32>
    %c1_80 = arith.constant 1 : index
    %c0_81 = arith.constant 0 : index
    %c0_82 = arith.constant 0 : index
    %95 = vector.load %arg10[%c1_80, %c0_81, %c0_82] : memref<4x64x120xf32, #tpu.memory_space<vmem>>, vector<1x64x120xf32>
    %96 = vector.shape_cast %95 : vector<1x64x120xf32> to vector<64x120xf32>
    %cst_83 = arith.constant dense<0.000000e+00> : vector<8x120xf32>
    %97 = tpu.matmul %94, %96, %cst_83 {dimension_numbers = #tpu.dot_dimension_numbers<[1], [0], [0], [1], [0, 0, 1, 1], [], []>} : vector<8x64xf32>, vector<64x120xf32>, vector<8x120xf32> -> vector<8x120xf32>
    %98 = arith.addf %93, %97 : vector<8x120xf32>
    %99 = vector.extract_strided_slice %86 {offsets = [16, 0], sizes = [8, 64], strides = [1, 1]} : vector<32x64xf32> to vector<8x64xf32>
    %c2_84 = arith.constant 2 : index
    %c0_85 = arith.constant 0 : index
    %c0_86 = arith.constant 0 : index
    %100 = vector.load %arg10[%c2_84, %c0_85, %c0_86] : memref<4x64x120xf32, #tpu.memory_space<vmem>>, vector<1x64x120xf32>
    %101 = vector.shape_cast %100 : vector<1x64x120xf32> to vector<64x120xf32>
    %cst_87 = arith.constant dense<0.000000e+00> : vector<8x120xf32>
    %102 = tpu.matmul %99, %101, %cst_87 {dimension_numbers = #tpu.dot_dimension_numbers<[1], [0], [0], [1], [0, 0, 1, 1], [], []>} : vector<8x64xf32>, vector<64x120xf32>, vector<8x120xf32> -> vector<8x120xf32>
    %103 = arith.addf %98, %102 : vector<8x120xf32>
    %104 = vector.extract_strided_slice %86 {offsets = [24, 0], sizes = [8, 64], strides = [1, 1]} : vector<32x64xf32> to vector<8x64xf32>
    %c3_88 = arith.constant 3 : index
    %c0_89 = arith.constant 0 : index
    %c0_90 = arith.constant 0 : index
    %105 = vector.load %arg10[%c3_88, %c0_89, %c0_90] : memref<4x64x120xf32, #tpu.memory_space<vmem>>, vector<1x64x120xf32>
    %106 = vector.shape_cast %105 : vector<1x64x120xf32> to vector<64x120xf32>
    %cst_91 = arith.constant dense<0.000000e+00> : vector<8x120xf32>
    %107 = tpu.matmul %104, %106, %cst_91 {dimension_numbers = #tpu.dot_dimension_numbers<[1], [0], [0], [1], [0, 0, 1, 1], [], []>} : vector<8x64xf32>, vector<64x120xf32>, vector<8x120xf32> -> vector<8x120xf32>
    %108 = arith.addf %103, %107 : vector<8x120xf32>
    %cst_92 = arith.constant 0.000000e+00 : f32
    %109 = vector.broadcast %cst_92 : f32 to vector<8x120xf32>
    %110 = arith.maximumf %108, %109 : vector<8x120xf32>
    %c0_93 = arith.constant 0 : index
    %c0_94 = arith.constant 0 : index
    %111 = vector.load %arg12[%c0_93, %c0_94] : memref<120x84xf32, #tpu.memory_space<vmem>>, vector<120x84xf32>
    %cst_95 = arith.constant dense<0.000000e+00> : vector<8x84xf32>
    %112 = tpu.matmul %110, %111, %cst_95 {dimension_numbers = #tpu.dot_dimension_numbers<[1], [0], [0], [1], [0, 0, 1, 1], [], []>} : vector<8x120xf32>, vector<120x84xf32>, vector<8x84xf32> -> vector<8x84xf32>
    %c0_96 = arith.constant 0 : index
    %c0_97 = arith.constant 0 : index
    %113 = vector.load %arg13[%c0_96, %c0_97] : memref<1x84xf32, #tpu.memory_space<vmem>>, vector<1x84xf32>
    %114 = vector.broadcast %113 : vector<1x84xf32> to vector<8x84xf32>
    %115 = arith.addf %112, %114 : vector<8x84xf32>
    %cst_98 = arith.constant 0.000000e+00 : f32
    %116 = vector.broadcast %cst_98 : f32 to vector<8x84xf32>
    %117 = arith.maximumf %115, %116 : vector<8x84xf32>
    %c0_99 = arith.constant 0 : index
    %c0_100 = arith.constant 0 : index
    %118 = vector.load %arg14[%c0_99, %c0_100] : memref<84x128xf32, #tpu.memory_space<vmem>>, vector<84x128xf32>
    %cst_101 = arith.constant dense<0.000000e+00> : vector<8x128xf32>
    %119 = tpu.matmul %117, %118, %cst_101 {dimension_numbers = #tpu.dot_dimension_numbers<[1], [0], [0], [1], [0, 0, 1, 1], [], []>} : vector<8x84xf32>, vector<84x128xf32>, vector<8x128xf32> -> vector<8x128xf32>
    %c0_102 = arith.constant 0 : index
    %c0_103 = arith.constant 0 : index
    %120 = vector.load %arg15[%c0_102, %c0_103] : memref<1x128xf32, #tpu.memory_space<vmem>>, vector<1x128xf32>
    %121 = vector.broadcast %120 : vector<1x128xf32> to vector<8x128xf32>
    %122 = arith.addf %119, %121 : vector<8x128xf32>
    %c0_104 = arith.constant 0 : index
    %c0_105 = arith.constant 0 : index
    %123 = vector.load %arg16[%c0_104, %c0_105] : memref<8x128xf32, #tpu.memory_space<vmem>>, vector<8x128xf32>
    tpu.vector_store %arg16[%c0_104, %c0_105], %122 {strides = array<i32>} : memref<8x128xf32, #tpu.memory_space<vmem>>, vector<8x128xf32>,
    return
  }
  func.func @transform_0(%arg0: i32) -> (i32, i32) {
    %c0_i32 = arith.constant 0 : i32
    %c0_i32_0 = arith.constant 0 : i32
    return %arg0, %c0_i32 : i32, i32
  }
  func.func @transform_1(%arg0: i32) -> (i32, i32, i32) {
    %c0_i32 = arith.constant 0 : i32
    %c0_i32_0 = arith.constant 0 : i32
    %c0_i32_1 = arith.constant 0 : i32
    %c0_i32_2 = arith.constant 0 : i32
    return %c0_i32, %c0_i32_0, %c0_i32_1 : i32, i32, i32
  }
  func.func @transform_2(%arg0: i32) -> (i32, i32) {
    %c0_i32 = arith.constant 0 : i32
    %c0_i32_0 = arith.constant 0 : i32
    %c0_i32_1 = arith.constant 0 : i32
    return %c0_i32, %c0_i32_0 : i32, i32
  }
  func.func @transform_3(%arg0: i32) -> (i32, i32, i32) {
    %c0_i32 = arith.constant 0 : i32
    %c0_i32_0 = arith.constant 0 : i32
    %c0_i32_1 = arith.constant 0 : i32
    %c0_i32_2 = arith.constant 0 : i32
    return %c0_i32, %c0_i32_0, %c0_i32_1 : i32, i32, i32
  }
  func.func @transform_4(%arg0: i32) -> (i32, i32, i32) {
    %c0_i32 = arith.constant 0 : i32
    %c0_i32_0 = arith.constant 0 : i32
    %c0_i32_1 = arith.constant 0 : i32
    %c0_i32_2 = arith.constant 0 : i32
    return %c0_i32, %c0_i32_0, %c0_i32_1 : i32, i32, i32
  }
  func.func @transform_5(%arg0: i32) -> (i32, i32, i32) {
    %c0_i32 = arith.constant 0 : i32
    %c0_i32_0 = arith.constant 0 : i32
    %c0_i32_1 = arith.constant 0 : i32
    %c0_i32_2 = arith.constant 0 : i32
    return %c0_i32, %c0_i32_0, %c0_i32_1 : i32, i32, i32
  }
  func.func @transform_6(%arg0: i32) -> (i32, i32) {
    %c0_i32 = arith.constant 0 : i32
    %c0_i32_0 = arith.constant 0 : i32
    %c0_i32_1 = arith.constant 0 : i32
    return %c0_i32, %c0_i32_0 : i32, i32
  }
  func.func @transform_7(%arg0: i32) -> (i32, i32, i32) {
    %c0_i32 = arith.constant 0 : i32
    %c0_i32_0 = arith.constant 0 : i32
    %c0_i32_1 = arith.constant 0 : i32
    %c0_i32_2 = arith.constant 0 : i32
    return %c0_i32, %c0_i32_0, %c0_i32_1 : i32, i32, i32
  }
  func.func @transform_8(%arg0: i32) -> (i32, i32, i32) {
    %c0_i32 = arith.constant 0 : i32
    %c0_i32_0 = arith.constant 0 : i32
    %c0_i32_1 = arith.constant 0 : i32
    %c0_i32_2 = arith.constant 0 : i32
    return %c0_i32, %c0_i32_0, %c0_i32_1 : i32, i32, i32
  }
  func.func @transform_9(%arg0: i32) -> (i32, i32, i32) {
    %c0_i32 = arith.constant 0 : i32
    %c0_i32_0 = arith.constant 0 : i32
    %c0_i32_1 = arith.constant 0 : i32
    %c0_i32_2 = arith.constant 0 : i32
    return %c0_i32, %c0_i32_0, %c0_i32_1 : i32, i32, i32
  }
  func.func @transform_10(%arg0: i32) -> (i32, i32) {
    %c0_i32 = arith.constant 0 : i32
    %c0_i32_0 = arith.constant 0 : i32
    %c0_i32_1 = arith.constant 0 : i32
    return %c0_i32, %c0_i32_0 : i32, i32
  }
  func.func @transform_11(%arg0: i32) -> (i32, i32) {
    %c0_i32 = arith.constant 0 : i32
    %c0_i32_0 = arith.constant 0 : i32
    %c0_i32_1 = arith.constant 0 : i32
    return %c0_i32, %c0_i32_0 : i32, i32
  }
  func.func @transform_12(%arg0: i32) -> (i32, i32) {
    %c0_i32 = arith.constant 0 : i32
    %c0_i32_0 = arith.constant 0 : i32
    %c0_i32_1 = arith.constant 0 : i32
    return %c0_i32, %c0_i32_0 : i32, i32
  }
  func.func @transform_13(%arg0: i32) -> (i32, i32) {
    %c0_i32 = arith.constant 0 : i32
    %c0_i32_0 = arith.constant 0 : i32
    %c0_i32_1 = arith.constant 0 : i32
    return %c0_i32, %c0_i32_0 : i32, i32
  }
  func.func @transform_14(%arg0: i32) -> (i32, i32) {
    %c0_i32 = arith.constant 0 : i32
    %c0_i32_0 = arith.constant 0 : i32
    %c0_i32_1 = arith.constant 0 : i32
    return %c0_i32, %c0_i32_0 : i32, i32
  }
  func.func @transform_15(%arg0: i32) -> (i32, i32) {
    %c0_i32 = arith.constant 0 : i32
    %c0_i32_0 = arith.constant 0 : i32
    return %arg0, %c0_i32 : i32, i32
  }
}

</mosaic_0001>

<llo_original>
// kernel: net_forward.1
$region0: #{net_forward.1}
  #allocation0 [shape = 'u32[]', space=smem, size = 0x4, offset = 0x4, fixed_abs, tag = 'smem constant byte address 0x4 - core index']
  #allocation1 [shape = 'u32[72,128]{1,0:T(1,128)}', space=vmem, size = 0x9000, scoped, tag = 'internal scratch']
  %s0 = inlined_call_operand.vmem [shape: f32[224,28], index: 0, kind: input, shape index: {}]
  %s1 = inlined_call_operand.vmem [shape: f32[5,28,144], index: 1, kind: input, shape index: {}]
  %s2 = inlined_call_operand.vmem [shape: f32[1,144], index: 2, kind: input, shape index: {}]
  %s3 = inlined_call_operand.vmem [shape: f32[2,96,220], index: 3, kind: input, shape index: {}]
  %s4 = inlined_call_operand.vmem [shape: f32[2,144,72], index: 4, kind: input, shape index: {}]
  %s5 = inlined_call_operand.vmem [shape: f32[5,72,128], index: 5, kind: input, shape index: {}]
  %s6 = inlined_call_operand.vmem [shape: f32[1,128], index: 6, kind: input, shape index: {}]
  %s7 = inlined_call_operand.hbm [shape: f32[2,32,92], index: 7, kind: input, shape index: {}]
  %s8 = inlined_call_operand.vmem [shape: f32[2,128,64], index: 8, kind: input, shape index: {}]
  %s9 = inlined_call_operand.hbm [shape: f32[4,64,120], index: 9, kind: input, shape index: {}]
  %s10 = inlined_call_operand.vmem [shape: f32[1,120], index: 10, kind: input, shape index: {}]
  %s11 = inlined_call_operand.vmem [shape: f32[120,84], index: 11, kind: input, shape index: {}]
  %s12 = inlined_call_operand.vmem [shape: f32[1,84], index: 12, kind: input, shape index: {}]
  %s13 = inlined_call_operand.hbm [shape: f32[84,128], index: 13, kind: input, shape index: {}]
  %s14 = inlined_call_operand.vmem [shape: f32[1,128], index: 14, kind: input, shape index: {}]
  %s15 = inlined_call_operand.vmem [shape: f32[8,128], index: 15, kind: output, shape index: {}]
  %s16 = sld [smem:[#allocation0]]
  $region82: #{net_forward.1} parent=0
    _
  %s18 = ssub.s32 1, %s16
  %s19 = scalar_select 0, %s18, %s16
  $region1: #{net_forward.1} parent=0
    #allocation2 [shape = 'u8[32768]{0}', space=vmem, size = 0x8000, scoped, tag = 'input window, operand 7, single buffered']
    #allocation3 [shape = 's32[1]{0}', space=sflag, size = 0x4, scoped, tag = 'scoped memory for net_forward.1']
    #allocation4 [shape = 'u8[131072]{0}', space=vmem, size = 0x20000, scoped, tag = 'input window, operand 9, single buffered']
    #allocation5 [shape = 's32[1]{0}', space=sflag, size = 0x4, scoped, tag = 'scoped memory for net_forward.1']
    #allocation6 [shape = 'u8[45056]{0}', space=vmem, size = 0xb000, scoped, tag = 'input window, operand 13, single buffered']
    %20 = vsyncpa [#allocation3], 0
    %21 = vsyncpa [#allocation5], 0
    // Predicated region
    $region2: #{net_forward.1} parent=1 // pred_check
      _
    $region3: #{net_forward.1} parent=1 // pred_check_branch
      %23 = sbr.rel (0) target = $region5
    $region4: #{net_forward.1} parent=1 // pred_region
      _
    $region5: #{net_forward.1} parent=1 // pred_fallthru
      _
    // Predicated region
    $region6: #{net_forward.1} parent=1 // pred_check
      _
    $region7: #{net_forward.1} parent=1 // pred_check_branch
      %25 = sbr.rel (0) target = $region9
    $region8: #{net_forward.1} parent=1 // pred_region
      _
    $region9: #{net_forward.1} parent=1 // pred_fallthru
      _
    // Predicated region
    $region10: #{net_forward.1} parent=1 // pred_check
      _
    $region11: #{net_forward.1} parent=1 // pred_check_branch
      %27 = sbr.rel (0) target = $region13
    $region12: #{net_forward.1} parent=1 // pred_region
      _
    $region13: #{net_forward.1} parent=1 // pred_fallthru
      _
    // Predicated region
    $region14: #{net_forward.1} parent=1 // pred_check
      _
    $region15: #{net_forward.1} parent=1 // pred_check_branch
      %29 = sbr.rel (0) target = $region17
    $region16: #{net_forward.1} parent=1 // pred_region
      _
    $region17: #{net_forward.1} parent=1 // pred_fallthru
      _
    // Predicated region
    $region18: #{net_forward.1} parent=1 // pred_check
      _
    $region19: #{net_forward.1} parent=1 // pred_check_branch
      %31 = sbr.rel (0) target = $region21
    $region20: #{net_forward.1} parent=1 // pred_region
      _
    $region21: #{net_forward.1} parent=1 // pred_fallthru
      _
    // Predicated region
    $region22: #{net_forward.1} parent=1 // pred_check
      _
    $region23: #{net_forward.1} parent=1 // pred_check_branch
      %33 = sbr.rel (0) target = $region25
    $region24: #{net_forward.1} parent=1 // pred_region
      _
    $region25: #{net_forward.1} parent=1 // pred_fallthru
      _
    // Predicated region
    $region26: #{net_forward.1} parent=1 // pred_check
      _
    $region27: #{net_forward.1} parent=1 // pred_check_branch
      %35 = sbr.rel (0) target = $region29
    $region28: #{net_forward.1} parent=1 // pred_region
      _
    $region29: #{net_forward.1} parent=1 // pred_fallthru
      _
    // Predicated region
    $region30: #{net_forward.1} parent=1 // pred_check
      _
    $region31: #{net_forward.1} parent=1 // pred_check_branch
      %37 = sbr.rel (0) target = $region33
    $region32: #{net_forward.1} parent=1 // pred_region
      %39 = vsyncadd [#allocation3], 0
      %s40 = sshll.u32 %s7, 4
      %s41 = int_to_ptr.hbm [resolvable:$true] %s40
      %s42 = sshll.u32 [#allocation2], 4
      %s43 = int_to_ptr.vmem [resolvable:$true] %s42
      %48 = dma.hbm_to_vmem [thread:$0]  %s41, 1024, %s43, [#allocation3], 128, 128, 8
    $region33: #{net_forward.1} parent=1 // pred_fallthru
      _
    // Predicated region
    $region34: #{net_forward.1} parent=1 // pred_check
      _
    $region35: #{net_forward.1} parent=1 // pred_check_branch
      %50 = sbr.rel (0) target = $region37
    $region36: #{net_forward.1} parent=1 // pred_region
      _
    $region37: #{net_forward.1} parent=1 // pred_fallthru
      _
    // Predicated region
    $region38: #{net_forward.1} parent=1 // pred_check
      _
    $region39: #{net_forward.1} parent=1 // pred_check_branch
      %52 = sbr.rel (0) target = $region41
    $region40: #{net_forward.1} parent=1 // pred_region
      %54 = vsyncadd [#allocation5], 0
      %s55 = sshll.u32 %s9, 4
      %s56 = int_to_ptr.hbm [resolvable:$true] %s55
      %s57 = sshll.u32 [#allocation4], 4
      %s58 = int_to_ptr.vmem [resolvable:$true] %s57
      %63 = dma.hbm_to_vmem [thread:$0]  %s56, 4096, %s58, [#allocation5], 128, 128, 8
    $region41: #{net_forward.1} parent=1 // pred_fallthru
      _
    // Predicated region
    $region42: #{net_forward.1} parent=1 // pred_check
      _
    $region43: #{net_forward.1} parent=1 // pred_check_branch
      %65 = sbr.rel (0) target = $region45
    $region44: #{net_forward.1} parent=1 // pred_region
      _
    $region45: #{net_forward.1} parent=1 // pred_fallthru
      _
    // Predicated region
    $region46: #{net_forward.1} parent=1 // pred_check
      _
    $region47: #{net_forward.1} parent=1 // pred_check_branch
      %67 = sbr.rel (0) target = $region49
    $region48: #{net_forward.1} parent=1 // pred_region
      _
    $region49: #{net_forward.1} parent=1 // pred_fallthru
      _
    // Predicated region
    $region50: #{net_forward.1} parent=1 // pred_check
      _
    $region51: #{net_forward.1} parent=1 // pred_check_branch
      %69 = sbr.rel (0) target = $region53
    $region52: #{net_forward.1} parent=1 // pred_region
      _
    $region53: #{net_forward.1} parent=1 // pred_fallthru
      _
    // Predicated region
    $region54: #{net_forward.1} parent=1 // pred_check
      _
    $region55: #{net_forward.1} parent=1 // pred_check_branch
      %71 = sbr.rel (0) target = $region57
    $region56: #{net_forward.1} parent=1 // pred_region
      %73 = vsyncadd [#allocation5], 0
      %s74 = sshll.u32 %s13, 4
      %s75 = int_to_ptr.hbm [resolvable:$true] %s74
      %s76 = sshll.u32 [#allocation6], 4
      %s77 = int_to_ptr.vmem [resolvable:$true] %s76
      %82 = dma.hbm_to_vmem [thread:$0]  %s75, 1408, %s77, [#allocation5], 128, 128, 8
    $region57: #{net_forward.1} parent=1 // pred_fallthru
      _
    // Predicated region
    $region58: #{net_forward.1} parent=1 // pred_check
      _
    $region59: #{net_forward.1} parent=1 // pred_check_branch
      %84 = sbr.rel (0) target = $region61
    $region60: #{net_forward.1} parent=1 // pred_region
      _
    $region61: #{net_forward.1} parent=1 // pred_fallthru
      _
    // Predicated region
    $region62: #{net_forward.1} parent=1 // pred_check
      _
    $region63: #{net_forward.1} parent=1 // pred_check_branch
      %86 = sbr.rel (0) target = $region65
    $region64: #{net_forward.1} parent=1 // pred_region
      %88 = dma.done [#allocation3], 1024
    $region65: #{net_forward.1} parent=1 // pred_fallthru
      _
    // Predicated region
    $region66: #{net_forward.1} parent=1 // pred_check
      _
    $region67: #{net_forward.1} parent=1 // pred_check_branch
      %90 = sbr.rel (0) target = $region69
    $region68: #{net_forward.1} parent=1 // pred_region
      %92 = dma.done [#allocation5], 4096
    $region69: #{net_forward.1} parent=1 // pred_fallthru
      _
    // Predicated region
    $region70: #{net_forward.1} parent=1 // pred_check
      _
    $region71: #{net_forward.1} parent=1 // pred_check_branch
      %94 = sbr.rel (0) target = $region73
    $region72: #{net_forward.1} parent=1 // pred_region
      %96 = dma.done [#allocation5], 1408
    $region73: #{net_forward.1} parent=1 // pred_fallthru
      _
    %v97 = vld [vmem:[%s0] sm:$0xff]
    %v98 = vld [vmem:[%s0 + $0x8] sm:$0xff]
    %v99 = vld [vmem:[%s0 + $0x10] sm:$0xff]
    %v100 = vld [vmem:[%s0 + $0x18] sm:$0xff]
    %v101 = vld [vmem:[%s0 + $0x20] sm:$0xff]
    %v102 = vld [vmem:[%s0 + $0x28] sm:$0xff]
    %v103 = vld [vmem:[%s0 + $0x30] sm:$0xff]
    %v104 = vld [vmem:[%s0 + $0x38] sm:$0xff]
    %v105 = vld [vmem:[%s0 + $0x40] sm:$0xff]
    %v106 = vld [vmem:[%s0 + $0x48] sm:$0xff]
    %v107 = vld [vmem:[%s0 + $0x50] sm:$0xff]
    %v108 = vld [vmem:[%s0 + $0x58] sm:$0xff]
    %v109 = vld [vmem:[%s0 + $0x60] sm:$0xff]
    %v110 = vld [vmem:[%s0 + $0x68] sm:$0xff]
    %v111 = vld [vmem:[%s0 + $0x70] sm:$0xff]
    %v112 = vld [vmem:[%s0 + $0x78] sm:$0xff]
    %v113 = vld [vmem:[%s0 + $0x80] sm:$0xff]
    %v114 = vld [vmem:[%s0 + $0x88] sm:$0xff]
    %v115 = vld [vmem:[%s0 + $0x90] sm:$0xff]
    %v116 = vld [vmem:[%s0 + $0x98] sm:$0xff]
    %v117 = vld [vmem:[%s0 + $0xa0] sm:$0xff]
    %v118 = vld [vmem:[%s0 + $0xa8] sm:$0xff]
    %v119 = vld [vmem:[%s0 + $0xb0] sm:$0xff]
    %v120 = vld [vmem:[%s0 + $0xb8] sm:$0xff]
    %v121 = vld [vmem:[%s0 + $0xc0] sm:$0xff]
    %v122 = vld [vmem:[%s0 + $0xc8] sm:$0xff]
    %v123 = vld [vmem:[%s0 + $0xd0] sm:$0xff]
    %v124 = vld [vmem:[%s0 + $0xd8] sm:$0xff]
    %v125 = vld [vmem:[%s1] sm:$0xff]
    %v126 = vld [vmem:[%s1 + $0x8] sm:$0xff]
    %v127 = vld [vmem:[%s1 + $0x10] sm:$0xff]
    %v128 = vld [vmem:[%s1 + $0x18] sm:$0xff]
    %v129 = vld [vmem:[%s1 + $0x20] sm:$0xff]
    %v130 = vld [vmem:[%s1 + $0x28] sm:$0xff]
    %v131 = vld [vmem:[%s1 + $0x30] sm:$0xf]
    %v132 = vld [vmem:[%s1 + $0x38] sm:$0xf]
    %s133 = scalar_lea.vmem %s1, 64
    %v134 = vld [vmem:[%s133] sm:$0xff]
    %v135 = vld [vmem:[%s133 + $0x8] sm:$0xff]
    %v136 = vld [vmem:[%s133 + $0x10] sm:$0xff]
    %v137 = vld [vmem:[%s133 + $0x18] sm:$0xff]
    %v138 = vld [vmem:[%s133 + $0x20] sm:$0xff]
    %v139 = vld [vmem:[%s133 + $0x28] sm:$0xff]
    %v140 = vld [vmem:[%s133 + $0x30] sm:$0xf]
    %v141 = vld [vmem:[%s133 + $0x38] sm:$0xf]
    %vm170 = vcmask 1046528
    %v171 = vrot.slane %v97, 1
    %v172 = vrot.slane %v98, 1
    %v173 = vsel %vm170, %v171, %v172
    %v174 = vrot.slane %v99, 1
    %v175 = vsel %vm170, %v172, %v174
    %v176 = vrot.slane %v100, 1
    %v177 = vsel %vm170, %v174, %v176
    %v178 = vrot.slane %v101, 1
    %v179 = vsel %vm170, %v176, %v178
    %v180 = vrot.slane %v102, 1
    %v181 = vsel %vm170, %v178, %v180
    %v182 = vrot.slane %v103, 1
    %v183 = vsel %vm170, %v180, %v182
    %v184 = vrot.slane %v104, 1
    %v185 = vsel %vm170, %v182, %v184
    %v186 = vrot.slane %v105, 1
    %v187 = vsel %vm170, %v184, %v186
    %v188 = vrot.slane %v106, 1
    %v189 = vsel %vm170, %v186, %v188
    %v190 = vrot.slane %v107, 1
    %v191 = vsel %vm170, %v188, %v190
    %v192 = vrot.slane %v108, 1
    %v193 = vsel %vm170, %v190, %v192
    %v194 = vrot.slane %v109, 1
    %v195 = vsel %vm170, %v192, %v194
    %v196 = vrot.slane %v110, 1
    %v197 = vsel %vm170, %v194, %v196
    %v198 = vrot.slane %v111, 1
    %v199 = vsel %vm170, %v196, %v198
    %v200 = vrot.slane %v112, 1
    %v201 = vsel %vm170, %v198, %v200
    %v202 = vrot.slane %v113, 1
    %v203 = vsel %vm170, %v200, %v202
    %v204 = vrot.slane %v114, 1
    %v205 = vsel %vm170, %v202, %v204
    %v206 = vrot.slane %v115, 1
    %v207 = vsel %vm170, %v204, %v206
    %v208 = vrot.slane %v116, 1
    %v209 = vsel %vm170, %v206, %v208
    %v210 = vrot.slane %v117, 1
    %v211 = vsel %vm170, %v208, %v210
    %v212 = vrot.slane %v118, 1
    %v213 = vsel %vm170, %v210, %v212
    %v214 = vrot.slane %v119, 1
    %v215 = vsel %vm170, %v212, %v214
    %v216 = vrot.slane %v120, 1
    %v217 = vsel %vm170, %v214, %v216
    %v218 = vrot.slane %v121, 1
    %v219 = vsel %vm170, %v216, %v218
    %v220 = vrot.slane %v122, 1
    %v221 = vsel %vm170, %v218, %v220
    %v222 = vrot.slane %v123, 1
    %v223 = vsel %vm170, %v220, %v222
    %v224 = vrot.slane %v124, 1
    %v225 = vsel %vm170, %v222, %v224
    %vm226 = vcmask 228352
    %v227 = vsel %vm226, %v173, 0
    %v229 = vsel %vm226, %v175, 0
    %v231 = vsel %vm226, %v177, 0
    %v233 = vsel %vm226, %v179, 0
    %v235 = vsel %vm226, %v181, 0
    %v237 = vsel %vm226, %v183, 0
    %v239 = vsel %vm226, %v185, 0
    %v241 = vsel %vm226, %v187, 0
    %v243 = vsel %vm226, %v189, 0
    %v245 = vsel %vm226, %v191, 0
    %v247 = vsel %vm226, %v193, 0
    %v249 = vsel %vm226, %v195, 0
    %v251 = vsel %vm226, %v197, 0
    %v253 = vsel %vm226, %v199, 0
    %v255 = vsel %vm226, %v201, 0
    %v257 = vsel %vm226, %v203, 0
    %v259 = vsel %vm226, %v205, 0
    %v261 = vsel %vm226, %v207, 0
    %v263 = vsel %vm226, %v209, 0
    %v265 = vsel %vm226, %v211, 0
    %v267 = vsel %vm226, %v213, 0
    %v269 = vsel %vm226, %v215, 0
    %v271 = vsel %vm226, %v217, 0
    %v273 = vsel %vm226, %v219, 0
    %v275 = vsel %vm226, %v221, 0
    %v277 = vsel %vm226, %v223, 0
    %v279 = vsel %vm226, %v225, 0
    %v281 = vsel %vm226, %v224, 0
    %vm283 = vcmask 1043456
    %v285 = vsel %vm283, %v140, 0
    %v288 = vsel %vm283, %v141, 0
    %290 = vmatpush.msra.mxu0 0.0
    %291 = vmatpush.msra.mxu0 0.0
    %292 = vmatpush.msra.mxu0 0.0
    %293 = vmatpush.msra.mxu0 0.0
    %294 = vmatpush.msra.mxu0 0.0
    %295 = vmatpush.msra.mxu0 0.0
    %296 = vmatpush.msra.mxu0 0.0
    %297 = vmatpush.msra.mxu0 0.0
    %298 = vmatpush.msra.mxu0 0.0
    %299 = vmatpush.msra.mxu0 0.0
    %300 = vmatpush.msra.mxu0 0.0
    %301 = vmatpush.msra.mxu0 0.0
    %302 = vmatpush.msra.mxu0 %v285
    %303 = vmatpush.msra.mxu0 %v138
    %304 = vmatpush.msra.mxu0 %v136
    %305 = vmatpush.msra.mxu0 %v134
    %306 = vmatmul.f32.gmra.mxu0 %v227
    %v307 = vpop.f32.mrf.mxu0
    %v308 = vadd.f32 0.0, %v307
    %309 = vmatmul.f32.gmra.mxu0 %v229
    %v310 = vpop.f32.mrf.mxu0
    %v311 = vadd.f32 0.0, %v310
    %312 = vmatmul.f32.gmra.mxu0 %v231
    %v313 = vpop.f32.mrf.mxu0
    %v314 = vadd.f32 0.0, %v313
    %315 = vmatmul.f32.gmra.mxu0 %v233
    %v316 = vpop.f32.mrf.mxu0
    %v317 = vadd.f32 0.0, %v316
    %318 = vmatmul.f32.gmra.mxu0 %v235
    %v319 = vpop.f32.mrf.mxu0
    %v320 = vadd.f32 0.0, %v319
    %321 = vmatmul.f32.gmra.mxu0 %v237
    %v322 = vpop.f32.mrf.mxu0
    %v323 = vadd.f32 0.0, %v322
    %324 = vmatmul.f32.gmra.mxu0 %v239
    %v325 = vpop.f32.mrf.mxu0
    %v326 = vadd.f32 0.0, %v325
    %327 = vmatmul.f32.gmra.mxu0 %v241
    %v328 = vpop.f32.mrf.mxu0
    %v329 = vadd.f32 0.0, %v328
    %330 = vmatmul.f32.gmra.mxu0 %v243
    %v331 = vpop.f32.mrf.mxu0
    %v332 = vadd.f32 0.0, %v331
    %333 = vmatmul.f32.gmra.mxu0 %v245
    %v334 = vpop.f32.mrf.mxu0
    %v335 = vadd.f32 0.0, %v334
    %336 = vmatmul.f32.gmra.mxu0 %v247
    %v337 = vpop.f32.mrf.mxu0
    %v338 = vadd.f32 0.0, %v337
    %339 = vmatmul.f32.gmra.mxu0 %v249
    %v340 = vpop.f32.mrf.mxu0
    %v341 = vadd.f32 0.0, %v340
    %342 = vmatmul.f32.gmra.mxu0 %v251
    %v343 = vpop.f32.mrf.mxu0
    %v344 = vadd.f32 0.0, %v343
    %345 = vmatmul.f32.gmra.mxu0 %v253
    %v346 = vpop.f32.mrf.mxu0
    %v347 = vadd.f32 0.0, %v346
    %348 = vmatmul.f32.gmra.mxu0 %v255
    %v349 = vpop.f32.mrf.mxu0
    %v350 = vadd.f32 0.0, %v349
    %351 = vmatmul.f32.gmra.mxu0 %v257
    %v352 = vpop.f32.mrf.mxu0
    %v353 = vadd.f32 0.0, %v352
    %354 = vmatmul.f32.gmra.mxu0 %v259
    %v355 = vpop.f32.mrf.mxu0
    %v356 = vadd.f32 0.0, %v355
    %357 = vmatmul.f32.gmra.mxu0 %v261
    %v358 = vpop.f32.mrf.mxu0
    %v359 = vadd.f32 0.0, %v358
    %360 = vmatmul.f32.gmra.mxu0 %v263
    %v361 = vpop.f32.mrf.mxu0
    %v362 = vadd.f32 0.0, %v361
    %363 = vmatmul.f32.gmra.mxu0 %v265
    %v364 = vpop.f32.mrf.mxu0
    %v365 = vadd.f32 0.0, %v364
    %366 = vmatmul.f32.gmra.mxu0 %v267
    %v367 = vpop.f32.mrf.mxu0
    %v368 = vadd.f32 0.0, %v367
    %369 = vmatmul.f32.gmra.mxu0 %v269
    %v370 = vpop.f32.mrf.mxu0
    %v371 = vadd.f32 0.0, %v370
    %372 = vmatmul.f32.gmra.mxu0 %v271
    %v373 = vpop.f32.mrf.mxu0
    %v374 = vadd.f32 0.0, %v373
    %375 = vmatmul.f32.gmra.mxu0 %v273
    %v376 = vpop.f32.mrf.mxu0
    %v377 = vadd.f32 0.0, %v376
    %378 = vmatmul.f32.gmra.mxu0 %v275
    %v379 = vpop.f32.mrf.mxu0
    %v380 = vadd.f32 0.0, %v379
    %381 = vmatmul.f32.gmra.mxu0 %v277
    %v382 = vpop.f32.mrf.mxu0
    %v383 = vadd.f32 0.0, %v382
    %384 = vmatmul.f32.gmra.mxu0 %v279
    %v385 = vpop.f32.mrf.mxu0
    %v386 = vadd.f32 0.0, %v385
    %387 = vmatmul.f32.gmra.mxu0 %v281
    %v388 = vpop.f32.mrf.mxu0
    %v389 = vadd.f32 0.0, %v388
    %390 = vdwg.mxu0
    %391 = vmatpush.msra.mxu0 0.0
    %392 = vmatpush.msra.mxu0 0.0
    %393 = vmatpush.msra.mxu0 0.0
    %394 = vmatpush.msra.mxu0 0.0
    %395 = vmatpush.msra.mxu0 0.0
    %396 = vmatpush.msra.mxu0 0.0
    %397 = vmatpush.msra.mxu0 0.0
    %398 = vmatpush.msra.mxu0 0.0
    %399 = vmatpush.msra.mxu0 0.0
    %400 = vmatpush.msra.mxu0 0.0
    %401 = vmatpush.msra.mxu0 0.0
    %402 = vmatpush.msra.mxu0 0.0
    %403 = vmatpush.msra.mxu0 %v288
    %404 = vmatpush.msra.mxu0 %v139
    %405 = vmatpush.msra.mxu0 %v137
    %406 = vmatpush.msra.mxu0 %v135
    %407 = vmatmul.f32.gmra.mxu0 %v227
    %v408 = vpop.f32.mrf.mxu0
    %v409 = vadd.f32 0.0, %v408
    %410 = vmatmul.f32.gmra.mxu0 %v229
    %v411 = vpop.f32.mrf.mxu0
    %v412 = vadd.f32 0.0, %v411
    %413 = vmatmul.f32.gmra.mxu0 %v231
    %v414 = vpop.f32.mrf.mxu0
    %v415 = vadd.f32 0.0, %v414
    %416 = vmatmul.f32.gmra.mxu0 %v233
    %v417 = vpop.f32.mrf.mxu0
    %v418 = vadd.f32 0.0, %v417
    %419 = vmatmul.f32.gmra.mxu0 %v235
    %v420 = vpop.f32.mrf.mxu0
    %v421 = vadd.f32 0.0, %v420
    %422 = vmatmul.f32.gmra.mxu0 %v237
    %v423 = vpop.f32.mrf.mxu0
    %v424 = vadd.f32 0.0, %v423
    %425 = vmatmul.f32.gmra.mxu0 %v239
    %v426 = vpop.f32.mrf.mxu0
    %v427 = vadd.f32 0.0, %v426
    %428 = vmatmul.f32.gmra.mxu0 %v241
    %v429 = vpop.f32.mrf.mxu0
    %v430 = vadd.f32 0.0, %v429
    %431 = vmatmul.f32.gmra.mxu0 %v243
    %v432 = vpop.f32.mrf.mxu0
    %v433 = vadd.f32 0.0, %v432
    %434 = vmatmul.f32.gmra.mxu0 %v245
    %v435 = vpop.f32.mrf.mxu0
    %v436 = vadd.f32 0.0, %v435
    %437 = vmatmul.f32.gmra.mxu0 %v247
    %v438 = vpop.f32.mrf.mxu0
    %v439 = vadd.f32 0.0, %v438
    %440 = vmatmul.f32.gmra.mxu0 %v249
    %v441 = vpop.f32.mrf.mxu0
    %v442 = vadd.f32 0.0, %v441
    %443 = vmatmul.f32.gmra.mxu0 %v251
    %v444 = vpop.f32.mrf.mxu0
    %v445 = vadd.f32 0.0, %v444
    %446 = vmatmul.f32.gmra.mxu0 %v253
    %v447 = vpop.f32.mrf.mxu0
    %v448 = vadd.f32 0.0, %v447
    %449 = vmatmul.f32.gmra.mxu0 %v255
    %v450 = vpop.f32.mrf.mxu0
    %v451 = vadd.f32 0.0, %v450
    %452 = vmatmul.f32.gmra.mxu0 %v257
    %v453 = vpop.f32.mrf.mxu0
    %v454 = vadd.f32 0.0, %v453
    %455 = vmatmul.f32.gmra.mxu0 %v259
    %v456 = vpop.f32.mrf.mxu0
    %v457 = vadd.f32 0.0, %v456
    %458 = vmatmul.f32.gmra.mxu0 %v261
    %v459 = vpop.f32.mrf.mxu0
    %v460 = vadd.f32 0.0, %v459
    %461 = vmatmul.f32.gmra.mxu0 %v263
    %v462 = vpop.f32.mrf.mxu0
    %v463 = vadd.f32 0.0, %v462
    %464 = vmatmul.f32.gmra.mxu0 %v265
    %v465 = vpop.f32.mrf.mxu0
    %v466 = vadd.f32 0.0, %v465
    %467 = vmatmul.f32.gmra.mxu0 %v267
    %v468 = vpop.f32.mrf.mxu0
    %v469 = vadd.f32 0.0, %v468
    %470 = vmatmul.f32.gmra.mxu0 %v269
    %v471 = vpop.f32.mrf.mxu0
    %v472 = vadd.f32 0.0, %v471
    %473 = vmatmul.f32.gmra.mxu0 %v271
    %v474 = vpop.f32.mrf.mxu0
    %v475 = vadd.f32 0.0, %v474
    %476 = vmatmul.f32.gmra.mxu0 %v273
    %v477 = vpop.f32.mrf.mxu0
    %v478 = vadd.f32 0.0, %v477
    %479 = vmatmul.f32.gmra.mxu0 %v275
    %v480 = vpop.f32.mrf.mxu0
    %v481 = vadd.f32 0.0, %v480
    %482 = vmatmul.f32.gmra.mxu0 %v277
    %v483 = vpop.f32.mrf.mxu0
    %v484 = vadd.f32 0.0, %v483
    %485 = vmatmul.f32.gmra.mxu0 %v279
    %v486 = vpop.f32.mrf.mxu0
    %v487 = vadd.f32 0.0, %v486
    %488 = vmatmul.f32.gmra.mxu0 %v281
    %v489 = vpop.f32.mrf.mxu0
    %v490 = vadd.f32 0.0, %v489
    %491 = vdwg.mxu0
    %v492 = vsel %vm226, %v97, 0
    %v494 = vsel %vm226, %v98, 0
    %v496 = vsel %vm226, %v99, 0
    %v498 = vsel %vm226, %v100, 0
    %v500 = vsel %vm226, %v101, 0
    %v502 = vsel %vm226, %v102, 0
    %v504 = vsel %vm226, %v103, 0
    %v506 = vsel %vm226, %v104, 0
    %v508 = vsel %vm226, %v105, 0
    %v510 = vsel %vm226, %v106, 0
    %v512 = vsel %vm226, %v107, 0
    %v514 = vsel %vm226, %v108, 0
    %v516 = vsel %vm226, %v109, 0
    %v518 = vsel %vm226, %v110, 0
    %v520 = vsel %vm226, %v111, 0
    %v522 = vsel %vm226, %v112, 0
    %v524 = vsel %vm226, %v113, 0
    %v526 = vsel %vm226, %v114, 0
    %v528 = vsel %vm226, %v115, 0
    %v530 = vsel %vm226, %v116, 0
    %v532 = vsel %vm226, %v117, 0
    %v534 = vsel %vm226, %v118, 0
    %v536 = vsel %vm226, %v119, 0
    %v538 = vsel %vm226, %v120, 0
    %v540 = vsel %vm226, %v121, 0
    %v542 = vsel %vm226, %v122, 0
    %v544 = vsel %vm226, %v123, 0
    %v546 = vsel %vm226, %v124, 0
    %v549 = vsel %vm283, %v131, 0
    %v552 = vsel %vm283, %v132, 0
    %554 = vmatpush.msra.mxu0 0.0
    %555 = vmatpush.msra.mxu0 0.0
    %556 = vmatpush.msra.mxu0 0.0
    %557 = vmatpush.msra.mxu0 0.0
    %558 = vmatpush.msra.mxu0 0.0
    %559 = vmatpush.msra.mxu0 0.0
    %560 = vmatpush.msra.mxu0 0.0
    %561 = vmatpush.msra.mxu0 0.0
    %562 = vmatpush.msra.mxu0 0.0
    %563 = vmatpush.msra.mxu0 0.0
    %564 = vmatpush.msra.mxu0 0.0
    %565 = vmatpush.msra.mxu0 0.0
    %566 = vmatpush.msra.mxu0 %v549
    %567 = vmatpush.msra.mxu0 %v129
    %568 = vmatpush.msra.mxu0 %v127
    %569 = vmatpush.msra.mxu0 %v125
    %570 = vmatmul.f32.gmra.mxu0 %v492
    %v571 = vpop.f32.mrf.mxu0
    %v572 = vadd.f32 %v308, %v571
    %573 = vmatmul.f32.gmra.mxu0 %v494
    %v574 = vpop.f32.mrf.mxu0
    %v575 = vadd.f32 %v311, %v574
    %576 = vmatmul.f32.gmra.mxu0 %v496
    %v577 = vpop.f32.mrf.mxu0
    %v578 = vadd.f32 %v314, %v577
    %579 = vmatmul.f32.gmra.mxu0 %v498
    %v580 = vpop.f32.mrf.mxu0
    %v581 = vadd.f32 %v317, %v580
    %582 = vmatmul.f32.gmra.mxu0 %v500
    %v583 = vpop.f32.mrf.mxu0
    %v584 = vadd.f32 %v320, %v583
    %585 = vmatmul.f32.gmra.mxu0 %v502
    %v586 = vpop.f32.mrf.mxu0
    %v587 = vadd.f32 %v323, %v586
    %588 = vmatmul.f32.gmra.mxu0 %v504
    %v589 = vpop.f32.mrf.mxu0
    %v590 = vadd.f32 %v326, %v589
    %591 = vmatmul.f32.gmra.mxu0 %v506
    %v592 = vpop.f32.mrf.mxu0
    %v593 = vadd.f32 %v329, %v592
    %594 = vmatmul.f32.gmra.mxu0 %v508
    %v595 = vpop.f32.mrf.mxu0
    %v596 = vadd.f32 %v332, %v595
    %597 = vmatmul.f32.gmra.mxu0 %v510
    %v598 = vpop.f32.mrf.mxu0
    %v599 = vadd.f32 %v335, %v598
    %600 = vmatmul.f32.gmra.mxu0 %v512
    %v601 = vpop.f32.mrf.mxu0
    %v602 = vadd.f32 %v338, %v601
    %603 = vmatmul.f32.gmra.mxu0 %v514
    %v604 = vpop.f32.mrf.mxu0
    %v605 = vadd.f32 %v341, %v604
    %606 = vmatmul.f32.gmra.mxu0 %v516
    %v607 = vpop.f32.mrf.mxu0
    %v608 = vadd.f32 %v344, %v607
    %609 = vmatmul.f32.gmra.mxu0 %v518
    %v610 = vpop.f32.mrf.mxu0
    %v611 = vadd.f32 %v347, %v610
    %612 = vmatmul.f32.gmra.mxu0 %v520
    %v613 = vpop.f32.mrf.mxu0
    %v614 = vadd.f32 %v350, %v613
    %615 = vmatmul.f32.gmra.mxu0 %v522
    %v616 = vpop.f32.mrf.mxu0
    %v617 = vadd.f32 %v353, %v616
    %618 = vmatmul.f32.gmra.mxu0 %v524
    %v619 = vpop.f32.mrf.mxu0
    %v620 = vadd.f32 %v356, %v619
    %621 = vmatmul.f32.gmra.mxu0 %v526
    %v622 = vpop.f32.mrf.mxu0
    %v623 = vadd.f32 %v359, %v622
    %624 = vmatmul.f32.gmra.mxu0 %v528
    %v625 = vpop.f32.mrf.mxu0
    %v626 = vadd.f32 %v362, %v625
    %627 = vmatmul.f32.gmra.mxu0 %v530
    %v628 = vpop.f32.mrf.mxu0
    %v629 = vadd.f32 %v365, %v628
    %630 = vmatmul.f32.gmra.mxu0 %v532
    %v631 = vpop.f32.mrf.mxu0
    %v632 = vadd.f32 %v368, %v631
    %633 = vmatmul.f32.gmra.mxu0 %v534
    %v634 = vpop.f32.mrf.mxu0
    %v635 = vadd.f32 %v371, %v634
    %636 = vmatmul.f32.gmra.mxu0 %v536
    %v637 = vpop.f32.mrf.mxu0
    %v638 = vadd.f32 %v374, %v637
    %639 = vmatmul.f32.gmra.mxu0 %v538
    %v640 = vpop.f32.mrf.mxu0
    %v641 = vadd.f32 %v377, %v640
    %642 = vmatmul.f32.gmra.mxu0 %v540
    %v643 = vpop.f32.mrf.mxu0
    %v644 = vadd.f32 %v380, %v643
    %645 = vmatmul.f32.gmra.mxu0 %v542
    %v646 = vpop.f32.mrf.mxu0
    %v647 = vadd.f32 %v383, %v646
    %648 = vmatmul.f32.gmra.mxu0 %v544
    %v649 = vpop.f32.mrf.mxu0
    %v650 = vadd.f32 %v386, %v649
    %651 = vmatmul.f32.gmra.mxu0 %v546
    %v652 = vpop.f32.mrf.mxu0
    %v653 = vadd.f32 %v389, %v652
    %654 = vdwg.mxu0
    %655 = vmatpush.msra.mxu0 0.0
    %656 = vmatpush.msra.mxu0 0.0
    %657 = vmatpush.msra.mxu0 0.0
    %658 = vmatpush.msra.mxu0 0.0
    %659 = vmatpush.msra.mxu0 0.0
    %660 = vmatpush.msra.mxu0 0.0
    %661 = vmatpush.msra.mxu0 0.0
    %662 = vmatpush.msra.mxu0 0.0
    %663 = vmatpush.msra.mxu0 0.0
    %664 = vmatpush.msra.mxu0 0.0
    %665 = vmatpush.msra.mxu0 0.0
    %666 = vmatpush.msra.mxu0 0.0
    %667 = vmatpush.msra.mxu0 %v552
    %668 = vmatpush.msra.mxu0 %v130
    %669 = vmatpush.msra.mxu0 %v128
    %670 = vmatpush.msra.mxu0 %v126
    %671 = vmatmul.f32.gmra.mxu0 %v492
    %v672 = vpop.f32.mrf.mxu0
    %v673 = vadd.f32 %v409, %v672
    %674 = vmatmul.f32.gmra.mxu0 %v494
    %v675 = vpop.f32.mrf.mxu0
    %v676 = vadd.f32 %v412, %v675
    %677 = vmatmul.f32.gmra.mxu0 %v496
    %v678 = vpop.f32.mrf.mxu0
    %v679 = vadd.f32 %v415, %v678
    %680 = vmatmul.f32.gmra.mxu0 %v498
    %v681 = vpop.f32.mrf.mxu0
    %v682 = vadd.f32 %v418, %v681
    %683 = vmatmul.f32.gmra.mxu0 %v500
    %v684 = vpop.f32.mrf.mxu0
    %v685 = vadd.f32 %v421, %v684
    %686 = vmatmul.f32.gmra.mxu0 %v502
    %v687 = vpop.f32.mrf.mxu0
    %v688 = vadd.f32 %v424, %v687
    %689 = vmatmul.f32.gmra.mxu0 %v504
    %v690 = vpop.f32.mrf.mxu0
    %v691 = vadd.f32 %v427, %v690
    %692 = vmatmul.f32.gmra.mxu0 %v506
    %v693 = vpop.f32.mrf.mxu0
    %v694 = vadd.f32 %v430, %v693
    %695 = vmatmul.f32.gmra.mxu0 %v508
    %v696 = vpop.f32.mrf.mxu0
    %v697 = vadd.f32 %v433, %v696
    %698 = vmatmul.f32.gmra.mxu0 %v510
    %v699 = vpop.f32.mrf.mxu0
    %v700 = vadd.f32 %v436, %v699
    %701 = vmatmul.f32.gmra.mxu0 %v512
    %v702 = vpop.f32.mrf.mxu0
    %v703 = vadd.f32 %v439, %v702
    %704 = vmatmul.f32.gmra.mxu0 %v514
    %v705 = vpop.f32.mrf.mxu0
    %v706 = vadd.f32 %v442, %v705
    %707 = vmatmul.f32.gmra.mxu0 %v516
    %v708 = vpop.f32.mrf.mxu0
    %v709 = vadd.f32 %v445, %v708
    %710 = vmatmul.f32.gmra.mxu0 %v518
    %v711 = vpop.f32.mrf.mxu0
    %v712 = vadd.f32 %v448, %v711
    %713 = vmatmul.f32.gmra.mxu0 %v520
    %v714 = vpop.f32.mrf.mxu0
    %v715 = vadd.f32 %v451, %v714
    %716 = vmatmul.f32.gmra.mxu0 %v522
    %v717 = vpop.f32.mrf.mxu0
    %v718 = vadd.f32 %v454, %v717
    %719 = vmatmul.f32.gmra.mxu0 %v524
    %v720 = vpop.f32.mrf.mxu0
    %v721 = vadd.f32 %v457, %v720
    %722 = vmatmul.f32.gmra.mxu0 %v526
    %v723 = vpop.f32.mrf.mxu0
    %v724 = vadd.f32 %v460, %v723
    %725 = vmatmul.f32.gmra.mxu0 %v528
    %v726 = vpop.f32.mrf.mxu0
    %v727 = vadd.f32 %v463, %v726
    %728 = vmatmul.f32.gmra.mxu0 %v530
    %v729 = vpop.f32.mrf.mxu0
    %v730 = vadd.f32 %v466, %v729
    %731 = vmatmul.f32.gmra.mxu0 %v532
    %v732 = vpop.f32.mrf.mxu0
    %v733 = vadd.f32 %v469, %v732
    %734 = vmatmul.f32.gmra.mxu0 %v534
    %v735 = vpop.f32.mrf.mxu0
    %v736 = vadd.f32 %v472, %v735
    %737 = vmatmul.f32.gmra.mxu0 %v536
    %v738 = vpop.f32.mrf.mxu0
    %v739 = vadd.f32 %v475, %v738
    %740 = vmatmul.f32.gmra.mxu0 %v538
    %v741 = vpop.f32.mrf.mxu0
    %v742 = vadd.f32 %v478, %v741
    %743 = vmatmul.f32.gmra.mxu0 %v540
    %v744 = vpop.f32.mrf.mxu0
    %v745 = vadd.f32 %v481, %v744
    %746 = vmatmul.f32.gmra.mxu0 %v542
    %v747 = vpop.f32.mrf.mxu0
    %v748 = vadd.f32 %v484, %v747
    %749 = vmatmul.f32.gmra.mxu0 %v544
    %v750 = vpop.f32.mrf.mxu0
    %v751 = vadd.f32 %v487, %v750
    %752 = vmatmul.f32.gmra.mxu0 %v546
    %v753 = vpop.f32.mrf.mxu0
    %v754 = vadd.f32 %v490, %v753
    %755 = vdwg.mxu0
    %s756 = scalar_lea.vmem %s1, 128
    %v757 = vld [vmem:[%s756] sm:$0xff]
    %v758 = vld [vmem:[%s756 + $0x8] sm:$0xff]
    %v759 = vld [vmem:[%s756 + $0x10] sm:$0xff]
    %v760 = vld [vmem:[%s756 + $0x18] sm:$0xff]
    %v761 = vld [vmem:[%s756 + $0x20] sm:$0xff]
    %v762 = vld [vmem:[%s756 + $0x28] sm:$0xff]
    %v763 = vld [vmem:[%s756 + $0x30] sm:$0xf]
    %v764 = vld [vmem:[%s756 + $0x38] sm:$0xf]
    %vm765 = vcmask 1045504
    %v766 = vrot.slane %v97, 2
    %v767 = vrot.slane %v98, 2
    %v768 = vsel %vm765, %v766, %v767
    %v769 = vrot.slane %v99, 2
    %v770 = vsel %vm765, %v767, %v769
    %v771 = vrot.slane %v100, 2
    %v772 = vsel %vm765, %v769, %v771
    %v773 = vrot.slane %v101, 2
    %v774 = vsel %vm765, %v771, %v773
    %v775 = vrot.slane %v102, 2
    %v776 = vsel %vm765, %v773, %v775
    %v777 = vrot.slane %v103, 2
    %v778 = vsel %vm765, %v775, %v777
    %v779 = vrot.slane %v104, 2
    %v780 = vsel %vm765, %v777, %v779
    %v781 = vrot.slane %v105, 2
    %v782 = vsel %vm765, %v779, %v781
    %v783 = vrot.slane %v106, 2
    %v784 = vsel %vm765, %v781, %v783
    %v785 = vrot.slane %v107, 2
    %v786 = vsel %vm765, %v783, %v785
    %v787 = vrot.slane %v108, 2
    %v788 = vsel %vm765, %v785, %v787
    %v789 = vrot.slane %v109, 2
    %v790 = vsel %vm765, %v787, %v789
    %v791 = vrot.slane %v110, 2
    %v792 = vsel %vm765, %v789, %v791
    %v793 = vrot.slane %v111, 2
    %v794 = vsel %vm765, %v791, %v793
    %v795 = vrot.slane %v112, 2
    %v796 = vsel %vm765, %v793, %v795
    %v797 = vrot.slane %v113, 2
    %v798 = vsel %vm765, %v795, %v797
    %v799 = vrot.slane %v114, 2
    %v800 = vsel %vm765, %v797, %v799
    %v801 = vrot.slane %v115, 2
    %v802 = vsel %vm765, %v799, %v801
    %v803 = vrot.slane %v116, 2
    %v804 = vsel %vm765, %v801, %v803
    %v805 = vrot.slane %v117, 2
    %v806 = vsel %vm765, %v803, %v805
    %v807 = vrot.slane %v118, 2
    %v808 = vsel %vm765, %v805, %v807
    %v809 = vrot.slane %v119, 2
    %v810 = vsel %vm765, %v807, %v809
    %v811 = vrot.slane %v120, 2
    %v812 = vsel %vm765, %v809, %v811
    %v813 = vrot.slane %v121, 2
    %v814 = vsel %vm765, %v811, %v813
    %v815 = vrot.slane %v122, 2
    %v816 = vsel %vm765, %v813, %v815
    %v817 = vrot.slane %v123, 2
    %v818 = vsel %vm765, %v815, %v817
    %v819 = vrot.slane %v124, 2
    %v820 = vsel %vm765, %v817, %v819
    %v821 = vsel %vm226, %v768, 0
    %v823 = vsel %vm226, %v770, 0
    %v825 = vsel %vm226, %v772, 0
    %v827 = vsel %vm226, %v774, 0
    %v829 = vsel %vm226, %v776, 0
    %v831 = vsel %vm226, %v778, 0
    %v833 = vsel %vm226, %v780, 0
    %v835 = vsel %vm226, %v782, 0
    %v837 = vsel %vm226, %v784, 0
    %v839 = vsel %vm226, %v786, 0
    %v841 = vsel %vm226, %v788, 0
    %v843 = vsel %vm226, %v790, 0
    %v845 = vsel %vm226, %v792, 0
    %v847 = vsel %vm226, %v794, 0
    %v849 = vsel %vm226, %v796, 0
    %v851 = vsel %vm226, %v798, 0
    %v853 = vsel %vm226, %v800, 0
    %v855 = vsel %vm226, %v802, 0
    %v857 = vsel %vm226, %v804, 0
    %v859 = vsel %vm226, %v806, 0
    %v861 = vsel %vm226, %v808, 0
    %v863 = vsel %vm226, %v810, 0
    %v865 = vsel %vm226, %v812, 0
    %v867 = vsel %vm226, %v814, 0
    %v869 = vsel %vm226, %v816, 0
    %v871 = vsel %vm226, %v818, 0
    %v873 = vsel %vm226, %v820, 0
    %v875 = vsel %vm226, %v819, 0
    %v878 = vsel %vm283, %v763, 0
    %v881 = vsel %vm283, %v764, 0
    %883 = vmatpush.msra.mxu0 0.0
    %884 = vmatpush.msra.mxu0 0.0
    %885 = vmatpush.msra.mxu0 0.0
    %886 = vmatpush.msra.mxu0 0.0
    %887 = vmatpush.msra.mxu0 0.0
    %888 = vmatpush.msra.mxu0 0.0
    %889 = vmatpush.msra.mxu0 0.0
    %890 = vmatpush.msra.mxu0 0.0
    %891 = vmatpush.msra.mxu0 0.0
    %892 = vmatpush.msra.mxu0 0.0
    %893 = vmatpush.msra.mxu0 0.0
    %894 = vmatpush.msra.mxu0 0.0
    %895 = vmatpush.msra.mxu0 %v878
    %896 = vmatpush.msra.mxu0 %v761
    %897 = vmatpush.msra.mxu0 %v759
    %898 = vmatpush.msra.mxu0 %v757
    %899 = vmatmul.f32.gmra.mxu0 %v821
    %v900 = vpop.f32.mrf.mxu0
    %v901 = vadd.f32 0.0, %v900
    %902 = vmatmul.f32.gmra.mxu0 %v823
    %v903 = vpop.f32.mrf.mxu0
    %v904 = vadd.f32 0.0, %v903
    %905 = vmatmul.f32.gmra.mxu0 %v825
    %v906 = vpop.f32.mrf.mxu0
    %v907 = vadd.f32 0.0, %v906
    %908 = vmatmul.f32.gmra.mxu0 %v827
    %v909 = vpop.f32.mrf.mxu0
    %v910 = vadd.f32 0.0, %v909
    %911 = vmatmul.f32.gmra.mxu0 %v829
    %v912 = vpop.f32.mrf.mxu0
    %v913 = vadd.f32 0.0, %v912
    %914 = vmatmul.f32.gmra.mxu0 %v831
    %v915 = vpop.f32.mrf.mxu0
    %v916 = vadd.f32 0.0, %v915
    %917 = vmatmul.f32.gmra.mxu0 %v833
    %v918 = vpop.f32.mrf.mxu0
    %v919 = vadd.f32 0.0, %v918
    %920 = vmatmul.f32.gmra.mxu0 %v835
    %v921 = vpop.f32.mrf.mxu0
    %v922 = vadd.f32 0.0, %v921
    %923 = vmatmul.f32.gmra.mxu0 %v837
    %v924 = vpop.f32.mrf.mxu0
    %v925 = vadd.f32 0.0, %v924
    %926 = vmatmul.f32.gmra.mxu0 %v839
    %v927 = vpop.f32.mrf.mxu0
    %v928 = vadd.f32 0.0, %v927
    %929 = vmatmul.f32.gmra.mxu0 %v841
    %v930 = vpop.f32.mrf.mxu0
    %v931 = vadd.f32 0.0, %v930
    %932 = vmatmul.f32.gmra.mxu0 %v843
    %v933 = vpop.f32.mrf.mxu0
    %v934 = vadd.f32 0.0, %v933
    %935 = vmatmul.f32.gmra.mxu0 %v845
    %v936 = vpop.f32.mrf.mxu0
    %v937 = vadd.f32 0.0, %v936
    %938 = vmatmul.f32.gmra.mxu0 %v847
    %v939 = vpop.f32.mrf.mxu0
    %v940 = vadd.f32 0.0, %v939
    %941 = vmatmul.f32.gmra.mxu0 %v849
    %v942 = vpop.f32.mrf.mxu0
    %v943 = vadd.f32 0.0, %v942
    %944 = vmatmul.f32.gmra.mxu0 %v851
    %v945 = vpop.f32.mrf.mxu0
    %v946 = vadd.f32 0.0, %v945
    %947 = vmatmul.f32.gmra.mxu0 %v853
    %v948 = vpop.f32.mrf.mxu0
    %v949 = vadd.f32 0.0, %v948
    %950 = vmatmul.f32.gmra.mxu0 %v855
    %v951 = vpop.f32.mrf.mxu0
    %v952 = vadd.f32 0.0, %v951
    %953 = vmatmul.f32.gmra.mxu0 %v857
    %v954 = vpop.f32.mrf.mxu0
    %v955 = vadd.f32 0.0, %v954
    %956 = vmatmul.f32.gmra.mxu0 %v859
    %v957 = vpop.f32.mrf.mxu0
    %v958 = vadd.f32 0.0, %v957
    %959 = vmatmul.f32.gmra.mxu0 %v861
    %v960 = vpop.f32.mrf.mxu0
    %v961 = vadd.f32 0.0, %v960
    %962 = vmatmul.f32.gmra.mxu0 %v863
    %v963 = vpop.f32.mrf.mxu0
    %v964 = vadd.f32 0.0, %v963
    %965 = vmatmul.f32.gmra.mxu0 %v865
    %v966 = vpop.f32.mrf.mxu0
    %v967 = vadd.f32 0.0, %v966
    %968 = vmatmul.f32.gmra.mxu0 %v867
    %v969 = vpop.f32.mrf.mxu0
    %v970 = vadd.f32 0.0, %v969
    %971 = vmatmul.f32.gmra.mxu0 %v869
    %v972 = vpop.f32.mrf.mxu0
    %v973 = vadd.f32 0.0, %v972
    %974 = vmatmul.f32.gmra.mxu0 %v871
    %v975 = vpop.f32.mrf.mxu0
    %v976 = vadd.f32 0.0, %v975
    %977 = vmatmul.f32.gmra.mxu0 %v873
    %v978 = vpop.f32.mrf.mxu0
    %v979 = vadd.f32 0.0, %v978
    %980 = vmatmul.f32.gmra.mxu0 %v875
    %v981 = vpop.f32.mrf.mxu0
    %v982 = vadd.f32 0.0, %v981
    %983 = vdwg.mxu0
    %984 = vmatpush.msra.mxu0 0.0
    %985 = vmatpush.msra.mxu0 0.0
    %986 = vmatpush.msra.mxu0 0.0
    %987 = vmatpush.msra.mxu0 0.0
    %988 = vmatpush.msra.mxu0 0.0
    %989 = vmatpush.msra.mxu0 0.0
    %990 = vmatpush.msra.mxu0 0.0
    %991 = vmatpush.msra.mxu0 0.0
    %992 = vmatpush.msra.mxu0 0.0
    %993 = vmatpush.msra.mxu0 0.0
    %994 = vmatpush.msra.mxu0 0.0
    %995 = vmatpush.msra.mxu0 0.0
    %996 = vmatpush.msra.mxu0 %v881
    %997 = vmatpush.msra.mxu0 %v762
    %998 = vmatpush.msra.mxu0 %v760
    %999 = vmatpush.msra.mxu0 %v758
    %1000 = vmatmul.f32.gmra.mxu0 %v821
    %v1001 = vpop.f32.mrf.mxu0
    %v1002 = vadd.f32 0.0, %v1001
    %1003 = vmatmul.f32.gmra.mxu0 %v823
    %v1004 = vpop.f32.mrf.mxu0
    %v1005 = vadd.f32 0.0, %v1004
    %1006 = vmatmul.f32.gmra.mxu0 %v825
    %v1007 = vpop.f32.mrf.mxu0
    %v1008 = vadd.f32 0.0, %v1007
    %1009 = vmatmul.f32.gmra.mxu0 %v827
    %v1010 = vpop.f32.mrf.mxu0
    %v1011 = vadd.f32 0.0, %v1010
    %1012 = vmatmul.f32.gmra.mxu0 %v829
    %v1013 = vpop.f32.mrf.mxu0
    %v1014 = vadd.f32 0.0, %v1013
    %1015 = vmatmul.f32.gmra.mxu0 %v831
    %v1016 = vpop.f32.mrf.mxu0
    %v1017 = vadd.f32 0.0, %v1016
    %1018 = vmatmul.f32.gmra.mxu0 %v833
    %v1019 = vpop.f32.mrf.mxu0
    %v1020 = vadd.f32 0.0, %v1019
    %1021 = vmatmul.f32.gmra.mxu0 %v835
    %v1022 = vpop.f32.mrf.mxu0
    %v1023 = vadd.f32 0.0, %v1022
    %1024 = vmatmul.f32.gmra.mxu0 %v837
    %v1025 = vpop.f32.mrf.mxu0
    %v1026 = vadd.f32 0.0, %v1025
    %1027 = vmatmul.f32.gmra.mxu0 %v839
    %v1028 = vpop.f32.mrf.mxu0
    %v1029 = vadd.f32 0.0, %v1028
    %1030 = vmatmul.f32.gmra.mxu0 %v841
    %v1031 = vpop.f32.mrf.mxu0
    %v1032 = vadd.f32 0.0, %v1031
    %1033 = vmatmul.f32.gmra.mxu0 %v843
    %v1034 = vpop.f32.mrf.mxu0
    %v1035 = vadd.f32 0.0, %v1034
    %1036 = vmatmul.f32.gmra.mxu0 %v845
    %v1037 = vpop.f32.mrf.mxu0
    %v1038 = vadd.f32 0.0, %v1037
    %1039 = vmatmul.f32.gmra.mxu0 %v847
    %v1040 = vpop.f32.mrf.mxu0
    %v1041 = vadd.f32 0.0, %v1040
    %1042 = vmatmul.f32.gmra.mxu0 %v849
    %v1043 = vpop.f32.mrf.mxu0
    %v1044 = vadd.f32 0.0, %v1043
    %1045 = vmatmul.f32.gmra.mxu0 %v851
    %v1046 = vpop.f32.mrf.mxu0
    %v1047 = vadd.f32 0.0, %v1046
    %1048 = vmatmul.f32.gmra.mxu0 %v853
    %v1049 = vpop.f32.mrf.mxu0
    %v1050 = vadd.f32 0.0, %v1049
    %1051 = vmatmul.f32.gmra.mxu0 %v855
    %v1052 = vpop.f32.mrf.mxu0
    %v1053 = vadd.f32 0.0, %v1052
    %1054 = vmatmul.f32.gmra.mxu0 %v857
    %v1055 = vpop.f32.mrf.mxu0
    %v1056 = vadd.f32 0.0, %v1055
    %1057 = vmatmul.f32.gmra.mxu0 %v859
    %v1058 = vpop.f32.mrf.mxu0
    %v1059 = vadd.f32 0.0, %v1058
    %1060 = vmatmul.f32.gmra.mxu0 %v861
    %v1061 = vpop.f32.mrf.mxu0
    %v1062 = vadd.f32 0.0, %v1061
    %1063 = vmatmul.f32.gmra.mxu0 %v863
    %v1064 = vpop.f32.mrf.mxu0
    %v1065 = vadd.f32 0.0, %v1064
    %1066 = vmatmul.f32.gmra.mxu0 %v865
    %v1067 = vpop.f32.mrf.mxu0
    %v1068 = vadd.f32 0.0, %v1067
    %1069 = vmatmul.f32.gmra.mxu0 %v867
    %v1070 = vpop.f32.mrf.mxu0
    %v1071 = vadd.f32 0.0, %v1070
    %1072 = vmatmul.f32.gmra.mxu0 %v869
    %v1073 = vpop.f32.mrf.mxu0
    %v1074 = vadd.f32 0.0, %v1073
    %1075 = vmatmul.f32.gmra.mxu0 %v871
    %v1076 = vpop.f32.mrf.mxu0
    %v1077 = vadd.f32 0.0, %v1076
    %1078 = vmatmul.f32.gmra.mxu0 %v873
    %v1079 = vpop.f32.mrf.mxu0
    %v1080 = vadd.f32 0.0, %v1079
    %1081 = vmatmul.f32.gmra.mxu0 %v875
    %v1082 = vpop.f32.mrf.mxu0
    %v1083 = vadd.f32 0.0, %v1082
    %1084 = vdwg.mxu0
    %v1085 = vadd.f32 %v572, %v901
    %v1086 = vadd.f32 %v673, %v1002
    %v1087 = vadd.f32 %v575, %v904
    %v1088 = vadd.f32 %v676, %v1005
    %v1089 = vadd.f32 %v578, %v907
    %v1090 = vadd.f32 %v679, %v1008
    %v1091 = vadd.f32 %v581, %v910
    %v1092 = vadd.f32 %v682, %v1011
    %v1093 = vadd.f32 %v584, %v913
    %v1094 = vadd.f32 %v685, %v1014
    %v1095 = vadd.f32 %v587, %v916
    %v1096 = vadd.f32 %v688, %v1017
    %v1097 = vadd.f32 %v590, %v919
    %v1098 = vadd.f32 %v691, %v1020
    %v1099 = vadd.f32 %v593, %v922
    %v1100 = vadd.f32 %v694, %v1023
    %v1101 = vadd.f32 %v596, %v925
    %v1102 = vadd.f32 %v697, %v1026
    %v1103 = vadd.f32 %v599, %v928
    %v1104 = vadd.f32 %v700, %v1029
    %v1105 = vadd.f32 %v602, %v931
    %v1106 = vadd.f32 %v703, %v1032
    %v1107 = vadd.f32 %v605, %v934
    %v1108 = vadd.f32 %v706, %v1035
    %v1109 = vadd.f32 %v608, %v937
    %v1110 = vadd.f32 %v709, %v1038
    %v1111 = vadd.f32 %v611, %v940
    %v1112 = vadd.f32 %v712, %v1041
    %v1113 = vadd.f32 %v614, %v943
    %v1114 = vadd.f32 %v715, %v1044
    %v1115 = vadd.f32 %v617, %v946
    %v1116 = vadd.f32 %v718, %v1047
    %v1117 = vadd.f32 %v620, %v949
    %v1118 = vadd.f32 %v721, %v1050
    %v1119 = vadd.f32 %v623, %v952
    %v1120 = vadd.f32 %v724, %v1053
    %v1121 = vadd.f32 %v626, %v955
    %v1122 = vadd.f32 %v727, %v1056
    %v1123 = vadd.f32 %v629, %v958
    %v1124 = vadd.f32 %v730, %v1059
    %v1125 = vadd.f32 %v632, %v961
    %v1126 = vadd.f32 %v733, %v1062
    %v1127 = vadd.f32 %v635, %v964
    %v1128 = vadd.f32 %v736, %v1065
    %v1129 = vadd.f32 %v638, %v967
    %v1130 = vadd.f32 %v739, %v1068
    %v1131 = vadd.f32 %v641, %v970
    %v1132 = vadd.f32 %v742, %v1071
    %v1133 = vadd.f32 %v644, %v973
    %v1134 = vadd.f32 %v745, %v1074
    %v1135 = vadd.f32 %v647, %v976
    %v1136 = vadd.f32 %v748, %v1077
    %v1137 = vadd.f32 %v650, %v979
    %v1138 = vadd.f32 %v751, %v1080
    %v1139 = vadd.f32 %v653, %v982
    %v1140 = vadd.f32 %v754, %v1083
    %s1141 = scalar_lea.vmem %s1, 192
    %v1142 = vld [vmem:[%s1141] sm:$0xff]
    %v1143 = vld [vmem:[%s1141 + $0x8] sm:$0xff]
    %v1144 = vld [vmem:[%s1141 + $0x10] sm:$0xff]
    %v1145 = vld [vmem:[%s1141 + $0x18] sm:$0xff]
    %v1146 = vld [vmem:[%s1141 + $0x20] sm:$0xff]
    %v1147 = vld [vmem:[%s1141 + $0x28] sm:$0xff]
    %v1148 = vld [vmem:[%s1141 + $0x30] sm:$0xf]
    %v1149 = vld [vmem:[%s1141 + $0x38] sm:$0xf]
    %vm1150 = vcmask 1044480
    %v1151 = vrot.slane %v97, 3
    %v1152 = vrot.slane %v98, 3
    %v1153 = vsel %vm1150, %v1151, %v1152
    %v1154 = vrot.slane %v99, 3
    %v1155 = vsel %vm1150, %v1152, %v1154
    %v1156 = vrot.slane %v100, 3
    %v1157 = vsel %vm1150, %v1154, %v1156
    %v1158 = vrot.slane %v101, 3
    %v1159 = vsel %vm1150, %v1156, %v1158
    %v1160 = vrot.slane %v102, 3
    %v1161 = vsel %vm1150, %v1158, %v1160
    %v1162 = vrot.slane %v103, 3
    %v1163 = vsel %vm1150, %v1160, %v1162
    %v1164 = vrot.slane %v104, 3
    %v1165 = vsel %vm1150, %v1162, %v1164
    %v1166 = vrot.slane %v105, 3
    %v1167 = vsel %vm1150, %v1164, %v1166
    %v1168 = vrot.slane %v106, 3
    %v1169 = vsel %vm1150, %v1166, %v1168
    %v1170 = vrot.slane %v107, 3
    %v1171 = vsel %vm1150, %v1168, %v1170
    %v1172 = vrot.slane %v108, 3
    %v1173 = vsel %vm1150, %v1170, %v1172
    %v1174 = vrot.slane %v109, 3
    %v1175 = vsel %vm1150, %v1172, %v1174
    %v1176 = vrot.slane %v110, 3
    %v1177 = vsel %vm1150, %v1174, %v1176
    %v1178 = vrot.slane %v111, 3
    %v1179 = vsel %vm1150, %v1176, %v1178
    %v1180 = vrot.slane %v112, 3
    %v1181 = vsel %vm1150, %v1178, %v1180
    %v1182 = vrot.slane %v113, 3
    %v1183 = vsel %vm1150, %v1180, %v1182
    %v1184 = vrot.slane %v114, 3
    %v1185 = vsel %vm1150, %v1182, %v1184
    %v1186 = vrot.slane %v115, 3
    %v1187 = vsel %vm1150, %v1184, %v1186
    %v1188 = vrot.slane %v116, 3
    %v1189 = vsel %vm1150, %v1186, %v1188
    %v1190 = vrot.slane %v117, 3
    %v1191 = vsel %vm1150, %v1188, %v1190
    %v1192 = vrot.slane %v118, 3
    %v1193 = vsel %vm1150, %v1190, %v1192
    %v1194 = vrot.slane %v119, 3
    %v1195 = vsel %vm1150, %v1192, %v1194
    %v1196 = vrot.slane %v120, 3
    %v1197 = vsel %vm1150, %v1194, %v1196
    %v1198 = vrot.slane %v121, 3
    %v1199 = vsel %vm1150, %v1196, %v1198
    %v1200 = vrot.slane %v122, 3
    %v1201 = vsel %vm1150, %v1198, %v1200
    %v1202 = vrot.slane %v123, 3
    %v1203 = vsel %vm1150, %v1200, %v1202
    %v1204 = vrot.slane %v124, 3
    %v1205 = vsel %vm1150, %v1202, %v1204
    %v1206 = vsel %vm226, %v1153, 0
    %v1208 = vsel %vm226, %v1155, 0
    %v1210 = vsel %vm226, %v1157, 0
    %v1212 = vsel %vm226, %v1159, 0
    %v1214 = vsel %vm226, %v1161, 0
    %v1216 = vsel %vm226, %v1163, 0
    %v1218 = vsel %vm226, %v1165, 0
    %v1220 = vsel %vm226, %v1167, 0
    %v1222 = vsel %vm226, %v1169, 0
    %v1224 = vsel %vm226, %v1171, 0
    %v1226 = vsel %vm226, %v1173, 0
    %v1228 = vsel %vm226, %v1175, 0
    %v1230 = vsel %vm226, %v1177, 0
    %v1232 = vsel %vm226, %v1179, 0
    %v1234 = vsel %vm226, %v1181, 0
    %v1236 = vsel %vm226, %v1183, 0
    %v1238 = vsel %vm226, %v1185, 0
    %v1240 = vsel %vm226, %v1187, 0
    %v1242 = vsel %vm226, %v1189, 0
    %v1244 = vsel %vm226, %v1191, 0
    %v1246 = vsel %vm226, %v1193, 0
    %v1248 = vsel %vm226, %v1195, 0
    %v1250 = vsel %vm226, %v1197, 0
    %v1252 = vsel %vm226, %v1199, 0
    %v1254 = vsel %vm226, %v1201, 0
    %v1256 = vsel %vm226, %v1203, 0
    %v1258 = vsel %vm226, %v1205, 0
    %v1260 = vsel %vm226, %v1204, 0
    %v1263 = vsel %vm283, %v1148, 0
    %v1266 = vsel %vm283, %v1149, 0
    %1268 = vmatpush.msra.mxu0 0.0
    %1269 = vmatpush.msra.mxu0 0.0
    %1270 = vmatpush.msra.mxu0 0.0
    %1271 = vmatpush.msra.mxu0 0.0
    %1272 = vmatpush.msra.mxu0 0.0
    %1273 = vmatpush.msra.mxu0 0.0
    %1274 = vmatpush.msra.mxu0 0.0
    %1275 = vmatpush.msra.mxu0 0.0
    %1276 = vmatpush.msra.mxu0 0.0
    %1277 = vmatpush.msra.mxu0 0.0
    %1278 = vmatpush.msra.mxu0 0.0
    %1279 = vmatpush.msra.mxu0 0.0
    %1280 = vmatpush.msra.mxu0 %v1263
    %1281 = vmatpush.msra.mxu0 %v1146
    %1282 = vmatpush.msra.mxu0 %v1144
    %1283 = vmatpush.msra.mxu0 %v1142
    %1284 = vmatmul.f32.gmra.mxu0 %v1206
    %v1285 = vpop.f32.mrf.mxu0
    %v1286 = vadd.f32 0.0, %v1285
    %1287 = vmatmul.f32.gmra.mxu0 %v1208
    %v1288 = vpop.f32.mrf.mxu0
    %v1289 = vadd.f32 0.0, %v1288
    %1290 = vmatmul.f32.gmra.mxu0 %v1210
    %v1291 = vpop.f32.mrf.mxu0
    %v1292 = vadd.f32 0.0, %v1291
    %1293 = vmatmul.f32.gmra.mxu0 %v1212
    %v1294 = vpop.f32.mrf.mxu0
    %v1295 = vadd.f32 0.0, %v1294
    %1296 = vmatmul.f32.gmra.mxu0 %v1214
    %v1297 = vpop.f32.mrf.mxu0
    %v1298 = vadd.f32 0.0, %v1297
    %1299 = vmatmul.f32.gmra.mxu0 %v1216
    %v1300 = vpop.f32.mrf.mxu0
    %v1301 = vadd.f32 0.0, %v1300
    %1302 = vmatmul.f32.gmra.mxu0 %v1218
    %v1303 = vpop.f32.mrf.mxu0
    %v1304 = vadd.f32 0.0, %v1303
    %1305 = vmatmul.f32.gmra.mxu0 %v1220
    %v1306 = vpop.f32.mrf.mxu0
    %v1307 = vadd.f32 0.0, %v1306
    %1308 = vmatmul.f32.gmra.mxu0 %v1222
    %v1309 = vpop.f32.mrf.mxu0
    %v1310 = vadd.f32 0.0, %v1309
    %1311 = vmatmul.f32.gmra.mxu0 %v1224
    %v1312 = vpop.f32.mrf.mxu0
    %v1313 = vadd.f32 0.0, %v1312
    %1314 = vmatmul.f32.gmra.mxu0 %v1226
    %v1315 = vpop.f32.mrf.mxu0
    %v1316 = vadd.f32 0.0, %v1315
    %1317 = vmatmul.f32.gmra.mxu0 %v1228
    %v1318 = vpop.f32.mrf.mxu0
    %v1319 = vadd.f32 0.0, %v1318
    %1320 = vmatmul.f32.gmra.mxu0 %v1230
    %v1321 = vpop.f32.mrf.mxu0
    %v1322 = vadd.f32 0.0, %v1321
    %1323 = vmatmul.f32.gmra.mxu0 %v1232
    %v1324 = vpop.f32.mrf.mxu0
    %v1325 = vadd.f32 0.0, %v1324
    %1326 = vmatmul.f32.gmra.mxu0 %v1234
    %v1327 = vpop.f32.mrf.mxu0
    %v1328 = vadd.f32 0.0, %v1327
    %1329 = vmatmul.f32.gmra.mxu0 %v1236
    %v1330 = vpop.f32.mrf.mxu0
    %v1331 = vadd.f32 0.0, %v1330
    %1332 = vmatmul.f32.gmra.mxu0 %v1238
    %v1333 = vpop.f32.mrf.mxu0
    %v1334 = vadd.f32 0.0, %v1333
    %1335 = vmatmul.f32.gmra.mxu0 %v1240
    %v1336 = vpop.f32.mrf.mxu0
    %v1337 = vadd.f32 0.0, %v1336
    %1338 = vmatmul.f32.gmra.mxu0 %v1242
    %v1339 = vpop.f32.mrf.mxu0
    %v1340 = vadd.f32 0.0, %v1339
    %1341 = vmatmul.f32.gmra.mxu0 %v1244
    %v1342 = vpop.f32.mrf.mxu0
    %v1343 = vadd.f32 0.0, %v1342
    %1344 = vmatmul.f32.gmra.mxu0 %v1246
    %v1345 = vpop.f32.mrf.mxu0
    %v1346 = vadd.f32 0.0, %v1345
    %1347 = vmatmul.f32.gmra.mxu0 %v1248
    %v1348 = vpop.f32.mrf.mxu0
    %v1349 = vadd.f32 0.0, %v1348
    %1350 = vmatmul.f32.gmra.mxu0 %v1250
    %v1351 = vpop.f32.mrf.mxu0
    %v1352 = vadd.f32 0.0, %v1351
    %1353 = vmatmul.f32.gmra.mxu0 %v1252
    %v1354 = vpop.f32.mrf.mxu0
    %v1355 = vadd.f32 0.0, %v1354
    %1356 = vmatmul.f32.gmra.mxu0 %v1254
    %v1357 = vpop.f32.mrf.mxu0
    %v1358 = vadd.f32 0.0, %v1357
    %1359 = vmatmul.f32.gmra.mxu0 %v1256
    %v1360 = vpop.f32.mrf.mxu0
    %v1361 = vadd.f32 0.0, %v1360
    %1362 = vmatmul.f32.gmra.mxu0 %v1258
    %v1363 = vpop.f32.mrf.mxu0
    %v1364 = vadd.f32 0.0, %v1363
    %1365 = vmatmul.f32.gmra.mxu0 %v1260
    %v1366 = vpop.f32.mrf.mxu0
    %v1367 = vadd.f32 0.0, %v1366
    %1368 = vdwg.mxu0
    %1369 = vmatpush.msra.mxu0 0.0
    %1370 = vmatpush.msra.mxu0 0.0
    %1371 = vmatpush.msra.mxu0 0.0
    %1372 = vmatpush.msra.mxu0 0.0
    %1373 = vmatpush.msra.mxu0 0.0
    %1374 = vmatpush.msra.mxu0 0.0
    %1375 = vmatpush.msra.mxu0 0.0
    %1376 = vmatpush.msra.mxu0 0.0
    %1377 = vmatpush.msra.mxu0 0.0
    %1378 = vmatpush.msra.mxu0 0.0
    %1379 = vmatpush.msra.mxu0 0.0
    %1380 = vmatpush.msra.mxu0 0.0
    %1381 = vmatpush.msra.mxu0 %v1266
    %1382 = vmatpush.msra.mxu0 %v1147
    %1383 = vmatpush.msra.mxu0 %v1145
    %1384 = vmatpush.msra.mxu0 %v1143
    %1385 = vmatmul.f32.gmra.mxu0 %v1206
    %v1386 = vpop.f32.mrf.mxu0
    %v1387 = vadd.f32 0.0, %v1386
    %1388 = vmatmul.f32.gmra.mxu0 %v1208
    %v1389 = vpop.f32.mrf.mxu0
    %v1390 = vadd.f32 0.0, %v1389
    %1391 = vmatmul.f32.gmra.mxu0 %v1210
    %v1392 = vpop.f32.mrf.mxu0
    %v1393 = vadd.f32 0.0, %v1392
    %1394 = vmatmul.f32.gmra.mxu0 %v1212
    %v1395 = vpop.f32.mrf.mxu0
    %v1396 = vadd.f32 0.0, %v1395
    %1397 = vmatmul.f32.gmra.mxu0 %v1214
    %v1398 = vpop.f32.mrf.mxu0
    %v1399 = vadd.f32 0.0, %v1398
    %1400 = vmatmul.f32.gmra.mxu0 %v1216
    %v1401 = vpop.f32.mrf.mxu0
    %v1402 = vadd.f32 0.0, %v1401
    %1403 = vmatmul.f32.gmra.mxu0 %v1218
    %v1404 = vpop.f32.mrf.mxu0
    %v1405 = vadd.f32 0.0, %v1404
    %1406 = vmatmul.f32.gmra.mxu0 %v1220
    %v1407 = vpop.f32.mrf.mxu0
    %v1408 = vadd.f32 0.0, %v1407
    %1409 = vmatmul.f32.gmra.mxu0 %v1222
    %v1410 = vpop.f32.mrf.mxu0
    %v1411 = vadd.f32 0.0, %v1410
    %1412 = vmatmul.f32.gmra.mxu0 %v1224
    %v1413 = vpop.f32.mrf.mxu0
    %v1414 = vadd.f32 0.0, %v1413
    %1415 = vmatmul.f32.gmra.mxu0 %v1226
    %v1416 = vpop.f32.mrf.mxu0
    %v1417 = vadd.f32 0.0, %v1416
    %1418 = vmatmul.f32.gmra.mxu0 %v1228
    %v1419 = vpop.f32.mrf.mxu0
    %v1420 = vadd.f32 0.0, %v1419
    %1421 = vmatmul.f32.gmra.mxu0 %v1230
    %v1422 = vpop.f32.mrf.mxu0
    %v1423 = vadd.f32 0.0, %v1422
    %1424 = vmatmul.f32.gmra.mxu0 %v1232
    %v1425 = vpop.f32.mrf.mxu0
    %v1426 = vadd.f32 0.0, %v1425
    %1427 = vmatmul.f32.gmra.mxu0 %v1234
    %v1428 = vpop.f32.mrf.mxu0
    %v1429 = vadd.f32 0.0, %v1428
    %1430 = vmatmul.f32.gmra.mxu0 %v1236
    %v1431 = vpop.f32.mrf.mxu0
    %v1432 = vadd.f32 0.0, %v1431
    %1433 = vmatmul.f32.gmra.mxu0 %v1238
    %v1434 = vpop.f32.mrf.mxu0
    %v1435 = vadd.f32 0.0, %v1434
    %1436 = vmatmul.f32.gmra.mxu0 %v1240
    %v1437 = vpop.f32.mrf.mxu0
    %v1438 = vadd.f32 0.0, %v1437
    %1439 = vmatmul.f32.gmra.mxu0 %v1242
    %v1440 = vpop.f32.mrf.mxu0
    %v1441 = vadd.f32 0.0, %v1440
    %1442 = vmatmul.f32.gmra.mxu0 %v1244
    %v1443 = vpop.f32.mrf.mxu0
    %v1444 = vadd.f32 0.0, %v1443
    %1445 = vmatmul.f32.gmra.mxu0 %v1246
    %v1446 = vpop.f32.mrf.mxu0
    %v1447 = vadd.f32 0.0, %v1446
    %1448 = vmatmul.f32.gmra.mxu0 %v1248
    %v1449 = vpop.f32.mrf.mxu0
    %v1450 = vadd.f32 0.0, %v1449
    %1451 = vmatmul.f32.gmra.mxu0 %v1250
    %v1452 = vpop.f32.mrf.mxu0
    %v1453 = vadd.f32 0.0, %v1452
    %1454 = vmatmul.f32.gmra.mxu0 %v1252
    %v1455 = vpop.f32.mrf.mxu0
    %v1456 = vadd.f32 0.0, %v1455
    %1457 = vmatmul.f32.gmra.mxu0 %v1254
    %v1458 = vpop.f32.mrf.mxu0
    %v1459 = vadd.f32 0.0, %v1458
    %1460 = vmatmul.f32.gmra.mxu0 %v1256
    %v1461 = vpop.f32.mrf.mxu0
    %v1462 = vadd.f32 0.0, %v1461
    %1463 = vmatmul.f32.gmra.mxu0 %v1258
    %v1464 = vpop.f32.mrf.mxu0
    %v1465 = vadd.f32 0.0, %v1464
    %1466 = vmatmul.f32.gmra.mxu0 %v1260
    %v1467 = vpop.f32.mrf.mxu0
    %v1468 = vadd.f32 0.0, %v1467
    %1469 = vdwg.mxu0
    %v1470 = vadd.f32 %v1085, %v1286
    %v1471 = vadd.f32 %v1086, %v1387
    %v1472 = vadd.f32 %v1087, %v1289
    %v1473 = vadd.f32 %v1088, %v1390
    %v1474 = vadd.f32 %v1089, %v1292
    %v1475 = vadd.f32 %v1090, %v1393
    %v1476 = vadd.f32 %v1091, %v1295
    %v1477 = vadd.f32 %v1092, %v1396
    %v1478 = vadd.f32 %v1093, %v1298
    %v1479 = vadd.f32 %v1094, %v1399
    %v1480 = vadd.f32 %v1095, %v1301
    %v1481 = vadd.f32 %v1096, %v1402
    %v1482 = vadd.f32 %v1097, %v1304
    %v1483 = vadd.f32 %v1098, %v1405
    %v1484 = vadd.f32 %v1099, %v1307
    %v1485 = vadd.f32 %v1100, %v1408
    %v1486 = vadd.f32 %v1101, %v1310
    %v1487 = vadd.f32 %v1102, %v1411
    %v1488 = vadd.f32 %v1103, %v1313
    %v1489 = vadd.f32 %v1104, %v1414
    %v1490 = vadd.f32 %v1105, %v1316
    %v1491 = vadd.f32 %v1106, %v1417
    %v1492 = vadd.f32 %v1107, %v1319
    %v1493 = vadd.f32 %v1108, %v1420
    %v1494 = vadd.f32 %v1109, %v1322
    %v1495 = vadd.f32 %v1110, %v1423
    %v1496 = vadd.f32 %v1111, %v1325
    %v1497 = vadd.f32 %v1112, %v1426
    %v1498 = vadd.f32 %v1113, %v1328
    %v1499 = vadd.f32 %v1114, %v1429
    %v1500 = vadd.f32 %v1115, %v1331
    %v1501 = vadd.f32 %v1116, %v1432
    %v1502 = vadd.f32 %v1117, %v1334
    %v1503 = vadd.f32 %v1118, %v1435
    %v1504 = vadd.f32 %v1119, %v1337
    %v1505 = vadd.f32 %v1120, %v1438
    %v1506 = vadd.f32 %v1121, %v1340
    %v1507 = vadd.f32 %v1122, %v1441
    %v1508 = vadd.f32 %v1123, %v1343
    %v1509 = vadd.f32 %v1124, %v1444
    %v1510 = vadd.f32 %v1125, %v1346
    %v1511 = vadd.f32 %v1126, %v1447
    %v1512 = vadd.f32 %v1127, %v1349
    %v1513 = vadd.f32 %v1128, %v1450
    %v1514 = vadd.f32 %v1129, %v1352
    %v1515 = vadd.f32 %v1130, %v1453
    %v1516 = vadd.f32 %v1131, %v1355
    %v1517 = vadd.f32 %v1132, %v1456
    %v1518 = vadd.f32 %v1133, %v1358
    %v1519 = vadd.f32 %v1134, %v1459
    %v1520 = vadd.f32 %v1135, %v1361
    %v1521 = vadd.f32 %v1136, %v1462
    %v1522 = vadd.f32 %v1137, %v1364
    %v1523 = vadd.f32 %v1138, %v1465
    %v1524 = vadd.f32 %v1139, %v1367
    %v1525 = vadd.f32 %v1140, %v1468
    %s1526 = scalar_lea.vmem %s1, 256
    %v1527 = vld [vmem:[%s1526] sm:$0xff]
    %v1528 = vld [vmem:[%s1526 + $0x8] sm:$0xff]
    %v1529 = vld [vmem:[%s1526 + $0x10] sm:$0xff]
    %v1530 = vld [vmem:[%s1526 + $0x18] sm:$0xff]
    %v1531 = vld [vmem:[%s1526 + $0x20] sm:$0xff]
    %v1532 = vld [vmem:[%s1526 + $0x28] sm:$0xff]
    %v1533 = vld [vmem:[%s1526 + $0x30] sm:$0xf]
    %v1534 = vld [vmem:[%s1526 + $0x38] sm:$0xf]
    %v1535 = vrot.slane %v97, 4
    %v1536 = vrot.slane %v98, 4
    %v1537 = vsel %vm283, %v1535, %v1536
    %v1538 = vrot.slane %v99, 4
    %v1539 = vsel %vm283, %v1536, %v1538
    %v1540 = vrot.slane %v100, 4
    %v1541 = vsel %vm283, %v1538, %v1540
    %v1542 = vrot.slane %v101, 4
    %v1543 = vsel %vm283, %v1540, %v1542
    %v1544 = vrot.slane %v102, 4
    %v1545 = vsel %vm283, %v1542, %v1544
    %v1546 = vrot.slane %v103, 4
    %v1547 = vsel %vm283, %v1544, %v1546
    %v1548 = vrot.slane %v104, 4
    %v1549 = vsel %vm283, %v1546, %v1548
    %v1550 = vrot.slane %v105, 4
    %v1551 = vsel %vm283, %v1548, %v1550
    %v1552 = vrot.slane %v106, 4
    %v1553 = vsel %vm283, %v1550, %v1552
    %v1554 = vrot.slane %v107, 4
    %v1555 = vsel %vm283, %v1552, %v1554
    %v1556 = vrot.slane %v108, 4
    %v1557 = vsel %vm283, %v1554, %v1556
    %v1558 = vrot.slane %v109, 4
    %v1559 = vsel %vm283, %v1556, %v1558
    %v1560 = vrot.slane %v110, 4
    %v1561 = vsel %vm283, %v1558, %v1560
    %v1562 = vrot.slane %v111, 4
    %v1563 = vsel %vm283, %v1560, %v1562
    %v1564 = vrot.slane %v112, 4
    %v1565 = vsel %vm283, %v1562, %v1564
    %v1566 = vrot.slane %v113, 4
    %v1567 = vsel %vm283, %v1564, %v1566
    %v1568 = vrot.slane %v114, 4
    %v1569 = vsel %vm283, %v1566, %v1568
    %v1570 = vrot.slane %v115, 4
    %v1571 = vsel %vm283, %v1568, %v1570
    %v1572 = vrot.slane %v116, 4
    %v1573 = vsel %vm283, %v1570, %v1572
    %v1574 = vrot.slane %v117, 4
    %v1575 = vsel %vm283, %v1572, %v1574
    %v1576 = vrot.slane %v118, 4
    %v1577 = vsel %vm283, %v1574, %v1576
    %v1578 = vrot.slane %v119, 4
    %v1579 = vsel %vm283, %v1576, %v1578
    %v1580 = vrot.slane %v120, 4
    %v1581 = vsel %vm283, %v1578, %v1580
    %v1582 = vrot.slane %v121, 4
    %v1583 = vsel %vm283, %v1580, %v1582
    %v1584 = vrot.slane %v122, 4
    %v1585 = vsel %vm283, %v1582, %v1584
    %v1586 = vrot.slane %v123, 4
    %v1587 = vsel %vm283, %v1584, %v1586
    %v1588 = vrot.slane %v124, 4
    %v1589 = vsel %vm283, %v1586, %v1588
    %v1590 = vsel %vm226, %v1537, 0
    %v1592 = vsel %vm226, %v1539, 0
    %v1594 = vsel %vm226, %v1541, 0
    %v1596 = vsel %vm226, %v1543, 0
    %v1598 = vsel %vm226, %v1545, 0
    %v1600 = vsel %vm226, %v1547, 0
    %v1602 = vsel %vm226, %v1549, 0
    %v1604 = vsel %vm226, %v1551, 0
    %v1606 = vsel %vm226, %v1553, 0
    %v1608 = vsel %vm226, %v1555, 0
    %v1610 = vsel %vm226, %v1557, 0
    %v1612 = vsel %vm226, %v1559, 0
    %v1614 = vsel %vm226, %v1561, 0
    %v1616 = vsel %vm226, %v1563, 0
    %v1618 = vsel %vm226, %v1565, 0
    %v1620 = vsel %vm226, %v1567, 0
    %v1622 = vsel %vm226, %v1569, 0
    %v1624 = vsel %vm226, %v1571, 0
    %v1626 = vsel %vm226, %v1573, 0
    %v1628 = vsel %vm226, %v1575, 0
    %v1630 = vsel %vm226, %v1577, 0
    %v1632 = vsel %vm226, %v1579, 0
    %v1634 = vsel %vm226, %v1581, 0
    %v1636 = vsel %vm226, %v1583, 0
    %v1638 = vsel %vm226, %v1585, 0
    %v1640 = vsel %vm226, %v1587, 0
    %v1642 = vsel %vm226, %v1589, 0
    %v1644 = vsel %vm226, %v1588, 0
    %v1647 = vsel %vm283, %v1533, 0
    %v1650 = vsel %vm283, %v1534, 0
    %1652 = vmatpush.msra.mxu0 0.0
    %1653 = vmatpush.msra.mxu0 0.0
    %1654 = vmatpush.msra.mxu0 0.0
    %1655 = vmatpush.msra.mxu0 0.0
    %1656 = vmatpush.msra.mxu0 0.0
    %1657 = vmatpush.msra.mxu0 0.0
    %1658 = vmatpush.msra.mxu0 0.0
    %1659 = vmatpush.msra.mxu0 0.0
    %1660 = vmatpush.msra.mxu0 0.0
    %1661 = vmatpush.msra.mxu0 0.0
    %1662 = vmatpush.msra.mxu0 0.0
    %1663 = vmatpush.msra.mxu0 0.0
    %1664 = vmatpush.msra.mxu0 %v1647
    %1665 = vmatpush.msra.mxu0 %v1531
    %1666 = vmatpush.msra.mxu0 %v1529
    %1667 = vmatpush.msra.mxu0 %v1527
    %1668 = vmatmul.f32.gmra.mxu0 %v1590
    %v1669 = vpop.f32.mrf.mxu0
    %v1670 = vadd.f32 0.0, %v1669
    %1671 = vmatmul.f32.gmra.mxu0 %v1592
    %v1672 = vpop.f32.mrf.mxu0
    %v1673 = vadd.f32 0.0, %v1672
    %1674 = vmatmul.f32.gmra.mxu0 %v1594
    %v1675 = vpop.f32.mrf.mxu0
    %v1676 = vadd.f32 0.0, %v1675
    %1677 = vmatmul.f32.gmra.mxu0 %v1596
    %v1678 = vpop.f32.mrf.mxu0
    %v1679 = vadd.f32 0.0, %v1678
    %1680 = vmatmul.f32.gmra.mxu0 %v1598
    %v1681 = vpop.f32.mrf.mxu0
    %v1682 = vadd.f32 0.0, %v1681
    %1683 = vmatmul.f32.gmra.mxu0 %v1600
    %v1684 = vpop.f32.mrf.mxu0
    %v1685 = vadd.f32 0.0, %v1684
    %1686 = vmatmul.f32.gmra.mxu0 %v1602
    %v1687 = vpop.f32.mrf.mxu0
    %v1688 = vadd.f32 0.0, %v1687
    %1689 = vmatmul.f32.gmra.mxu0 %v1604
    %v1690 = vpop.f32.mrf.mxu0
    %v1691 = vadd.f32 0.0, %v1690
    %1692 = vmatmul.f32.gmra.mxu0 %v1606
    %v1693 = vpop.f32.mrf.mxu0
    %v1694 = vadd.f32 0.0, %v1693
    %1695 = vmatmul.f32.gmra.mxu0 %v1608
    %v1696 = vpop.f32.mrf.mxu0
    %v1697 = vadd.f32 0.0, %v1696
    %1698 = vmatmul.f32.gmra.mxu0 %v1610
    %v1699 = vpop.f32.mrf.mxu0
    %v1700 = vadd.f32 0.0, %v1699
    %1701 = vmatmul.f32.gmra.mxu0 %v1612
    %v1702 = vpop.f32.mrf.mxu0
    %v1703 = vadd.f32 0.0, %v1702
    %1704 = vmatmul.f32.gmra.mxu0 %v1614
    %v1705 = vpop.f32.mrf.mxu0
    %v1706 = vadd.f32 0.0, %v1705
    %1707 = vmatmul.f32.gmra.mxu0 %v1616
    %v1708 = vpop.f32.mrf.mxu0
    %v1709 = vadd.f32 0.0, %v1708
    %1710 = vmatmul.f32.gmra.mxu0 %v1618
    %v1711 = vpop.f32.mrf.mxu0
    %v1712 = vadd.f32 0.0, %v1711
    %1713 = vmatmul.f32.gmra.mxu0 %v1620
    %v1714 = vpop.f32.mrf.mxu0
    %v1715 = vadd.f32 0.0, %v1714
    %1716 = vmatmul.f32.gmra.mxu0 %v1622
    %v1717 = vpop.f32.mrf.mxu0
    %v1718 = vadd.f32 0.0, %v1717
    %1719 = vmatmul.f32.gmra.mxu0 %v1624
    %v1720 = vpop.f32.mrf.mxu0
    %v1721 = vadd.f32 0.0, %v1720
    %1722 = vmatmul.f32.gmra.mxu0 %v1626
    %v1723 = vpop.f32.mrf.mxu0
    %v1724 = vadd.f32 0.0, %v1723
    %1725 = vmatmul.f32.gmra.mxu0 %v1628
    %v1726 = vpop.f32.mrf.mxu0
    %v1727 = vadd.f32 0.0, %v1726
    %1728 = vmatmul.f32.gmra.mxu0 %v1630
    %v1729 = vpop.f32.mrf.mxu0
    %v1730 = vadd.f32 0.0, %v1729
    %1731 = vmatmul.f32.gmra.mxu0 %v1632
    %v1732 = vpop.f32.mrf.mxu0
    %v1733 = vadd.f32 0.0, %v1732
    %1734 = vmatmul.f32.gmra.mxu0 %v1634
    %v1735 = vpop.f32.mrf.mxu0
    %v1736 = vadd.f32 0.0, %v1735
    %1737 = vmatmul.f32.gmra.mxu0 %v1636
    %v1738 = vpop.f32.mrf.mxu0
    %v1739 = vadd.f32 0.0, %v1738
    %1740 = vmatmul.f32.gmra.mxu0 %v1638
    %v1741 = vpop.f32.mrf.mxu0
    %v1742 = vadd.f32 0.0, %v1741
    %1743 = vmatmul.f32.gmra.mxu0 %v1640
    %v1744 = vpop.f32.mrf.mxu0
    %v1745 = vadd.f32 0.0, %v1744
    %1746 = vmatmul.f32.gmra.mxu0 %v1642
    %v1747 = vpop.f32.mrf.mxu0
    %v1748 = vadd.f32 0.0, %v1747
    %1749 = vmatmul.f32.gmra.mxu0 %v1644
    %v1750 = vpop.f32.mrf.mxu0
    %v1751 = vadd.f32 0.0, %v1750
    %1752 = vdwg.mxu0
    %1753 = vmatpush.msra.mxu0 0.0
    %1754 = vmatpush.msra.mxu0 0.0
    %1755 = vmatpush.msra.mxu0 0.0
    %1756 = vmatpush.msra.mxu0 0.0
    %1757 = vmatpush.msra.mxu0 0.0
    %1758 = vmatpush.msra.mxu0 0.0
    %1759 = vmatpush.msra.mxu0 0.0
    %1760 = vmatpush.msra.mxu0 0.0
    %1761 = vmatpush.msra.mxu0 0.0
    %1762 = vmatpush.msra.mxu0 0.0
    %1763 = vmatpush.msra.mxu0 0.0
    %1764 = vmatpush.msra.mxu0 0.0
    %1765 = vmatpush.msra.mxu0 %v1650
    %1766 = vmatpush.msra.mxu0 %v1532
    %1767 = vmatpush.msra.mxu0 %v1530
    %1768 = vmatpush.msra.mxu0 %v1528
    %1769 = vmatmul.f32.gmra.mxu0 %v1590
    %v1770 = vpop.f32.mrf.mxu0
    %v1771 = vadd.f32 0.0, %v1770
    %1772 = vmatmul.f32.gmra.mxu0 %v1592
    %v1773 = vpop.f32.mrf.mxu0
    %v1774 = vadd.f32 0.0, %v1773
    %1775 = vmatmul.f32.gmra.mxu0 %v1594
    %v1776 = vpop.f32.mrf.mxu0
    %v1777 = vadd.f32 0.0, %v1776
    %1778 = vmatmul.f32.gmra.mxu0 %v1596
    %v1779 = vpop.f32.mrf.mxu0
    %v1780 = vadd.f32 0.0, %v1779
    %1781 = vmatmul.f32.gmra.mxu0 %v1598
    %v1782 = vpop.f32.mrf.mxu0
    %v1783 = vadd.f32 0.0, %v1782
    %1784 = vmatmul.f32.gmra.mxu0 %v1600
    %v1785 = vpop.f32.mrf.mxu0
    %v1786 = vadd.f32 0.0, %v1785
    %1787 = vmatmul.f32.gmra.mxu0 %v1602
    %v1788 = vpop.f32.mrf.mxu0
    %v1789 = vadd.f32 0.0, %v1788
    %1790 = vmatmul.f32.gmra.mxu0 %v1604
    %v1791 = vpop.f32.mrf.mxu0
    %v1792 = vadd.f32 0.0, %v1791
    %1793 = vmatmul.f32.gmra.mxu0 %v1606
    %v1794 = vpop.f32.mrf.mxu0
    %v1795 = vadd.f32 0.0, %v1794
    %1796 = vmatmul.f32.gmra.mxu0 %v1608
    %v1797 = vpop.f32.mrf.mxu0
    %v1798 = vadd.f32 0.0, %v1797
    %1799 = vmatmul.f32.gmra.mxu0 %v1610
    %v1800 = vpop.f32.mrf.mxu0
    %v1801 = vadd.f32 0.0, %v1800
    %1802 = vmatmul.f32.gmra.mxu0 %v1612
    %v1803 = vpop.f32.mrf.mxu0
    %v1804 = vadd.f32 0.0, %v1803
    %1805 = vmatmul.f32.gmra.mxu0 %v1614
    %v1806 = vpop.f32.mrf.mxu0
    %v1807 = vadd.f32 0.0, %v1806
    %1808 = vmatmul.f32.gmra.mxu0 %v1616
    %v1809 = vpop.f32.mrf.mxu0
    %v1810 = vadd.f32 0.0, %v1809
    %1811 = vmatmul.f32.gmra.mxu0 %v1618
    %v1812 = vpop.f32.mrf.mxu0
    %v1813 = vadd.f32 0.0, %v1812
    %1814 = vmatmul.f32.gmra.mxu0 %v1620
    %v1815 = vpop.f32.mrf.mxu0
    %v1816 = vadd.f32 0.0, %v1815
    %1817 = vmatmul.f32.gmra.mxu0 %v1622
    %v1818 = vpop.f32.mrf.mxu0
    %v1819 = vadd.f32 0.0, %v1818
    %1820 = vmatmul.f32.gmra.mxu0 %v1624
    %v1821 = vpop.f32.mrf.mxu0
    %v1822 = vadd.f32 0.0, %v1821
    %1823 = vmatmul.f32.gmra.mxu0 %v1626
    %v1824 = vpop.f32.mrf.mxu0
    %v1825 = vadd.f32 0.0, %v1824
    %1826 = vmatmul.f32.gmra.mxu0 %v1628
    %v1827 = vpop.f32.mrf.mxu0
    %v1828 = vadd.f32 0.0, %v1827
    %1829 = vmatmul.f32.gmra.mxu0 %v1630
    %v1830 = vpop.f32.mrf.mxu0
    %v1831 = vadd.f32 0.0, %v1830
    %1832 = vmatmul.f32.gmra.mxu0 %v1632
    %v1833 = vpop.f32.mrf.mxu0
    %v1834 = vadd.f32 0.0, %v1833
    %1835 = vmatmul.f32.gmra.mxu0 %v1634
    %v1836 = vpop.f32.mrf.mxu0
    %v1837 = vadd.f32 0.0, %v1836
    %1838 = vmatmul.f32.gmra.mxu0 %v1636
    %v1839 = vpop.f32.mrf.mxu0
    %v1840 = vadd.f32 0.0, %v1839
    %1841 = vmatmul.f32.gmra.mxu0 %v1638
    %v1842 = vpop.f32.mrf.mxu0
    %v1843 = vadd.f32 0.0, %v1842
    %1844 = vmatmul.f32.gmra.mxu0 %v1640
    %v1845 = vpop.f32.mrf.mxu0
    %v1846 = vadd.f32 0.0, %v1845
    %1847 = vmatmul.f32.gmra.mxu0 %v1642
    %v1848 = vpop.f32.mrf.mxu0
    %v1849 = vadd.f32 0.0, %v1848
    %1850 = vmatmul.f32.gmra.mxu0 %v1644
    %v1851 = vpop.f32.mrf.mxu0
    %v1852 = vadd.f32 0.0, %v1851
    %1853 = vdwg.mxu0
    %v1854 = vadd.f32 %v1470, %v1670
    %v1855 = vadd.f32 %v1471, %v1771
    %v1856 = vadd.f32 %v1472, %v1673
    %v1857 = vadd.f32 %v1473, %v1774
    %v1858 = vadd.f32 %v1474, %v1676
    %v1859 = vadd.f32 %v1475, %v1777
    %v1860 = vadd.f32 %v1476, %v1679
    %v1861 = vadd.f32 %v1477, %v1780
    %v1862 = vadd.f32 %v1478, %v1682
    %v1863 = vadd.f32 %v1479, %v1783
    %v1864 = vadd.f32 %v1480, %v1685
    %v1865 = vadd.f32 %v1481, %v1786
    %v1866 = vadd.f32 %v1482, %v1688
    %v1867 = vadd.f32 %v1483, %v1789
    %v1868 = vadd.f32 %v1484, %v1691
    %v1869 = vadd.f32 %v1485, %v1792
    %v1870 = vadd.f32 %v1486, %v1694
    %v1871 = vadd.f32 %v1487, %v1795
    %v1872 = vadd.f32 %v1488, %v1697
    %v1873 = vadd.f32 %v1489, %v1798
    %v1874 = vadd.f32 %v1490, %v1700
    %v1875 = vadd.f32 %v1491, %v1801
    %v1876 = vadd.f32 %v1492, %v1703
    %v1877 = vadd.f32 %v1493, %v1804
    %v1878 = vadd.f32 %v1494, %v1706
    %v1879 = vadd.f32 %v1495, %v1807
    %v1880 = vadd.f32 %v1496, %v1709
    %v1881 = vadd.f32 %v1497, %v1810
    %v1882 = vadd.f32 %v1498, %v1712
    %v1883 = vadd.f32 %v1499, %v1813
    %v1884 = vadd.f32 %v1500, %v1715
    %v1885 = vadd.f32 %v1501, %v1816
    %v1886 = vadd.f32 %v1502, %v1718
    %v1887 = vadd.f32 %v1503, %v1819
    %v1888 = vadd.f32 %v1504, %v1721
    %v1889 = vadd.f32 %v1505, %v1822
    %v1890 = vadd.f32 %v1506, %v1724
    %v1891 = vadd.f32 %v1507, %v1825
    %v1892 = vadd.f32 %v1508, %v1727
    %v1893 = vadd.f32 %v1509, %v1828
    %v1894 = vadd.f32 %v1510, %v1730
    %v1895 = vadd.f32 %v1511, %v1831
    %v1896 = vadd.f32 %v1512, %v1733
    %v1897 = vadd.f32 %v1513, %v1834
    %v1898 = vadd.f32 %v1514, %v1736
    %v1899 = vadd.f32 %v1515, %v1837
    %v1900 = vadd.f32 %v1516, %v1739
    %v1901 = vadd.f32 %v1517, %v1840
    %v1902 = vadd.f32 %v1518, %v1742
    %v1903 = vadd.f32 %v1519, %v1843
    %v1904 = vadd.f32 %v1520, %v1745
    %v1905 = vadd.f32 %v1521, %v1846
    %v1906 = vadd.f32 %v1522, %v1748
    %v1907 = vadd.f32 %v1523, %v1849
    %v1908 = vadd.f32 %v1524, %v1751
    %v1909 = vadd.f32 %v1525, %v1852
    %v1910 = vld [vmem:[%s2] sm:$0x3]
    %v1912 = vperm.slane %v1910, 0
    %v1913 = vperm.slane %v1910, 1
    %v1916 = vadd.f32 %v1854, %v1912
    %v1917 = vadd.f32 %v1855, %v1913
    %v1918 = vadd.f32 %v1856, %v1912
    %v1919 = vadd.f32 %v1857, %v1913
    %v1920 = vadd.f32 %v1858, %v1912
    %v1921 = vadd.f32 %v1859, %v1913
    %v1922 = vadd.f32 %v1860, %v1912
    %v1923 = vadd.f32 %v1861, %v1913
    %v1924 = vadd.f32 %v1862, %v1912
    %v1925 = vadd.f32 %v1863, %v1913
    %v1926 = vadd.f32 %v1864, %v1912
    %v1927 = vadd.f32 %v1865, %v1913
    %v1928 = vadd.f32 %v1866, %v1912
    %v1929 = vadd.f32 %v1867, %v1913
    %v1930 = vadd.f32 %v1868, %v1912
    %v1931 = vadd.f32 %v1869, %v1913
    %v1932 = vadd.f32 %v1870, %v1912
    %v1933 = vadd.f32 %v1871, %v1913
    %v1934 = vadd.f32 %v1872, %v1912
    %v1935 = vadd.f32 %v1873, %v1913
    %v1936 = vadd.f32 %v1874, %v1912
    %v1937 = vadd.f32 %v1875, %v1913
    %v1938 = vadd.f32 %v1876, %v1912
    %v1939 = vadd.f32 %v1877, %v1913
    %v1940 = vadd.f32 %v1878, %v1912
    %v1941 = vadd.f32 %v1879, %v1913
    %v1942 = vadd.f32 %v1880, %v1912
    %v1943 = vadd.f32 %v1881, %v1913
    %v1944 = vadd.f32 %v1882, %v1912
    %v1945 = vadd.f32 %v1883, %v1913
    %v1946 = vadd.f32 %v1884, %v1912
    %v1947 = vadd.f32 %v1885, %v1913
    %v1948 = vadd.f32 %v1886, %v1912
    %v1949 = vadd.f32 %v1887, %v1913
    %v1950 = vadd.f32 %v1888, %v1912
    %v1951 = vadd.f32 %v1889, %v1913
    %v1952 = vadd.f32 %v1890, %v1912
    %v1953 = vadd.f32 %v1891, %v1913
    %v1954 = vadd.f32 %v1892, %v1912
    %v1955 = vadd.f32 %v1893, %v1913
    %v1956 = vadd.f32 %v1894, %v1912
    %v1957 = vadd.f32 %v1895, %v1913
    %v1958 = vadd.f32 %v1896, %v1912
    %v1959 = vadd.f32 %v1897, %v1913
    %v1960 = vadd.f32 %v1898, %v1912
    %v1961 = vadd.f32 %v1899, %v1913
    %v1962 = vadd.f32 %v1900, %v1912
    %v1963 = vadd.f32 %v1901, %v1913
    %v1964 = vadd.f32 %v1902, %v1912
    %v1965 = vadd.f32 %v1903, %v1913
    %v1966 = vadd.f32 %v1904, %v1912
    %v1967 = vadd.f32 %v1905, %v1913
    %v1968 = vadd.f32 %v1906, %v1912
    %v1969 = vadd.f32 %v1907, %v1913
    %v1970 = vadd.f32 %v1908, %v1912
    %v1971 = vadd.f32 %v1909, %v1913
    %v1972 = vmax.f32 %v1916, 0.0
    %v1973 = vmax.f32 %v1917, 0.0
    %v1974 = vmax.f32 %v1918, 0.0
    %v1975 = vmax.f32 %v1919, 0.0
    %v1976 = vmax.f32 %v1920, 0.0
    %v1977 = vmax.f32 %v1921, 0.0
    %v1978 = vmax.f32 %v1922, 0.0
    %v1979 = vmax.f32 %v1923, 0.0
    %v1980 = vmax.f32 %v1924, 0.0
    %v1981 = vmax.f32 %v1925, 0.0
    %v1982 = vmax.f32 %v1926, 0.0
    %v1983 = vmax.f32 %v1927, 0.0
    %v1984 = vmax.f32 %v1928, 0.0
    %v1985 = vmax.f32 %v1929, 0.0
    %v1986 = vmax.f32 %v1930, 0.0
    %v1987 = vmax.f32 %v1931, 0.0
    %v1988 = vmax.f32 %v1932, 0.0
    %v1989 = vmax.f32 %v1933, 0.0
    %v1990 = vmax.f32 %v1934, 0.0
    %v1991 = vmax.f32 %v1935, 0.0
    %v1992 = vmax.f32 %v1936, 0.0
    %v1993 = vmax.f32 %v1937, 0.0
    %v1994 = vmax.f32 %v1938, 0.0
    %v1995 = vmax.f32 %v1939, 0.0
    %v1996 = vmax.f32 %v1940, 0.0
    %v1997 = vmax.f32 %v1941, 0.0
    %v1998 = vmax.f32 %v1942, 0.0
    %v1999 = vmax.f32 %v1943, 0.0
    %v2000 = vmax.f32 %v1944, 0.0
    %v2001 = vmax.f32 %v1945, 0.0
    %v2002 = vmax.f32 %v1946, 0.0
    %v2003 = vmax.f32 %v1947, 0.0
    %v2004 = vmax.f32 %v1948, 0.0
    %v2005 = vmax.f32 %v1949, 0.0
    %v2006 = vmax.f32 %v1950, 0.0
    %v2007 = vmax.f32 %v1951, 0.0
    %v2008 = vmax.f32 %v1952, 0.0
    %v2009 = vmax.f32 %v1953, 0.0
    %v2010 = vmax.f32 %v1954, 0.0
    %v2011 = vmax.f32 %v1955, 0.0
    %v2012 = vmax.f32 %v1956, 0.0
    %v2013 = vmax.f32 %v1957, 0.0
    %v2014 = vmax.f32 %v1958, 0.0
    %v2015 = vmax.f32 %v1959, 0.0
    %v2016 = vmax.f32 %v1960, 0.0
    %v2017 = vmax.f32 %v1961, 0.0
    %v2018 = vmax.f32 %v1962, 0.0
    %v2019 = vmax.f32 %v1963, 0.0
    %v2020 = vmax.f32 %v1964, 0.0
    %v2021 = vmax.f32 %v1965, 0.0
    %v2022 = vmax.f32 %v1966, 0.0
    %v2023 = vmax.f32 %v1967, 0.0
    %v2024 = vmax.f32 %v1968, 0.0
    %v2025 = vmax.f32 %v1969, 0.0
    %v2026 = vmax.f32 %v1970, 0.0
    %v2027 = vmax.f32 %v1971, 0.0
    %v2028 = vld [vmem:[%s3] sm:$0xff]
    %v2029 = vld [vmem:[%s3 + $0x8] sm:$0xff]
    %v2030 = vld [vmem:[%s3 + $0x10] sm:$0xff]
    %v2031 = vld [vmem:[%s3 + $0x18] sm:$0xff]
    %v2032 = vld [vmem:[%s3 + $0x20] sm:$0xff]
    %v2033 = vld [vmem:[%s3 + $0x28] sm:$0xff]
    %v2034 = vld [vmem:[%s3 + $0x30] sm:$0xff]
    %v2035 = vld [vmem:[%s3 + $0x38] sm:$0xff]
    %v2036 = vld [vmem:[%s3 + $0x40] sm:$0xff]
    %v2037 = vld [vmem:[%s3 + $0x48] sm:$0xff]
    %v2038 = vld [vmem:[%s3 + $0x50] sm:$0xff]
    %v2039 = vld [vmem:[%s3 + $0x58] sm:$0xff]
    %v2040 = vld [vmem:[%s3 + $0x60] sm:$0xff]
    %v2041 = vld [vmem:[%s3 + $0x68] sm:$0xff]
    %v2042 = vld [vmem:[%s3 + $0x70] sm:$0xff]
    %v2043 = vld [vmem:[%s3 + $0x78] sm:$0xff]
    %v2044 = vld [vmem:[%s3 + $0x80] sm:$0xff]
    %v2045 = vld [vmem:[%s3 + $0x88] sm:$0xff]
    %v2046 = vld [vmem:[%s3 + $0x90] sm:$0xff]
    %v2047 = vld [vmem:[%s3 + $0x98] sm:$0xff]
    %v2048 = vld [vmem:[%s3 + $0xa0] sm:$0xff]
    %v2049 = vld [vmem:[%s3 + $0xa8] sm:$0xff]
    %v2050 = vld [vmem:[%s3 + $0xb0] sm:$0xff]
    %v2051 = vld [vmem:[%s3 + $0xb8] sm:$0xff]
    %vm2052 = vcmask 752640
    %v2054 = vsel %vm2052, %v2029, 0
    %v2057 = vsel %vm2052, %v2031, 0
    %v2060 = vsel %vm2052, %v2033, 0
    %v2063 = vsel %vm2052, %v2035, 0
    %v2066 = vsel %vm2052, %v2037, 0
    %v2069 = vsel %vm2052, %v2039, 0
    %v2072 = vsel %vm2052, %v2041, 0
    %v2075 = vsel %vm2052, %v2043, 0
    %v2078 = vsel %vm2052, %v2045, 0
    %v2081 = vsel %vm2052, %v2047, 0
    %v2084 = vsel %vm2052, %v2049, 0
    %v2087 = vsel %vm2052, %v2051, 0
    %v2090 = vsel %vm283, %v2026, 0
    %v2093 = vsel %vm283, %v2027, 0
    %2095 = vmatpush.msra.mxu0 %v2002
    %2096 = vmatpush.msra.mxu0 %v2000
    %2097 = vmatpush.msra.mxu0 %v1998
    %2098 = vmatpush.msra.mxu0 %v1996
    %2099 = vmatpush.msra.mxu0 %v1994
    %2100 = vmatpush.msra.mxu0 %v1992
    %2101 = vmatpush.msra.mxu0 %v1990
    %2102 = vmatpush.msra.mxu0 %v1988
    %2103 = vmatpush.msra.mxu0 %v1986
    %2104 = vmatpush.msra.mxu0 %v1984
    %2105 = vmatpush.msra.mxu0 %v1982
    %2106 = vmatpush.msra.mxu0 %v1980
    %2107 = vmatpush.msra.mxu0 %v1978
    %2108 = vmatpush.msra.mxu0 %v1976
    %2109 = vmatpush.msra.mxu0 %v1974
    %2110 = vmatpush.msra.mxu0 %v1972
    %2111 = vmatmul.f32.gmra.mxu0 %v2028
    %v2112 = vpop.f32.mrf.mxu0
    %v2113 = vadd.f32 0.0, %v2112
    %2114 = vmatmul.f32.gmra.mxu0 %v2030
    %v2115 = vpop.f32.mrf.mxu0
    %v2116 = vadd.f32 0.0, %v2115
    %2117 = vmatmul.f32.gmra.mxu0 %v2032
    %v2118 = vpop.f32.mrf.mxu0
    %v2119 = vadd.f32 0.0, %v2118
    %2120 = vmatmul.f32.gmra.mxu0 %v2034
    %v2121 = vpop.f32.mrf.mxu0
    %v2122 = vadd.f32 0.0, %v2121
    %2123 = vmatmul.f32.gmra.mxu0 %v2036
    %v2124 = vpop.f32.mrf.mxu0
    %v2125 = vadd.f32 0.0, %v2124
    %2126 = vmatmul.f32.gmra.mxu0 %v2038
    %v2127 = vpop.f32.mrf.mxu0
    %v2128 = vadd.f32 0.0, %v2127
    %2129 = vmatmul.f32.gmra.mxu0 %v2040
    %v2130 = vpop.f32.mrf.mxu0
    %v2131 = vadd.f32 0.0, %v2130
    %2132 = vmatmul.f32.gmra.mxu0 %v2042
    %v2133 = vpop.f32.mrf.mxu0
    %v2134 = vadd.f32 0.0, %v2133
    %2135 = vmatmul.f32.gmra.mxu0 %v2044
    %v2136 = vpop.f32.mrf.mxu0
    %v2137 = vadd.f32 0.0, %v2136
    %2138 = vmatmul.f32.gmra.mxu0 %v2046
    %v2139 = vpop.f32.mrf.mxu0
    %v2140 = vadd.f32 0.0, %v2139
    %2141 = vmatmul.f32.gmra.mxu0 %v2048
    %v2142 = vpop.f32.mrf.mxu0
    %v2143 = vadd.f32 0.0, %v2142
    %2144 = vmatmul.f32.gmra.mxu0 %v2050
    %v2145 = vpop.f32.mrf.mxu0
    %v2146 = vadd.f32 0.0, %v2145
    %2147 = vdwg.mxu0
    %2148 = vmatpush.msra.mxu0 0.0
    %2149 = vmatpush.msra.mxu0 0.0
    %2150 = vmatpush.msra.mxu0 0.0
    %2151 = vmatpush.msra.mxu0 0.0
    %2152 = vmatpush.msra.mxu0 %v2090
    %2153 = vmatpush.msra.mxu0 %v2024
    %2154 = vmatpush.msra.mxu0 %v2022
    %2155 = vmatpush.msra.mxu0 %v2020
    %2156 = vmatpush.msra.mxu0 %v2018
    %2157 = vmatpush.msra.mxu0 %v2016
    %2158 = vmatpush.msra.mxu0 %v2014
    %2159 = vmatpush.msra.mxu0 %v2012
    %2160 = vmatpush.msra.mxu0 %v2010
    %2161 = vmatpush.msra.mxu0 %v2008
    %2162 = vmatpush.msra.mxu0 %v2006
    %2163 = vmatpush.msra.mxu0 %v2004
    %2164 = vmatmul.f32.gmra.mxu0 %v2054
    %v2165 = vpop.f32.mrf.mxu0
    %v2166 = vadd.f32 %v2113, %v2165
    %2167 = vmatmul.f32.gmra.mxu0 %v2057
    %v2168 = vpop.f32.mrf.mxu0
    %v2169 = vadd.f32 %v2116, %v2168
    %2170 = vmatmul.f32.gmra.mxu0 %v2060
    %v2171 = vpop.f32.mrf.mxu0
    %v2172 = vadd.f32 %v2119, %v2171
    %2173 = vmatmul.f32.gmra.mxu0 %v2063
    %v2174 = vpop.f32.mrf.mxu0
    %v2175 = vadd.f32 %v2122, %v2174
    %2176 = vmatmul.f32.gmra.mxu0 %v2066
    %v2177 = vpop.f32.mrf.mxu0
    %v2178 = vadd.f32 %v2125, %v2177
    %2179 = vmatmul.f32.gmra.mxu0 %v2069
    %v2180 = vpop.f32.mrf.mxu0
    %v2181 = vadd.f32 %v2128, %v2180
    %2182 = vmatmul.f32.gmra.mxu0 %v2072
    %v2183 = vpop.f32.mrf.mxu0
    %v2184 = vadd.f32 %v2131, %v2183
    %2185 = vmatmul.f32.gmra.mxu0 %v2075
    %v2186 = vpop.f32.mrf.mxu0
    %v2187 = vadd.f32 %v2134, %v2186
    %2188 = vmatmul.f32.gmra.mxu0 %v2078
    %v2189 = vpop.f32.mrf.mxu0
    %v2190 = vadd.f32 %v2137, %v2189
    %2191 = vmatmul.f32.gmra.mxu0 %v2081
    %v2192 = vpop.f32.mrf.mxu0
    %v2193 = vadd.f32 %v2140, %v2192
    %2194 = vmatmul.f32.gmra.mxu0 %v2084
    %v2195 = vpop.f32.mrf.mxu0
    %v2196 = vadd.f32 %v2143, %v2195
    %2197 = vmatmul.f32.gmra.mxu0 %v2087
    %v2198 = vpop.f32.mrf.mxu0
    %v2199 = vadd.f32 %v2146, %v2198
    %2200 = vdwg.mxu0
    %2201 = vmatpush.msra.mxu0 %v2003
    %2202 = vmatpush.msra.mxu0 %v2001
    %2203 = vmatpush.msra.mxu0 %v1999
    %2204 = vmatpush.msra.mxu0 %v1997
    %2205 = vmatpush.msra.mxu0 %v1995
    %2206 = vmatpush.msra.mxu0 %v1993
    %2207 = vmatpush.msra.mxu0 %v1991
    %2208 = vmatpush.msra.mxu0 %v1989
    %2209 = vmatpush.msra.mxu0 %v1987
    %2210 = vmatpush.msra.mxu0 %v1985
    %2211 = vmatpush.msra.mxu0 %v1983
    %2212 = vmatpush.msra.mxu0 %v1981
    %2213 = vmatpush.msra.mxu0 %v1979
    %2214 = vmatpush.msra.mxu0 %v1977
    %2215 = vmatpush.msra.mxu0 %v1975
    %2216 = vmatpush.msra.mxu0 %v1973
    %2217 = vmatmul.f32.gmra.mxu0 %v2028
    %v2218 = vpop.f32.mrf.mxu0
    %v2219 = vadd.f32 0.0, %v2218
    %2220 = vmatmul.f32.gmra.mxu0 %v2030
    %v2221 = vpop.f32.mrf.mxu0
    %v2222 = vadd.f32 0.0, %v2221
    %2223 = vmatmul.f32.gmra.mxu0 %v2032
    %v2224 = vpop.f32.mrf.mxu0
    %v2225 = vadd.f32 0.0, %v2224
    %2226 = vmatmul.f32.gmra.mxu0 %v2034
    %v2227 = vpop.f32.mrf.mxu0
    %v2228 = vadd.f32 0.0, %v2227
    %2229 = vmatmul.f32.gmra.mxu0 %v2036
    %v2230 = vpop.f32.mrf.mxu0
    %v2231 = vadd.f32 0.0, %v2230
    %2232 = vmatmul.f32.gmra.mxu0 %v2038
    %v2233 = vpop.f32.mrf.mxu0
    %v2234 = vadd.f32 0.0, %v2233
    %2235 = vmatmul.f32.gmra.mxu0 %v2040
    %v2236 = vpop.f32.mrf.mxu0
    %v2237 = vadd.f32 0.0, %v2236
    %2238 = vmatmul.f32.gmra.mxu0 %v2042
    %v2239 = vpop.f32.mrf.mxu0
    %v2240 = vadd.f32 0.0, %v2239
    %2241 = vmatmul.f32.gmra.mxu0 %v2044
    %v2242 = vpop.f32.mrf.mxu0
    %v2243 = vadd.f32 0.0, %v2242
    %2244 = vmatmul.f32.gmra.mxu0 %v2046
    %v2245 = vpop.f32.mrf.mxu0
    %v2246 = vadd.f32 0.0, %v2245
    %2247 = vmatmul.f32.gmra.mxu0 %v2048
    %v2248 = vpop.f32.mrf.mxu0
    %v2249 = vadd.f32 0.0, %v2248
    %2250 = vmatmul.f32.gmra.mxu0 %v2050
    %v2251 = vpop.f32.mrf.mxu0
    %v2252 = vadd.f32 0.0, %v2251
    %2253 = vdwg.mxu0
    %2254 = vmatpush.msra.mxu0 0.0
    %2255 = vmatpush.msra.mxu0 0.0
    %2256 = vmatpush.msra.mxu0 0.0
    %2257 = vmatpush.msra.mxu0 0.0
    %2258 = vmatpush.msra.mxu0 %v2093
    %2259 = vmatpush.msra.mxu0 %v2025
    %2260 = vmatpush.msra.mxu0 %v2023
    %2261 = vmatpush.msra.mxu0 %v2021
    %2262 = vmatpush.msra.mxu0 %v2019
    %2263 = vmatpush.msra.mxu0 %v2017
    %2264 = vmatpush.msra.mxu0 %v2015
    %2265 = vmatpush.msra.mxu0 %v2013
    %2266 = vmatpush.msra.mxu0 %v2011
    %2267 = vmatpush.msra.mxu0 %v2009
    %2268 = vmatpush.msra.mxu0 %v2007
    %2269 = vmatpush.msra.mxu0 %v2005
    %2270 = vmatmul.f32.gmra.mxu0 %v2054
    %v2271 = vpop.f32.mrf.mxu0
    %v2272 = vadd.f32 %v2219, %v2271
    %2273 = vmatmul.f32.gmra.mxu0 %v2057
    %v2274 = vpop.f32.mrf.mxu0
    %v2275 = vadd.f32 %v2222, %v2274
    %2276 = vmatmul.f32.gmra.mxu0 %v2060
    %v2277 = vpop.f32.mrf.mxu0
    %v2278 = vadd.f32 %v2225, %v2277
    %2279 = vmatmul.f32.gmra.mxu0 %v2063
    %v2280 = vpop.f32.mrf.mxu0
    %v2281 = vadd.f32 %v2228, %v2280
    %2282 = vmatmul.f32.gmra.mxu0 %v2066
    %v2283 = vpop.f32.mrf.mxu0
    %v2284 = vadd.f32 %v2231, %v2283
    %2285 = vmatmul.f32.gmra.mxu0 %v2069
    %v2286 = vpop.f32.mrf.mxu0
    %v2287 = vadd.f32 %v2234, %v2286
    %2288 = vmatmul.f32.gmra.mxu0 %v2072
    %v2289 = vpop.f32.mrf.mxu0
    %v2290 = vadd.f32 %v2237, %v2289
    %2291 = vmatmul.f32.gmra.mxu0 %v2075
    %v2292 = vpop.f32.mrf.mxu0
    %v2293 = vadd.f32 %v2240, %v2292
    %2294 = vmatmul.f32.gmra.mxu0 %v2078
    %v2295 = vpop.f32.mrf.mxu0
    %v2296 = vadd.f32 %v2243, %v2295
    %2297 = vmatmul.f32.gmra.mxu0 %v2081
    %v2298 = vpop.f32.mrf.mxu0
    %v2299 = vadd.f32 %v2246, %v2298
    %2300 = vmatmul.f32.gmra.mxu0 %v2084
    %v2301 = vpop.f32.mrf.mxu0
    %v2302 = vadd.f32 %v2249, %v2301
    %2303 = vmatmul.f32.gmra.mxu0 %v2087
    %v2304 = vpop.f32.mrf.mxu0
    %v2305 = vadd.f32 %v2252, %v2304
    %2306 = vdwg.mxu0
    %s2307 = scalar_lea.vmem %s3, 192
    %v2308 = vld [vmem:[%s2307] sm:$0xff]
    %v2309 = vld [vmem:[%s2307 + $0x8] sm:$0xff]
    %v2310 = vld [vmem:[%s2307 + $0x10] sm:$0xff]
    %v2311 = vld [vmem:[%s2307 + $0x18] sm:$0xff]
    %v2312 = vld [vmem:[%s2307 + $0x20] sm:$0xff]
    %v2313 = vld [vmem:[%s2307 + $0x28] sm:$0xff]
    %v2314 = vld [vmem:[%s2307 + $0x30] sm:$0xff]
    %v2315 = vld [vmem:[%s2307 + $0x38] sm:$0xff]
    %v2316 = vld [vmem:[%s2307 + $0x40] sm:$0xff]
    %v2317 = vld [vmem:[%s2307 + $0x48] sm:$0xff]
    %v2318 = vld [vmem:[%s2307 + $0x50] sm:$0xff]
    %v2319 = vld [vmem:[%s2307 + $0x58] sm:$0xff]
    %v2320 = vld [vmem:[%s2307 + $0x60] sm:$0xff]
    %v2321 = vld [vmem:[%s2307 + $0x68] sm:$0xff]
    %v2322 = vld [vmem:[%s2307 + $0x70] sm:$0xff]
    %v2323 = vld [vmem:[%s2307 + $0x78] sm:$0xff]
    %v2324 = vld [vmem:[%s2307 + $0x80] sm:$0xff]
    %v2325 = vld [vmem:[%s2307 + $0x88] sm:$0xff]
    %v2326 = vld [vmem:[%s2307 + $0x90] sm:$0xff]
    %v2327 = vld [vmem:[%s2307 + $0x98] sm:$0xff]
    %v2328 = vld [vmem:[%s2307 + $0xa0] sm:$0xff]
    %v2329 = vld [vmem:[%s2307 + $0xa8] sm:$0xff]
    %v2330 = vld [vmem:[%s2307 + $0xb0] sm:$0xff]
    %v2331 = vld [vmem:[%s2307 + $0xb8] sm:$0xff]
    %v2333 = vsel %vm2052, %v2309, 0
    %v2336 = vsel %vm2052, %v2311, 0
    %v2339 = vsel %vm2052, %v2313, 0
    %v2342 = vsel %vm2052, %v2315, 0
    %v2345 = vsel %vm2052, %v2317, 0
    %v2348 = vsel %vm2052, %v2319, 0
    %v2351 = vsel %vm2052, %v2321, 0
    %v2354 = vsel %vm2052, %v2323, 0
    %v2357 = vsel %vm2052, %v2325, 0
    %v2360 = vsel %vm2052, %v2327, 0
    %v2363 = vsel %vm2052, %v2329, 0
    %v2366 = vsel %vm2052, %v2331, 0
    %2368 = vmatpush.msra.mxu0 %v2002
    %2369 = vmatpush.msra.mxu0 %v2000
    %2370 = vmatpush.msra.mxu0 %v1998
    %2371 = vmatpush.msra.mxu0 %v1996
    %2372 = vmatpush.msra.mxu0 %v1994
    %2373 = vmatpush.msra.mxu0 %v1992
    %2374 = vmatpush.msra.mxu0 %v1990
    %2375 = vmatpush.msra.mxu0 %v1988
    %2376 = vmatpush.msra.mxu0 %v1986
    %2377 = vmatpush.msra.mxu0 %v1984
    %2378 = vmatpush.msra.mxu0 %v1982
    %2379 = vmatpush.msra.mxu0 %v1980
    %2380 = vmatpush.msra.mxu0 %v1978
    %2381 = vmatpush.msra.mxu0 %v1976
    %2382 = vmatpush.msra.mxu0 %v1974
    %2383 = vmatpush.msra.mxu0 %v1972
    %2384 = vmatmul.f32.gmra.mxu0 %v2308
    %v2385 = vpop.f32.mrf.mxu0
    %v2386 = vadd.f32 0.0, %v2385
    %2387 = vmatmul.f32.gmra.mxu0 %v2310
    %v2388 = vpop.f32.mrf.mxu0
    %v2389 = vadd.f32 0.0, %v2388
    %2390 = vmatmul.f32.gmra.mxu0 %v2312
    %v2391 = vpop.f32.mrf.mxu0
    %v2392 = vadd.f32 0.0, %v2391
    %2393 = vmatmul.f32.gmra.mxu0 %v2314
    %v2394 = vpop.f32.mrf.mxu0
    %v2395 = vadd.f32 0.0, %v2394
    %2396 = vmatmul.f32.gmra.mxu0 %v2316
    %v2397 = vpop.f32.mrf.mxu0
    %v2398 = vadd.f32 0.0, %v2397
    %2399 = vmatmul.f32.gmra.mxu0 %v2318
    %v2400 = vpop.f32.mrf.mxu0
    %v2401 = vadd.f32 0.0, %v2400
    %2402 = vmatmul.f32.gmra.mxu0 %v2320
    %v2403 = vpop.f32.mrf.mxu0
    %v2404 = vadd.f32 0.0, %v2403
    %2405 = vmatmul.f32.gmra.mxu0 %v2322
    %v2406 = vpop.f32.mrf.mxu0
    %v2407 = vadd.f32 0.0, %v2406
    %2408 = vmatmul.f32.gmra.mxu0 %v2324
    %v2409 = vpop.f32.mrf.mxu0
    %v2410 = vadd.f32 0.0, %v2409
    %2411 = vmatmul.f32.gmra.mxu0 %v2326
    %v2412 = vpop.f32.mrf.mxu0
    %v2413 = vadd.f32 0.0, %v2412
    %2414 = vmatmul.f32.gmra.mxu0 %v2328
    %v2415 = vpop.f32.mrf.mxu0
    %v2416 = vadd.f32 0.0, %v2415
    %2417 = vmatmul.f32.gmra.mxu0 %v2330
    %v2418 = vpop.f32.mrf.mxu0
    %v2419 = vadd.f32 0.0, %v2418
    %2420 = vdwg.mxu0
    %2421 = vmatpush.msra.mxu0 0.0
    %2422 = vmatpush.msra.mxu0 0.0
    %2423 = vmatpush.msra.mxu0 0.0
    %2424 = vmatpush.msra.mxu0 0.0
    %2425 = vmatpush.msra.mxu0 %v2090
    %2426 = vmatpush.msra.mxu0 %v2024
    %2427 = vmatpush.msra.mxu0 %v2022
    %2428 = vmatpush.msra.mxu0 %v2020
    %2429 = vmatpush.msra.mxu0 %v2018
    %2430 = vmatpush.msra.mxu0 %v2016
    %2431 = vmatpush.msra.mxu0 %v2014
    %2432 = vmatpush.msra.mxu0 %v2012
    %2433 = vmatpush.msra.mxu0 %v2010
    %2434 = vmatpush.msra.mxu0 %v2008
    %2435 = vmatpush.msra.mxu0 %v2006
    %2436 = vmatpush.msra.mxu0 %v2004
    %2437 = vmatmul.f32.gmra.mxu0 %v2333
    %v2438 = vpop.f32.mrf.mxu0
    %v2439 = vadd.f32 %v2386, %v2438
    %2440 = vmatmul.f32.gmra.mxu0 %v2336
    %v2441 = vpop.f32.mrf.mxu0
    %v2442 = vadd.f32 %v2389, %v2441
    %2443 = vmatmul.f32.gmra.mxu0 %v2339
    %v2444 = vpop.f32.mrf.mxu0
    %v2445 = vadd.f32 %v2392, %v2444
    %2446 = vmatmul.f32.gmra.mxu0 %v2342
    %v2447 = vpop.f32.mrf.mxu0
    %v2448 = vadd.f32 %v2395, %v2447
    %2449 = vmatmul.f32.gmra.mxu0 %v2345
    %v2450 = vpop.f32.mrf.mxu0
    %v2451 = vadd.f32 %v2398, %v2450
    %2452 = vmatmul.f32.gmra.mxu0 %v2348
    %v2453 = vpop.f32.mrf.mxu0
    %v2454 = vadd.f32 %v2401, %v2453
    %2455 = vmatmul.f32.gmra.mxu0 %v2351
    %v2456 = vpop.f32.mrf.mxu0
    %v2457 = vadd.f32 %v2404, %v2456
    %2458 = vmatmul.f32.gmra.mxu0 %v2354
    %v2459 = vpop.f32.mrf.mxu0
    %v2460 = vadd.f32 %v2407, %v2459
    %2461 = vmatmul.f32.gmra.mxu0 %v2357
    %v2462 = vpop.f32.mrf.mxu0
    %v2463 = vadd.f32 %v2410, %v2462
    %2464 = vmatmul.f32.gmra.mxu0 %v2360
    %v2465 = vpop.f32.mrf.mxu0
    %v2466 = vadd.f32 %v2413, %v2465
    %2467 = vmatmul.f32.gmra.mxu0 %v2363
    %v2468 = vpop.f32.mrf.mxu0
    %v2469 = vadd.f32 %v2416, %v2468
    %2470 = vmatmul.f32.gmra.mxu0 %v2366
    %v2471 = vpop.f32.mrf.mxu0
    %v2472 = vadd.f32 %v2419, %v2471
    %2473 = vdwg.mxu0
    %2474 = vmatpush.msra.mxu0 %v2003
    %2475 = vmatpush.msra.mxu0 %v2001
    %2476 = vmatpush.msra.mxu0 %v1999
    %2477 = vmatpush.msra.mxu0 %v1997
    %2478 = vmatpush.msra.mxu0 %v1995
    %2479 = vmatpush.msra.mxu0 %v1993
    %2480 = vmatpush.msra.mxu0 %v1991
    %2481 = vmatpush.msra.mxu0 %v1989
    %2482 = vmatpush.msra.mxu0 %v1987
    %2483 = vmatpush.msra.mxu0 %v1985
    %2484 = vmatpush.msra.mxu0 %v1983
    %2485 = vmatpush.msra.mxu0 %v1981
    %2486 = vmatpush.msra.mxu0 %v1979
    %2487 = vmatpush.msra.mxu0 %v1977
    %2488 = vmatpush.msra.mxu0 %v1975
    %2489 = vmatpush.msra.mxu0 %v1973
    %2490 = vmatmul.f32.gmra.mxu0 %v2308
    %v2491 = vpop.f32.mrf.mxu0
    %v2492 = vadd.f32 0.0, %v2491
    %2493 = vmatmul.f32.gmra.mxu0 %v2310
    %v2494 = vpop.f32.mrf.mxu0
    %v2495 = vadd.f32 0.0, %v2494
    %2496 = vmatmul.f32.gmra.mxu0 %v2312
    %v2497 = vpop.f32.mrf.mxu0
    %v2498 = vadd.f32 0.0, %v2497
    %2499 = vmatmul.f32.gmra.mxu0 %v2314
    %v2500 = vpop.f32.mrf.mxu0
    %v2501 = vadd.f32 0.0, %v2500
    %2502 = vmatmul.f32.gmra.mxu0 %v2316
    %v2503 = vpop.f32.mrf.mxu0
    %v2504 = vadd.f32 0.0, %v2503
    %2505 = vmatmul.f32.gmra.mxu0 %v2318
    %v2506 = vpop.f32.mrf.mxu0
    %v2507 = vadd.f32 0.0, %v2506
    %2508 = vmatmul.f32.gmra.mxu0 %v2320
    %v2509 = vpop.f32.mrf.mxu0
    %v2510 = vadd.f32 0.0, %v2509
    %2511 = vmatmul.f32.gmra.mxu0 %v2322
    %v2512 = vpop.f32.mrf.mxu0
    %v2513 = vadd.f32 0.0, %v2512
    %2514 = vmatmul.f32.gmra.mxu0 %v2324
    %v2515 = vpop.f32.mrf.mxu0
    %v2516 = vadd.f32 0.0, %v2515
    %2517 = vmatmul.f32.gmra.mxu0 %v2326
    %v2518 = vpop.f32.mrf.mxu0
    %v2519 = vadd.f32 0.0, %v2518
    %2520 = vmatmul.f32.gmra.mxu0 %v2328
    %v2521 = vpop.f32.mrf.mxu0
    %v2522 = vadd.f32 0.0, %v2521
    %2523 = vmatmul.f32.gmra.mxu0 %v2330
    %v2524 = vpop.f32.mrf.mxu0
    %v2525 = vadd.f32 0.0, %v2524
    %2526 = vdwg.mxu0
    %2527 = vmatpush.msra.mxu0 0.0
    %2528 = vmatpush.msra.mxu0 0.0
    %2529 = vmatpush.msra.mxu0 0.0
    %2530 = vmatpush.msra.mxu0 0.0
    %2531 = vmatpush.msra.mxu0 %v2093
    %2532 = vmatpush.msra.mxu0 %v2025
    %2533 = vmatpush.msra.mxu0 %v2023
    %2534 = vmatpush.msra.mxu0 %v2021
    %2535 = vmatpush.msra.mxu0 %v2019
    %2536 = vmatpush.msra.mxu0 %v2017
    %2537 = vmatpush.msra.mxu0 %v2015
    %2538 = vmatpush.msra.mxu0 %v2013
    %2539 = vmatpush.msra.mxu0 %v2011
    %2540 = vmatpush.msra.mxu0 %v2009
    %2541 = vmatpush.msra.mxu0 %v2007
    %2542 = vmatpush.msra.mxu0 %v2005
    %2543 = vmatmul.f32.gmra.mxu0 %v2333
    %v2544 = vpop.f32.mrf.mxu0
    %v2545 = vadd.f32 %v2492, %v2544
    %2546 = vmatmul.f32.gmra.mxu0 %v2336
    %v2547 = vpop.f32.mrf.mxu0
    %v2548 = vadd.f32 %v2495, %v2547
    %2549 = vmatmul.f32.gmra.mxu0 %v2339
    %v2550 = vpop.f32.mrf.mxu0
    %v2551 = vadd.f32 %v2498, %v2550
    %2552 = vmatmul.f32.gmra.mxu0 %v2342
    %v2553 = vpop.f32.mrf.mxu0
    %v2554 = vadd.f32 %v2501, %v2553
    %2555 = vmatmul.f32.gmra.mxu0 %v2345
    %v2556 = vpop.f32.mrf.mxu0
    %v2557 = vadd.f32 %v2504, %v2556
    %2558 = vmatmul.f32.gmra.mxu0 %v2348
    %v2559 = vpop.f32.mrf.mxu0
    %v2560 = vadd.f32 %v2507, %v2559
    %2561 = vmatmul.f32.gmra.mxu0 %v2351
    %v2562 = vpop.f32.mrf.mxu0
    %v2563 = vadd.f32 %v2510, %v2562
    %2564 = vmatmul.f32.gmra.mxu0 %v2354
    %v2565 = vpop.f32.mrf.mxu0
    %v2566 = vadd.f32 %v2513, %v2565
    %2567 = vmatmul.f32.gmra.mxu0 %v2357
    %v2568 = vpop.f32.mrf.mxu0
    %v2569 = vadd.f32 %v2516, %v2568
    %2570 = vmatmul.f32.gmra.mxu0 %v2360
    %v2571 = vpop.f32.mrf.mxu0
    %v2572 = vadd.f32 %v2519, %v2571
    %2573 = vmatmul.f32.gmra.mxu0 %v2363
    %v2574 = vpop.f32.mrf.mxu0
    %v2575 = vadd.f32 %v2522, %v2574
    %2576 = vmatmul.f32.gmra.mxu0 %v2366
    %v2577 = vpop.f32.mrf.mxu0
    %v2578 = vadd.f32 %v2525, %v2577
    %2579 = vdwg.mxu0
    %v2580 = vmax.f32 %v2166, %v2439
    %v2581 = vmax.f32 %v2272, %v2545
    %v2582 = vmax.f32 %v2169, %v2442
    %v2583 = vmax.f32 %v2275, %v2548
    %v2584 = vmax.f32 %v2172, %v2445
    %v2585 = vmax.f32 %v2278, %v2551
    %v2586 = vmax.f32 %v2175, %v2448
    %v2587 = vmax.f32 %v2281, %v2554
    %v2588 = vmax.f32 %v2178, %v2451
    %v2589 = vmax.f32 %v2284, %v2557
    %v2590 = vmax.f32 %v2181, %v2454
    %v2591 = vmax.f32 %v2287, %v2560
    %v2592 = vmax.f32 %v2184, %v2457
    %v2593 = vmax.f32 %v2290, %v2563
    %v2594 = vmax.f32 %v2187, %v2460
    %v2595 = vmax.f32 %v2293, %v2566
    %v2596 = vmax.f32 %v2190, %v2463
    %v2597 = vmax.f32 %v2296, %v2569
    %v2598 = vmax.f32 %v2193, %v2466
    %v2599 = vmax.f32 %v2299, %v2572
    %v2600 = vmax.f32 %v2196, %v2469
    %v2601 = vmax.f32 %v2302, %v2575
    %v2602 = vmax.f32 %v2199, %v2472
    %v2603 = vmax.f32 %v2305, %v2578
    %v2604 = vld [vmem:[%s4] sm:$0xff]
    %v2605 = vld [vmem:[%s4 + $0x8] sm:$0xff]
    %v2606 = vld [vmem:[%s4 + $0x10] sm:$0xff]
    %v2607 = vld [vmem:[%s4 + $0x18] sm:$0xff]
    %v2608 = vld [vmem:[%s4 + $0x20] sm:$0xff]
    %v2609 = vld [vmem:[%s4 + $0x28] sm:$0xff]
    %v2610 = vld [vmem:[%s4 + $0x30] sm:$0xff]
    %v2611 = vld [vmem:[%s4 + $0x38] sm:$0xff]
    %v2612 = vld [vmem:[%s4 + $0x40] sm:$0xff]
    %v2613 = vld [vmem:[%s4 + $0x48] sm:$0xff]
    %v2614 = vld [vmem:[%s4 + $0x50] sm:$0xff]
    %v2615 = vld [vmem:[%s4 + $0x58] sm:$0xff]
    %v2616 = vld [vmem:[%s4 + $0x60] sm:$0xff]
    %v2617 = vld [vmem:[%s4 + $0x68] sm:$0xff]
    %v2618 = vld [vmem:[%s4 + $0x70] sm:$0xff]
    %v2619 = vld [vmem:[%s4 + $0x78] sm:$0xff]
    %v2620 = vld [vmem:[%s4 + $0x80] sm:$0xff]
    %v2621 = vld [vmem:[%s4 + $0x88] sm:$0xff]
    %vm2622 = vcmask 130048
    %v2624 = vsel %vm2622, %v2581, 0
    %v2627 = vsel %vm2622, %v2583, 0
    %v2630 = vsel %vm2622, %v2585, 0
    %v2633 = vsel %vm2622, %v2587, 0
    %v2636 = vsel %vm2622, %v2589, 0
    %v2639 = vsel %vm2622, %v2591, 0
    %v2642 = vsel %vm2622, %v2593, 0
    %v2645 = vsel %vm2622, %v2595, 0
    %v2648 = vsel %vm2622, %v2597, 0
    %v2651 = vsel %vm2622, %v2599, 0
    %v2654 = vsel %vm2622, %v2601, 0
    %v2657 = vsel %vm2622, %v2603, 0
    %2659 = vmatpush.msra.mxu0 %v2619
    %2660 = vmatpush.msra.mxu0 %v2618
    %2661 = vmatpush.msra.mxu0 %v2617
    %2662 = vmatpush.msra.mxu0 %v2616
    %2663 = vmatpush.msra.mxu0 %v2615
    %2664 = vmatpush.msra.mxu0 %v2614
    %2665 = vmatpush.msra.mxu0 %v2613
    %2666 = vmatpush.msra.mxu0 %v2612
    %2667 = vmatpush.msra.mxu0 %v2611
    %2668 = vmatpush.msra.mxu0 %v2610
    %2669 = vmatpush.msra.mxu0 %v2609
    %2670 = vmatpush.msra.mxu0 %v2608
    %2671 = vmatpush.msra.mxu0 %v2607
    %2672 = vmatpush.msra.mxu0 %v2606
    %2673 = vmatpush.msra.mxu0 %v2605
    %2674 = vmatpush.msra.mxu0 %v2604
    %2675 = vmatmul.f32.gmra.mxu0 %v2580
    %v2676 = vpop.f32.mrf.mxu0
    %v2677 = vadd.f32 0.0, %v2676
    %2678 = vmatmul.f32.gmra.mxu0 %v2582
    %v2679 = vpop.f32.mrf.mxu0
    %v2680 = vadd.f32 0.0, %v2679
    %2681 = vmatmul.f32.gmra.mxu0 %v2584
    %v2682 = vpop.f32.mrf.mxu0
    %v2683 = vadd.f32 0.0, %v2682
    %2684 = vmatmul.f32.gmra.mxu0 %v2586
    %v2685 = vpop.f32.mrf.mxu0
    %v2686 = vadd.f32 0.0, %v2685
    %2687 = vmatmul.f32.gmra.mxu0 %v2588
    %v2688 = vpop.f32.mrf.mxu0
    %v2689 = vadd.f32 0.0, %v2688
    %2690 = vmatmul.f32.gmra.mxu0 %v2590
    %v2691 = vpop.f32.mrf.mxu0
    %v2692 = vadd.f32 0.0, %v2691
    %2693 = vmatmul.f32.gmra.mxu0 %v2592
    %v2694 = vpop.f32.mrf.mxu0
    %v2695 = vadd.f32 0.0, %v2694
    %2696 = vmatmul.f32.gmra.mxu0 %v2594
    %v2697 = vpop.f32.mrf.mxu0
    %v2698 = vadd.f32 0.0, %v2697
    %2699 = vmatmul.f32.gmra.mxu0 %v2596
    %v2700 = vpop.f32.mrf.mxu0
    %v2701 = vadd.f32 0.0, %v2700
    %2702 = vmatmul.f32.gmra.mxu0 %v2598
    %v2703 = vpop.f32.mrf.mxu0
    %v2704 = vadd.f32 0.0, %v2703
    %2705 = vmatmul.f32.gmra.mxu0 %v2600
    %v2706 = vpop.f32.mrf.mxu0
    %v2707 = vadd.f32 0.0, %v2706
    %2708 = vmatmul.f32.gmra.mxu0 %v2602
    %v2709 = vpop.f32.mrf.mxu0
    %v2710 = vadd.f32 0.0, %v2709
    %2711 = vdwg.mxu0
    %2712 = vmatpush.msra.mxu0 0.0
    %2713 = vmatpush.msra.mxu0 0.0
    %2714 = vmatpush.msra.mxu0 0.0
    %2715 = vmatpush.msra.mxu0 0.0
    %2716 = vmatpush.msra.mxu0 0.0
    %2717 = vmatpush.msra.mxu0 0.0
    %2718 = vmatpush.msra.mxu0 0.0
    %2719 = vmatpush.msra.mxu0 0.0
    %2720 = vmatpush.msra.mxu0 0.0
    %2721 = vmatpush.msra.mxu0 0.0
    %2722 = vmatpush.msra.mxu0 0.0
    %2723 = vmatpush.msra.mxu0 0.0
    %2724 = vmatpush.msra.mxu0 0.0
    %2725 = vmatpush.msra.mxu0 0.0
    %2726 = vmatpush.msra.mxu0 %v2621
    %2727 = vmatpush.msra.mxu0 %v2620
    %2728 = vmatmul.f32.gmra.mxu0 %v2624
    %v2729 = vpop.f32.mrf.mxu0
    %v2730 = vadd.f32 %v2677, %v2729
    %2731 = vmatmul.f32.gmra.mxu0 %v2627
    %v2732 = vpop.f32.mrf.mxu0
    %v2733 = vadd.f32 %v2680, %v2732
    %2734 = vmatmul.f32.gmra.mxu0 %v2630
    %v2735 = vpop.f32.mrf.mxu0
    %v2736 = vadd.f32 %v2683, %v2735
    %2737 = vmatmul.f32.gmra.mxu0 %v2633
    %v2738 = vpop.f32.mrf.mxu0
    %v2739 = vadd.f32 %v2686, %v2738
    %2740 = vmatmul.f32.gmra.mxu0 %v2636
    %v2741 = vpop.f32.mrf.mxu0
    %v2742 = vadd.f32 %v2689, %v2741
    %2743 = vmatmul.f32.gmra.mxu0 %v2639
    %v2744 = vpop.f32.mrf.mxu0
    %v2745 = vadd.f32 %v2692, %v2744
    %2746 = vmatmul.f32.gmra.mxu0 %v2642
    %v2747 = vpop.f32.mrf.mxu0
    %v2748 = vadd.f32 %v2695, %v2747
    %2749 = vmatmul.f32.gmra.mxu0 %v2645
    %v2750 = vpop.f32.mrf.mxu0
    %v2751 = vadd.f32 %v2698, %v2750
    %2752 = vmatmul.f32.gmra.mxu0 %v2648
    %v2753 = vpop.f32.mrf.mxu0
    %v2754 = vadd.f32 %v2701, %v2753
    %2755 = vmatmul.f32.gmra.mxu0 %v2651
    %v2756 = vpop.f32.mrf.mxu0
    %v2757 = vadd.f32 %v2704, %v2756
    %2758 = vmatmul.f32.gmra.mxu0 %v2654
    %v2759 = vpop.f32.mrf.mxu0
    %v2760 = vadd.f32 %v2707, %v2759
    %2761 = vmatmul.f32.gmra.mxu0 %v2657
    %v2762 = vpop.f32.mrf.mxu0
    %v2763 = vadd.f32 %v2710, %v2762
    %2764 = vdwg.mxu0
    %s2765 = scalar_lea.vmem %s4, 144
    %v2766 = vld [vmem:[%s2765] sm:$0xff]
    %v2767 = vld [vmem:[%s2765 + $0x8] sm:$0xff]
    %v2768 = vld [vmem:[%s2765 + $0x10] sm:$0xff]
    %v2769 = vld [vmem:[%s2765 + $0x18] sm:$0xff]
    %v2770 = vld [vmem:[%s2765 + $0x20] sm:$0xff]
    %v2771 = vld [vmem:[%s2765 + $0x28] sm:$0xff]
    %v2772 = vld [vmem:[%s2765 + $0x30] sm:$0xff]
    %v2773 = vld [vmem:[%s2765 + $0x38] sm:$0xff]
    %v2774 = vld [vmem:[%s2765 + $0x40] sm:$0xff]
    %v2775 = vld [vmem:[%s2765 + $0x48] sm:$0xff]
    %v2776 = vld [vmem:[%s2765 + $0x50] sm:$0xff]
    %v2777 = vld [vmem:[%s2765 + $0x58] sm:$0xff]
    %v2778 = vld [vmem:[%s2765 + $0x60] sm:$0xff]
    %v2779 = vld [vmem:[%s2765 + $0x68] sm:$0xff]
    %v2780 = vld [vmem:[%s2765 + $0x70] sm:$0xff]
    %v2781 = vld [vmem:[%s2765 + $0x78] sm:$0xff]
    %v2782 = vld [vmem:[%s2765 + $0x80] sm:$0xff]
    %v2783 = vld [vmem:[%s2765 + $0x88] sm:$0xff]
    %2784 = vmatpush.msra.mxu0 %v2781
    %2785 = vmatpush.msra.mxu0 %v2780
    %2786 = vmatpush.msra.mxu0 %v2779
    %2787 = vmatpush.msra.mxu0 %v2778
    %2788 = vmatpush.msra.mxu0 %v2777
    %2789 = vmatpush.msra.mxu0 %v2776
    %2790 = vmatpush.msra.mxu0 %v2775
    %2791 = vmatpush.msra.mxu0 %v2774
    %2792 = vmatpush.msra.mxu0 %v2773
    %2793 = vmatpush.msra.mxu0 %v2772
    %2794 = vmatpush.msra.mxu0 %v2771
    %2795 = vmatpush.msra.mxu0 %v2770
    %2796 = vmatpush.msra.mxu0 %v2769
    %2797 = vmatpush.msra.mxu0 %v2768
    %2798 = vmatpush.msra.mxu0 %v2767
    %2799 = vmatpush.msra.mxu0 %v2766
    %2800 = vmatmul.f32.gmra.mxu0 %v2580
    %v2801 = vpop.f32.mrf.mxu0
    %v2802 = vadd.f32 0.0, %v2801
    %2803 = vmatmul.f32.gmra.mxu0 %v2582
    %v2804 = vpop.f32.mrf.mxu0
    %v2805 = vadd.f32 0.0, %v2804
    %2806 = vmatmul.f32.gmra.mxu0 %v2584
    %v2807 = vpop.f32.mrf.mxu0
    %v2808 = vadd.f32 0.0, %v2807
    %2809 = vmatmul.f32.gmra.mxu0 %v2586
    %v2810 = vpop.f32.mrf.mxu0
    %v2811 = vadd.f32 0.0, %v2810
    %2812 = vmatmul.f32.gmra.mxu0 %v2588
    %v2813 = vpop.f32.mrf.mxu0
    %v2814 = vadd.f32 0.0, %v2813
    %2815 = vmatmul.f32.gmra.mxu0 %v2590
    %v2816 = vpop.f32.mrf.mxu0
    %v2817 = vadd.f32 0.0, %v2816
    %2818 = vmatmul.f32.gmra.mxu0 %v2592
    %v2819 = vpop.f32.mrf.mxu0
    %v2820 = vadd.f32 0.0, %v2819
    %2821 = vmatmul.f32.gmra.mxu0 %v2594
    %v2822 = vpop.f32.mrf.mxu0
    %v2823 = vadd.f32 0.0, %v2822
    %2824 = vmatmul.f32.gmra.mxu0 %v2596
    %v2825 = vpop.f32.mrf.mxu0
    %v2826 = vadd.f32 0.0, %v2825
    %2827 = vmatmul.f32.gmra.mxu0 %v2598
    %v2828 = vpop.f32.mrf.mxu0
    %v2829 = vadd.f32 0.0, %v2828
    %2830 = vmatmul.f32.gmra.mxu0 %v2600
    %v2831 = vpop.f32.mrf.mxu0
    %v2832 = vadd.f32 0.0, %v2831
    %2833 = vmatmul.f32.gmra.mxu0 %v2602
    %v2834 = vpop.f32.mrf.mxu0
    %v2835 = vadd.f32 0.0, %v2834
    %2836 = vdwg.mxu0
    %2837 = vmatpush.msra.mxu0 0.0
    %2838 = vmatpush.msra.mxu0 0.0
    %2839 = vmatpush.msra.mxu0 0.0
    %2840 = vmatpush.msra.mxu0 0.0
    %2841 = vmatpush.msra.mxu0 0.0
    %2842 = vmatpush.msra.mxu0 0.0
    %2843 = vmatpush.msra.mxu0 0.0
    %2844 = vmatpush.msra.mxu0 0.0
    %2845 = vmatpush.msra.mxu0 0.0
    %2846 = vmatpush.msra.mxu0 0.0
    %2847 = vmatpush.msra.mxu0 0.0
    %2848 = vmatpush.msra.mxu0 0.0
    %2849 = vmatpush.msra.mxu0 0.0
    %2850 = vmatpush.msra.mxu0 0.0
    %2851 = vmatpush.msra.mxu0 %v2783
    %2852 = vmatpush.msra.mxu0 %v2782
    %2853 = vmatmul.f32.gmra.mxu0 %v2624
    %v2854 = vpop.f32.mrf.mxu0
    %v2855 = vadd.f32 %v2802, %v2854
    %2856 = vmatmul.f32.gmra.mxu0 %v2627
    %v2857 = vpop.f32.mrf.mxu0
    %v2858 = vadd.f32 %v2805, %v2857
    %2859 = vmatmul.f32.gmra.mxu0 %v2630
    %v2860 = vpop.f32.mrf.mxu0
    %v2861 = vadd.f32 %v2808, %v2860
    %2862 = vmatmul.f32.gmra.mxu0 %v2633
    %v2863 = vpop.f32.mrf.mxu0
    %v2864 = vadd.f32 %v2811, %v2863
    %2865 = vmatmul.f32.gmra.mxu0 %v2636
    %v2866 = vpop.f32.mrf.mxu0
    %v2867 = vadd.f32 %v2814, %v2866
    %2868 = vmatmul.f32.gmra.mxu0 %v2639
    %v2869 = vpop.f32.mrf.mxu0
    %v2870 = vadd.f32 %v2817, %v2869
    %2871 = vmatmul.f32.gmra.mxu0 %v2642
    %v2872 = vpop.f32.mrf.mxu0
    %v2873 = vadd.f32 %v2820, %v2872
    %2874 = vmatmul.f32.gmra.mxu0 %v2645
    %v2875 = vpop.f32.mrf.mxu0
    %v2876 = vadd.f32 %v2823, %v2875
    %2877 = vmatmul.f32.gmra.mxu0 %v2648
    %v2878 = vpop.f32.mrf.mxu0
    %v2879 = vadd.f32 %v2826, %v2878
    %2880 = vmatmul.f32.gmra.mxu0 %v2651
    %v2881 = vpop.f32.mrf.mxu0
    %v2882 = vadd.f32 %v2829, %v2881
    %2883 = vmatmul.f32.gmra.mxu0 %v2654
    %v2884 = vpop.f32.mrf.mxu0
    %v2885 = vadd.f32 %v2832, %v2884
    %2886 = vmatmul.f32.gmra.mxu0 %v2657
    %v2887 = vpop.f32.mrf.mxu0
    %v2888 = vadd.f32 %v2835, %v2887
    %2889 = vdwg.mxu0
    %v2890 = vmax.f32 %v2730, %v2855
    %v2891 = vmax.f32 %v2733, %v2858
    %v2892 = vmax.f32 %v2736, %v2861
    %v2893 = vmax.f32 %v2739, %v2864
    %v2894 = vmax.f32 %v2742, %v2867
    %v2895 = vmax.f32 %v2745, %v2870
    %v2896 = vmax.f32 %v2748, %v2873
    %v2897 = vmax.f32 %v2751, %v2876
    %v2898 = vmax.f32 %v2754, %v2879
    %v2899 = vmax.f32 %v2757, %v2882
    %v2900 = vmax.f32 %v2760, %v2885
    %v2901 = vmax.f32 %v2763, %v2888
    %v2902 = vld [vmem:[%s5] sm:$0xff]
    %v2903 = vld [vmem:[%s5 + $0x8] sm:$0xff]
    %v2904 = vld [vmem:[%s5 + $0x10] sm:$0xff]
    %v2905 = vld [vmem:[%s5 + $0x18] sm:$0xff]
    %v2906 = vld [vmem:[%s5 + $0x20] sm:$0xff]
    %v2907 = vld [vmem:[%s5 + $0x28] sm:$0xff]
    %v2908 = vld [vmem:[%s5 + $0x30] sm:$0xff]
    %v2909 = vld [vmem:[%s5 + $0x38] sm:$0xff]
    %v2910 = vld [vmem:[%s5 + $0x40] sm:$0xff]
    %s2911 = scalar_lea.vmem %s5, 72
    %v2912 = vld [vmem:[%s2911] sm:$0xff]
    %v2913 = vld [vmem:[%s2911 + $0x8] sm:$0xff]
    %v2914 = vld [vmem:[%s2911 + $0x10] sm:$0xff]
    %v2915 = vld [vmem:[%s2911 + $0x18] sm:$0xff]
    %v2916 = vld [vmem:[%s2911 + $0x20] sm:$0xff]
    %v2917 = vld [vmem:[%s2911 + $0x28] sm:$0xff]
    %v2918 = vld [vmem:[%s2911 + $0x30] sm:$0xff]
    %v2919 = vld [vmem:[%s2911 + $0x38] sm:$0xff]
    %v2920 = vld [vmem:[%s2911 + $0x40] sm:$0xff]
    %v2933 = vrot.slane %v2890, 1
    %v2934 = vrot.slane %v2891, 1
    %v2935 = vsel %vm170, %v2933, %v2934
    %v2936 = vrot.slane %v2892, 1
    %v2937 = vsel %vm170, %v2934, %v2936
    %v2938 = vrot.slane %v2893, 1
    %v2939 = vsel %vm170, %v2936, %v2938
    %v2940 = vrot.slane %v2894, 1
    %v2941 = vsel %vm170, %v2938, %v2940
    %v2942 = vrot.slane %v2895, 1
    %v2943 = vsel %vm170, %v2940, %v2942
    %v2944 = vrot.slane %v2896, 1
    %v2945 = vsel %vm170, %v2942, %v2944
    %v2946 = vrot.slane %v2897, 1
    %v2947 = vsel %vm170, %v2944, %v2946
    %v2948 = vrot.slane %v2898, 1
    %v2949 = vsel %vm170, %v2946, %v2948
    %v2950 = vrot.slane %v2899, 1
    %v2951 = vsel %vm170, %v2948, %v2950
    %v2952 = vrot.slane %v2900, 1
    %v2953 = vsel %vm170, %v2950, %v2952
    %v2954 = vrot.slane %v2901, 1
    %v2955 = vsel %vm170, %v2952, %v2954
    %vm2956 = vcmask 588800
    %v2957 = vsel %vm2956, %v2935, 0
    %v2959 = vsel %vm2956, %v2937, 0
    %v2961 = vsel %vm2956, %v2939, 0
    %v2963 = vsel %vm2956, %v2941, 0
    %v2965 = vsel %vm2956, %v2943, 0
    %v2967 = vsel %vm2956, %v2945, 0
    %v2969 = vsel %vm2956, %v2947, 0
    %v2971 = vsel %vm2956, %v2949, 0
    %v2973 = vsel %vm2956, %v2951, 0
    %v2975 = vsel %vm2956, %v2953, 0
    %v2977 = vsel %vm2956, %v2955, 0
    %v2979 = vsel %vm2956, %v2954, 0
    %2981 = vmatpush.msra.mxu0 0.0
    %2982 = vmatpush.msra.mxu0 0.0
    %2983 = vmatpush.msra.mxu0 0.0
    %2984 = vmatpush.msra.mxu0 0.0
    %2985 = vmatpush.msra.mxu0 0.0
    %2986 = vmatpush.msra.mxu0 0.0
    %2987 = vmatpush.msra.mxu0 0.0
    %2988 = vmatpush.msra.mxu0 %v2920
    %2989 = vmatpush.msra.mxu0 %v2919
    %2990 = vmatpush.msra.mxu0 %v2918
    %2991 = vmatpush.msra.mxu0 %v2917
    %2992 = vmatpush.msra.mxu0 %v2916
    %2993 = vmatpush.msra.mxu0 %v2915
    %2994 = vmatpush.msra.mxu0 %v2914
    %2995 = vmatpush.msra.mxu0 %v2913
    %2996 = vmatpush.msra.mxu0 %v2912
    %2997 = vmatmul.f32.gmra.mxu0 %v2957
    %v2998 = vpop.f32.mrf.mxu0
    %v2999 = vadd.f32 0.0, %v2998
    %3000 = vmatmul.f32.gmra.mxu0 %v2959
    %v3001 = vpop.f32.mrf.mxu0
    %v3002 = vadd.f32 0.0, %v3001
    %3003 = vmatmul.f32.gmra.mxu0 %v2961
    %v3004 = vpop.f32.mrf.mxu0
    %v3005 = vadd.f32 0.0, %v3004
    %3006 = vmatmul.f32.gmra.mxu0 %v2963
    %v3007 = vpop.f32.mrf.mxu0
    %v3008 = vadd.f32 0.0, %v3007
    %3009 = vmatmul.f32.gmra.mxu0 %v2965
    %v3010 = vpop.f32.mrf.mxu0
    %v3011 = vadd.f32 0.0, %v3010
    %3012 = vmatmul.f32.gmra.mxu0 %v2967
    %v3013 = vpop.f32.mrf.mxu0
    %v3014 = vadd.f32 0.0, %v3013
    %3015 = vmatmul.f32.gmra.mxu0 %v2969
    %v3016 = vpop.f32.mrf.mxu0
    %v3017 = vadd.f32 0.0, %v3016
    %3018 = vmatmul.f32.gmra.mxu0 %v2971
    %v3019 = vpop.f32.mrf.mxu0
    %v3020 = vadd.f32 0.0, %v3019
    %3021 = vmatmul.f32.gmra.mxu0 %v2973
    %v3022 = vpop.f32.mrf.mxu0
    %v3023 = vadd.f32 0.0, %v3022
    %3024 = vmatmul.f32.gmra.mxu0 %v2975
    %v3025 = vpop.f32.mrf.mxu0
    %v3026 = vadd.f32 0.0, %v3025
    %3027 = vmatmul.f32.gmra.mxu0 %v2977
    %v3028 = vpop.f32.mrf.mxu0
    %v3029 = vadd.f32 0.0, %v3028
    %3030 = vmatmul.f32.gmra.mxu0 %v2979
    %v3031 = vpop.f32.mrf.mxu0
    %v3032 = vadd.f32 0.0, %v3031
    %3033 = vdwg.mxu0
    %v3034 = vsel %vm2956, %v2890, 0
    %v3036 = vsel %vm2956, %v2891, 0
    %v3038 = vsel %vm2956, %v2892, 0
    %v3040 = vsel %vm2956, %v2893, 0
    %v3042 = vsel %vm2956, %v2894, 0
    %v3044 = vsel %vm2956, %v2895, 0
    %v3046 = vsel %vm2956, %v2896, 0
    %v3048 = vsel %vm2956, %v2897, 0
    %v3050 = vsel %vm2956, %v2898, 0
    %v3052 = vsel %vm2956, %v2899, 0
    %v3054 = vsel %vm2956, %v2900, 0
    %v3056 = vsel %vm2956, %v2901, 0
    %3058 = vmatpush.msra.mxu0 0.0
    %3059 = vmatpush.msra.mxu0 0.0
    %3060 = vmatpush.msra.mxu0 0.0
    %3061 = vmatpush.msra.mxu0 0.0
    %3062 = vmatpush.msra.mxu0 0.0
    %3063 = vmatpush.msra.mxu0 0.0
    %3064 = vmatpush.msra.mxu0 0.0
    %3065 = vmatpush.msra.mxu0 %v2910
    %3066 = vmatpush.msra.mxu0 %v2909
    %3067 = vmatpush.msra.mxu0 %v2908
    %3068 = vmatpush.msra.mxu0 %v2907
    %3069 = vmatpush.msra.mxu0 %v2906
    %3070 = vmatpush.msra.mxu0 %v2905
    %3071 = vmatpush.msra.mxu0 %v2904
    %3072 = vmatpush.msra.mxu0 %v2903
    %3073 = vmatpush.msra.mxu0 %v2902
    %3074 = vmatmul.f32.gmra.mxu0 %v3034
    %v3075 = vpop.f32.mrf.mxu0
    %v3076 = vadd.f32 %v2999, %v3075
    %3077 = vmatmul.f32.gmra.mxu0 %v3036
    %v3078 = vpop.f32.mrf.mxu0
    %v3079 = vadd.f32 %v3002, %v3078
    %3080 = vmatmul.f32.gmra.mxu0 %v3038
    %v3081 = vpop.f32.mrf.mxu0
    %v3082 = vadd.f32 %v3005, %v3081
    %3083 = vmatmul.f32.gmra.mxu0 %v3040
    %v3084 = vpop.f32.mrf.mxu0
    %v3085 = vadd.f32 %v3008, %v3084
    %3086 = vmatmul.f32.gmra.mxu0 %v3042
    %v3087 = vpop.f32.mrf.mxu0
    %v3088 = vadd.f32 %v3011, %v3087
    %3089 = vmatmul.f32.gmra.mxu0 %v3044
    %v3090 = vpop.f32.mrf.mxu0
    %v3091 = vadd.f32 %v3014, %v3090
    %3092 = vmatmul.f32.gmra.mxu0 %v3046
    %v3093 = vpop.f32.mrf.mxu0
    %v3094 = vadd.f32 %v3017, %v3093
    %3095 = vmatmul.f32.gmra.mxu0 %v3048
    %v3096 = vpop.f32.mrf.mxu0
    %v3097 = vadd.f32 %v3020, %v3096
    %3098 = vmatmul.f32.gmra.mxu0 %v3050
    %v3099 = vpop.f32.mrf.mxu0
    %v3100 = vadd.f32 %v3023, %v3099
    %3101 = vmatmul.f32.gmra.mxu0 %v3052
    %v3102 = vpop.f32.mrf.mxu0
    %v3103 = vadd.f32 %v3026, %v3102
    %3104 = vmatmul.f32.gmra.mxu0 %v3054
    %v3105 = vpop.f32.mrf.mxu0
    %v3106 = vadd.f32 %v3029, %v3105
    %3107 = vmatmul.f32.gmra.mxu0 %v3056
    %v3108 = vpop.f32.mrf.mxu0
    %v3109 = vadd.f32 %v3032, %v3108
    %3110 = vdwg.mxu0
    %s3111 = scalar_lea.vmem %s5, 144
    %v3112 = vld [vmem:[%s3111] sm:$0xff]
    %v3113 = vld [vmem:[%s3111 + $0x8] sm:$0xff]
    %v3114 = vld [vmem:[%s3111 + $0x10] sm:$0xff]
    %v3115 = vld [vmem:[%s3111 + $0x18] sm:$0xff]
    %v3116 = vld [vmem:[%s3111 + $0x20] sm:$0xff]
    %v3117 = vld [vmem:[%s3111 + $0x28] sm:$0xff]
    %v3118 = vld [vmem:[%s3111 + $0x30] sm:$0xff]
    %v3119 = vld [vmem:[%s3111 + $0x38] sm:$0xff]
    %v3120 = vld [vmem:[%s3111 + $0x40] sm:$0xff]
    %v3121 = vrot.slane %v2890, 2
    %v3122 = vrot.slane %v2891, 2
    %v3123 = vsel %vm765, %v3121, %v3122
    %v3124 = vrot.slane %v2892, 2
    %v3125 = vsel %vm765, %v3122, %v3124
    %v3126 = vrot.slane %v2893, 2
    %v3127 = vsel %vm765, %v3124, %v3126
    %v3128 = vrot.slane %v2894, 2
    %v3129 = vsel %vm765, %v3126, %v3128
    %v3130 = vrot.slane %v2895, 2
    %v3131 = vsel %vm765, %v3128, %v3130
    %v3132 = vrot.slane %v2896, 2
    %v3133 = vsel %vm765, %v3130, %v3132
    %v3134 = vrot.slane %v2897, 2
    %v3135 = vsel %vm765, %v3132, %v3134
    %v3136 = vrot.slane %v2898, 2
    %v3137 = vsel %vm765, %v3134, %v3136
    %v3138 = vrot.slane %v2899, 2
    %v3139 = vsel %vm765, %v3136, %v3138
    %v3140 = vrot.slane %v2900, 2
    %v3141 = vsel %vm765, %v3138, %v3140
    %v3142 = vrot.slane %v2901, 2
    %v3143 = vsel %vm765, %v3140, %v3142
    %v3144 = vsel %vm2956, %v3123, 0
    %v3146 = vsel %vm2956, %v3125, 0
    %v3148 = vsel %vm2956, %v3127, 0
    %v3150 = vsel %vm2956, %v3129, 0
    %v3152 = vsel %vm2956, %v3131, 0
    %v3154 = vsel %vm2956, %v3133, 0
    %v3156 = vsel %vm2956, %v3135, 0
    %v3158 = vsel %vm2956, %v3137, 0
    %v3160 = vsel %vm2956, %v3139, 0
    %v3162 = vsel %vm2956, %v3141, 0
    %v3164 = vsel %vm2956, %v3143, 0
    %v3166 = vsel %vm2956, %v3142, 0
    %3168 = vmatpush.msra.mxu0 0.0
    %3169 = vmatpush.msra.mxu0 0.0
    %3170 = vmatpush.msra.mxu0 0.0
    %3171 = vmatpush.msra.mxu0 0.0
    %3172 = vmatpush.msra.mxu0 0.0
    %3173 = vmatpush.msra.mxu0 0.0
    %3174 = vmatpush.msra.mxu0 0.0
    %3175 = vmatpush.msra.mxu0 %v3120
    %3176 = vmatpush.msra.mxu0 %v3119
    %3177 = vmatpush.msra.mxu0 %v3118
    %3178 = vmatpush.msra.mxu0 %v3117
    %3179 = vmatpush.msra.mxu0 %v3116
    %3180 = vmatpush.msra.mxu0 %v3115
    %3181 = vmatpush.msra.mxu0 %v3114
    %3182 = vmatpush.msra.mxu0 %v3113
    %3183 = vmatpush.msra.mxu0 %v3112
    %3184 = vmatmul.f32.gmra.mxu0 %v3144
    %v3185 = vpop.f32.mrf.mxu0
    %v3186 = vadd.f32 0.0, %v3185
    %3187 = vmatmul.f32.gmra.mxu0 %v3146
    %v3188 = vpop.f32.mrf.mxu0
    %v3189 = vadd.f32 0.0, %v3188
    %3190 = vmatmul.f32.gmra.mxu0 %v3148
    %v3191 = vpop.f32.mrf.mxu0
    %v3192 = vadd.f32 0.0, %v3191
    %3193 = vmatmul.f32.gmra.mxu0 %v3150
    %v3194 = vpop.f32.mrf.mxu0
    %v3195 = vadd.f32 0.0, %v3194
    %3196 = vmatmul.f32.gmra.mxu0 %v3152
    %v3197 = vpop.f32.mrf.mxu0
    %v3198 = vadd.f32 0.0, %v3197
    %3199 = vmatmul.f32.gmra.mxu0 %v3154
    %v3200 = vpop.f32.mrf.mxu0
    %v3201 = vadd.f32 0.0, %v3200
    %3202 = vmatmul.f32.gmra.mxu0 %v3156
    %v3203 = vpop.f32.mrf.mxu0
    %v3204 = vadd.f32 0.0, %v3203
    %3205 = vmatmul.f32.gmra.mxu0 %v3158
    %v3206 = vpop.f32.mrf.mxu0
    %v3207 = vadd.f32 0.0, %v3206
    %3208 = vmatmul.f32.gmra.mxu0 %v3160
    %v3209 = vpop.f32.mrf.mxu0
    %v3210 = vadd.f32 0.0, %v3209
    %3211 = vmatmul.f32.gmra.mxu0 %v3162
    %v3212 = vpop.f32.mrf.mxu0
    %v3213 = vadd.f32 0.0, %v3212
    %3214 = vmatmul.f32.gmra.mxu0 %v3164
    %v3215 = vpop.f32.mrf.mxu0
    %v3216 = vadd.f32 0.0, %v3215
    %3217 = vmatmul.f32.gmra.mxu0 %v3166
    %v3218 = vpop.f32.mrf.mxu0
    %v3219 = vadd.f32 0.0, %v3218
    %3220 = vdwg.mxu0
    %v3221 = vadd.f32 %v3076, %v3186
    %v3222 = vadd.f32 %v3079, %v3189
    %v3223 = vadd.f32 %v3082, %v3192
    %v3224 = vadd.f32 %v3085, %v3195
    %v3225 = vadd.f32 %v3088, %v3198
    %v3226 = vadd.f32 %v3091, %v3201
    %v3227 = vadd.f32 %v3094, %v3204
    %v3228 = vadd.f32 %v3097, %v3207
    %v3229 = vadd.f32 %v3100, %v3210
    %v3230 = vadd.f32 %v3103, %v3213
    %v3231 = vadd.f32 %v3106, %v3216
    %v3232 = vadd.f32 %v3109, %v3219
    %s3233 = scalar_lea.vmem %s5, 216
    %v3234 = vld [vmem:[%s3233] sm:$0xff]
    %v3235 = vld [vmem:[%s3233 + $0x8] sm:$0xff]
    %v3236 = vld [vmem:[%s3233 + $0x10] sm:$0xff]
    %v3237 = vld [vmem:[%s3233 + $0x18] sm:$0xff]
    %v3238 = vld [vmem:[%s3233 + $0x20] sm:$0xff]
    %v3239 = vld [vmem:[%s3233 + $0x28] sm:$0xff]
    %v3240 = vld [vmem:[%s3233 + $0x30] sm:$0xff]
    %v3241 = vld [vmem:[%s3233 + $0x38] sm:$0xff]
    %v3242 = vld [vmem:[%s3233 + $0x40] sm:$0xff]
    %v3243 = vrot.slane %v2890, 3
    %v3244 = vrot.slane %v2891, 3
    %v3245 = vsel %vm1150, %v3243, %v3244
    %v3246 = vrot.slane %v2892, 3
    %v3247 = vsel %vm1150, %v3244, %v3246
    %v3248 = vrot.slane %v2893, 3
    %v3249 = vsel %vm1150, %v3246, %v3248
    %v3250 = vrot.slane %v2894, 3
    %v3251 = vsel %vm1150, %v3248, %v3250
    %v3252 = vrot.slane %v2895, 3
    %v3253 = vsel %vm1150, %v3250, %v3252
    %v3254 = vrot.slane %v2896, 3
    %v3255 = vsel %vm1150, %v3252, %v3254
    %v3256 = vrot.slane %v2897, 3
    %v3257 = vsel %vm1150, %v3254, %v3256
    %v3258 = vrot.slane %v2898, 3
    %v3259 = vsel %vm1150, %v3256, %v3258
    %v3260 = vrot.slane %v2899, 3
    %v3261 = vsel %vm1150, %v3258, %v3260
    %v3262 = vrot.slane %v2900, 3
    %v3263 = vsel %vm1150, %v3260, %v3262
    %v3264 = vrot.slane %v2901, 3
    %v3265 = vsel %vm1150, %v3262, %v3264
    %v3266 = vsel %vm2956, %v3245, 0
    %v3268 = vsel %vm2956, %v3247, 0
    %v3270 = vsel %vm2956, %v3249, 0
    %v3272 = vsel %vm2956, %v3251, 0
    %v3274 = vsel %vm2956, %v3253, 0
    %v3276 = vsel %vm2956, %v3255, 0
    %v3278 = vsel %vm2956, %v3257, 0
    %v3280 = vsel %vm2956, %v3259, 0
    %v3282 = vsel %vm2956, %v3261, 0
    %v3284 = vsel %vm2956, %v3263, 0
    %v3286 = vsel %vm2956, %v3265, 0
    %v3288 = vsel %vm2956, %v3264, 0
    %3290 = vmatpush.msra.mxu0 0.0
    %3291 = vmatpush.msra.mxu0 0.0
    %3292 = vmatpush.msra.mxu0 0.0
    %3293 = vmatpush.msra.mxu0 0.0
    %3294 = vmatpush.msra.mxu0 0.0
    %3295 = vmatpush.msra.mxu0 0.0
    %3296 = vmatpush.msra.mxu0 0.0
    %3297 = vmatpush.msra.mxu0 %v3242
    %3298 = vmatpush.msra.mxu0 %v3241
    %3299 = vmatpush.msra.mxu0 %v3240
    %3300 = vmatpush.msra.mxu0 %v3239
    %3301 = vmatpush.msra.mxu0 %v3238
    %3302 = vmatpush.msra.mxu0 %v3237
    %3303 = vmatpush.msra.mxu0 %v3236
    %3304 = vmatpush.msra.mxu0 %v3235
    %3305 = vmatpush.msra.mxu0 %v3234
    %3306 = vmatmul.f32.gmra.mxu0 %v3266
    %v3307 = vpop.f32.mrf.mxu0
    %v3308 = vadd.f32 0.0, %v3307
    %3309 = vmatmul.f32.gmra.mxu0 %v3268
    %v3310 = vpop.f32.mrf.mxu0
    %v3311 = vadd.f32 0.0, %v3310
    %3312 = vmatmul.f32.gmra.mxu0 %v3270
    %v3313 = vpop.f32.mrf.mxu0
    %v3314 = vadd.f32 0.0, %v3313
    %3315 = vmatmul.f32.gmra.mxu0 %v3272
    %v3316 = vpop.f32.mrf.mxu0
    %v3317 = vadd.f32 0.0, %v3316
    %3318 = vmatmul.f32.gmra.mxu0 %v3274
    %v3319 = vpop.f32.mrf.mxu0
    %v3320 = vadd.f32 0.0, %v3319
    %3321 = vmatmul.f32.gmra.mxu0 %v3276
    %v3322 = vpop.f32.mrf.mxu0
    %v3323 = vadd.f32 0.0, %v3322
    %3324 = vmatmul.f32.gmra.mxu0 %v3278
    %v3325 = vpop.f32.mrf.mxu0
    %v3326 = vadd.f32 0.0, %v3325
    %3327 = vmatmul.f32.gmra.mxu0 %v3280
    %v3328 = vpop.f32.mrf.mxu0
    %v3329 = vadd.f32 0.0, %v3328
    %3330 = vmatmul.f32.gmra.mxu0 %v3282
    %v3331 = vpop.f32.mrf.mxu0
    %v3332 = vadd.f32 0.0, %v3331
    %3333 = vmatmul.f32.gmra.mxu0 %v3284
    %v3334 = vpop.f32.mrf.mxu0
    %v3335 = vadd.f32 0.0, %v3334
    %3336 = vmatmul.f32.gmra.mxu0 %v3286
    %v3337 = vpop.f32.mrf.mxu0
    %v3338 = vadd.f32 0.0, %v3337
    %3339 = vmatmul.f32.gmra.mxu0 %v3288
    %v3340 = vpop.f32.mrf.mxu0
    %v3341 = vadd.f32 0.0, %v3340
    %3342 = vdwg.mxu0
    %v3343 = vadd.f32 %v3221, %v3308
    %v3344 = vadd.f32 %v3222, %v3311
    %v3345 = vadd.f32 %v3223, %v3314
    %v3346 = vadd.f32 %v3224, %v3317
    %v3347 = vadd.f32 %v3225, %v3320
    %v3348 = vadd.f32 %v3226, %v3323
    %v3349 = vadd.f32 %v3227, %v3326
    %v3350 = vadd.f32 %v3228, %v3329
    %v3351 = vadd.f32 %v3229, %v3332
    %v3352 = vadd.f32 %v3230, %v3335
    %v3353 = vadd.f32 %v3231, %v3338
    %v3354 = vadd.f32 %v3232, %v3341
    %s3355 = scalar_lea.vmem %s5, 288
    %v3356 = vld [vmem:[%s3355] sm:$0xff]
    %v3357 = vld [vmem:[%s3355 + $0x8] sm:$0xff]
    %v3358 = vld [vmem:[%s3355 + $0x10] sm:$0xff]
    %v3359 = vld [vmem:[%s3355 + $0x18] sm:$0xff]
    %v3360 = vld [vmem:[%s3355 + $0x20] sm:$0xff]
    %v3361 = vld [vmem:[%s3355 + $0x28] sm:$0xff]
    %v3362 = vld [vmem:[%s3355 + $0x30] sm:$0xff]
    %v3363 = vld [vmem:[%s3355 + $0x38] sm:$0xff]
    %v3364 = vld [vmem:[%s3355 + $0x40] sm:$0xff]
    %v3365 = vrot.slane %v2890, 4
    %v3366 = vrot.slane %v2891, 4
    %v3367 = vsel %vm283, %v3365, %v3366
    %v3368 = vrot.slane %v2892, 4
    %v3369 = vsel %vm283, %v3366, %v3368
    %v3370 = vrot.slane %v2893, 4
    %v3371 = vsel %vm283, %v3368, %v3370
    %v3372 = vrot.slane %v2894, 4
    %v3373 = vsel %vm283, %v3370, %v3372
    %v3374 = vrot.slane %v2895, 4
    %v3375 = vsel %vm283, %v3372, %v3374
    %v3376 = vrot.slane %v2896, 4
    %v3377 = vsel %vm283, %v3374, %v3376
    %v3378 = vrot.slane %v2897, 4
    %v3379 = vsel %vm283, %v3376, %v3378
    %v3380 = vrot.slane %v2898, 4
    %v3381 = vsel %vm283, %v3378, %v3380
    %v3382 = vrot.slane %v2899, 4
    %v3383 = vsel %vm283, %v3380, %v3382
    %v3384 = vrot.slane %v2900, 4
    %v3385 = vsel %vm283, %v3382, %v3384
    %v3386 = vrot.slane %v2901, 4
    %v3387 = vsel %vm283, %v3384, %v3386
    %v3388 = vsel %vm2956, %v3367, 0
    %v3390 = vsel %vm2956, %v3369, 0
    %v3392 = vsel %vm2956, %v3371, 0
    %v3394 = vsel %vm2956, %v3373, 0
    %v3396 = vsel %vm2956, %v3375, 0
    %v3398 = vsel %vm2956, %v3377, 0
    %v3400 = vsel %vm2956, %v3379, 0
    %v3402 = vsel %vm2956, %v3381, 0
    %v3404 = vsel %vm2956, %v3383, 0
    %v3406 = vsel %vm2956, %v3385, 0
    %v3408 = vsel %vm2956, %v3387, 0
    %v3410 = vsel %vm2956, %v3386, 0
    %3412 = vmatpush.msra.mxu0 0.0
    %3413 = vmatpush.msra.mxu0 0.0
    %3414 = vmatpush.msra.mxu0 0.0
    %3415 = vmatpush.msra.mxu0 0.0
    %3416 = vmatpush.msra.mxu0 0.0
    %3417 = vmatpush.msra.mxu0 0.0
    %3418 = vmatpush.msra.mxu0 0.0
    %3419 = vmatpush.msra.mxu0 %v3364
    %3420 = vmatpush.msra.mxu0 %v3363
    %3421 = vmatpush.msra.mxu0 %v3362
    %3422 = vmatpush.msra.mxu0 %v3361
    %3423 = vmatpush.msra.mxu0 %v3360
    %3424 = vmatpush.msra.mxu0 %v3359
    %3425 = vmatpush.msra.mxu0 %v3358
    %3426 = vmatpush.msra.mxu0 %v3357
    %3427 = vmatpush.msra.mxu0 %v3356
    %3428 = vmatmul.f32.gmra.mxu0 %v3388
    %v3429 = vpop.f32.mrf.mxu0
    %v3430 = vadd.f32 0.0, %v3429
    %3431 = vmatmul.f32.gmra.mxu0 %v3390
    %v3432 = vpop.f32.mrf.mxu0
    %v3433 = vadd.f32 0.0, %v3432
    %3434 = vmatmul.f32.gmra.mxu0 %v3392
    %v3435 = vpop.f32.mrf.mxu0
    %v3436 = vadd.f32 0.0, %v3435
    %3437 = vmatmul.f32.gmra.mxu0 %v3394
    %v3438 = vpop.f32.mrf.mxu0
    %v3439 = vadd.f32 0.0, %v3438
    %3440 = vmatmul.f32.gmra.mxu0 %v3396
    %v3441 = vpop.f32.mrf.mxu0
    %v3442 = vadd.f32 0.0, %v3441
    %3443 = vmatmul.f32.gmra.mxu0 %v3398
    %v3444 = vpop.f32.mrf.mxu0
    %v3445 = vadd.f32 0.0, %v3444
    %3446 = vmatmul.f32.gmra.mxu0 %v3400
    %v3447 = vpop.f32.mrf.mxu0
    %v3448 = vadd.f32 0.0, %v3447
    %3449 = vmatmul.f32.gmra.mxu0 %v3402
    %v3450 = vpop.f32.mrf.mxu0
    %v3451 = vadd.f32 0.0, %v3450
    %3452 = vmatmul.f32.gmra.mxu0 %v3404
    %v3453 = vpop.f32.mrf.mxu0
    %v3454 = vadd.f32 0.0, %v3453
    %3455 = vmatmul.f32.gmra.mxu0 %v3406
    %v3456 = vpop.f32.mrf.mxu0
    %v3457 = vadd.f32 0.0, %v3456
    %3458 = vmatmul.f32.gmra.mxu0 %v3408
    %v3459 = vpop.f32.mrf.mxu0
    %v3460 = vadd.f32 0.0, %v3459
    %3461 = vmatmul.f32.gmra.mxu0 %v3410
    %v3462 = vpop.f32.mrf.mxu0
    %v3463 = vadd.f32 0.0, %v3462
    %3464 = vdwg.mxu0
    %v3465 = vadd.f32 %v3343, %v3430
    %v3466 = vadd.f32 %v3344, %v3433
    %v3467 = vadd.f32 %v3345, %v3436
    %v3468 = vadd.f32 %v3346, %v3439
    %v3469 = vadd.f32 %v3347, %v3442
    %v3470 = vadd.f32 %v3348, %v3445
    %v3471 = vadd.f32 %v3349, %v3448
    %v3472 = vadd.f32 %v3350, %v3451
    %v3473 = vadd.f32 %v3351, %v3454
    %v3474 = vadd.f32 %v3352, %v3457
    %v3475 = vadd.f32 %v3353, %v3460
    %v3476 = vadd.f32 %v3354, %v3463
    %v3477 = vld [vmem:[%s6] sm:$0x1]
    %v3479 = vperm.slane %v3477, 0
    %v3481 = vadd.f32 %v3465, %v3479
    %v3482 = vadd.f32 %v3466, %v3479
    %v3483 = vadd.f32 %v3467, %v3479
    %v3484 = vadd.f32 %v3468, %v3479
    %v3485 = vadd.f32 %v3469, %v3479
    %v3486 = vadd.f32 %v3470, %v3479
    %v3487 = vadd.f32 %v3471, %v3479
    %v3488 = vadd.f32 %v3472, %v3479
    %v3489 = vadd.f32 %v3473, %v3479
    %v3490 = vadd.f32 %v3474, %v3479
    %v3491 = vadd.f32 %v3475, %v3479
    %v3492 = vadd.f32 %v3476, %v3479
    %v3493 = vmax.f32 %v3481, 0.0
    %v3494 = vmax.f32 %v3482, 0.0
    %v3495 = vmax.f32 %v3483, 0.0
    %v3496 = vmax.f32 %v3484, 0.0
    %v3497 = vmax.f32 %v3485, 0.0
    %v3498 = vmax.f32 %v3486, 0.0
    %v3499 = vmax.f32 %v3487, 0.0
    %v3500 = vmax.f32 %v3488, 0.0
    %v3501 = vmax.f32 %v3489, 0.0
    %v3502 = vmax.f32 %v3490, 0.0
    %v3503 = vmax.f32 %v3491, 0.0
    %v3504 = vmax.f32 %v3492, 0.0
    %v3505 = vld [vmem:[#allocation2] sm:$0xff]
    %v3506 = vld [vmem:[#allocation2 + $0x8] sm:$0xff]
    %v3507 = vld [vmem:[#allocation2 + $0x10] sm:$0xff]
    %v3508 = vld [vmem:[#allocation2 + $0x18] sm:$0xff]
    %v3510 = vsel %vm2052, %v3505, 0
    %v3513 = vsel %vm2052, %v3506, 0
    %v3516 = vsel %vm2052, %v3507, 0
    %v3519 = vsel %vm2052, %v3508, 0
    %v3522 = vsel %vm283, %v3504, 0
    %3524 = vmatpush.msra.mxu0 0.0
    %3525 = vmatpush.msra.mxu0 0.0
    %3526 = vmatpush.msra.mxu0 0.0
    %3527 = vmatpush.msra.mxu0 0.0
    %3528 = vmatpush.msra.mxu0 %v3522
    %3529 = vmatpush.msra.mxu0 %v3503
    %3530 = vmatpush.msra.mxu0 %v3502
    %3531 = vmatpush.msra.mxu0 %v3501
    %3532 = vmatpush.msra.mxu0 %v3500
    %3533 = vmatpush.msra.mxu0 %v3499
    %3534 = vmatpush.msra.mxu0 %v3498
    %3535 = vmatpush.msra.mxu0 %v3497
    %3536 = vmatpush.msra.mxu0 %v3496
    %3537 = vmatpush.msra.mxu0 %v3495
    %3538 = vmatpush.msra.mxu0 %v3494
    %3539 = vmatpush.msra.mxu0 %v3493
    %3540 = vmatmul.f32.gmra.mxu0 %v3510
    %v3541 = vpop.f32.mrf.mxu0
    %v3542 = vadd.f32 0.0, %v3541
    %3543 = vmatmul.f32.gmra.mxu0 %v3513
    %v3544 = vpop.f32.mrf.mxu0
    %v3545 = vadd.f32 0.0, %v3544
    %3546 = vmatmul.f32.gmra.mxu0 %v3516
    %v3547 = vpop.f32.mrf.mxu0
    %v3548 = vadd.f32 0.0, %v3547
    %3549 = vmatmul.f32.gmra.mxu0 %v3519
    %v3550 = vpop.f32.mrf.mxu0
    %v3551 = vadd.f32 0.0, %v3550
    %3552 = vdwg.mxu0
    %s3553 = scalar_lea.vmem [#allocation2], 32
    %v3554 = vld [vmem:[%s3553] sm:$0xff]
    %v3555 = vld [vmem:[%s3553 + $0x8] sm:$0xff]
    %v3556 = vld [vmem:[%s3553 + $0x10] sm:$0xff]
    %v3557 = vld [vmem:[%s3553 + $0x18] sm:$0xff]
    %v3559 = vsel %vm2052, %v3554, 0
    %v3562 = vsel %vm2052, %v3555, 0
    %v3565 = vsel %vm2052, %v3556, 0
    %v3568 = vsel %vm2052, %v3557, 0
    %3570 = vmatpush.msra.mxu0 0.0
    %3571 = vmatpush.msra.mxu0 0.0
    %3572 = vmatpush.msra.mxu0 0.0
    %3573 = vmatpush.msra.mxu0 0.0
    %3574 = vmatpush.msra.mxu0 %v3522
    %3575 = vmatpush.msra.mxu0 %v3503
    %3576 = vmatpush.msra.mxu0 %v3502
    %3577 = vmatpush.msra.mxu0 %v3501
    %3578 = vmatpush.msra.mxu0 %v3500
    %3579 = vmatpush.msra.mxu0 %v3499
    %3580 = vmatpush.msra.mxu0 %v3498
    %3581 = vmatpush.msra.mxu0 %v3497
    %3582 = vmatpush.msra.mxu0 %v3496
    %3583 = vmatpush.msra.mxu0 %v3495
    %3584 = vmatpush.msra.mxu0 %v3494
    %3585 = vmatpush.msra.mxu0 %v3493
    %3586 = vmatmul.f32.gmra.mxu0 %v3559
    %v3587 = vpop.f32.mrf.mxu0
    %v3588 = vadd.f32 0.0, %v3587
    %3589 = vmatmul.f32.gmra.mxu0 %v3562
    %v3590 = vpop.f32.mrf.mxu0
    %v3591 = vadd.f32 0.0, %v3590
    %3592 = vmatmul.f32.gmra.mxu0 %v3565
    %v3593 = vpop.f32.mrf.mxu0
    %v3594 = vadd.f32 0.0, %v3593
    %3595 = vmatmul.f32.gmra.mxu0 %v3568
    %v3596 = vpop.f32.mrf.mxu0
    %v3597 = vadd.f32 0.0, %v3596
    %3598 = vdwg.mxu0
    %v3599 = vmax.f32 %v3542, %v3588
    %v3600 = vmax.f32 %v3545, %v3591
    %v3601 = vmax.f32 %v3548, %v3594
    %v3602 = vmax.f32 %v3551, %v3597
    %v3603 = vld [vmem:[%s8] sm:$0xff]
    %v3604 = vld [vmem:[%s8 + $0x8] sm:$0xff]
    %v3605 = vld [vmem:[%s8 + $0x10] sm:$0xff]
    %v3606 = vld [vmem:[%s8 + $0x18] sm:$0xff]
    %v3607 = vld [vmem:[%s8 + $0x20] sm:$0xff]
    %v3608 = vld [vmem:[%s8 + $0x28] sm:$0xff]
    %v3609 = vld [vmem:[%s8 + $0x30] sm:$0xff]
    %v3610 = vld [vmem:[%s8 + $0x38] sm:$0xff]
    %v3611 = vld [vmem:[%s8 + $0x40] sm:$0xff]
    %v3612 = vld [vmem:[%s8 + $0x48] sm:$0xff]
    %v3613 = vld [vmem:[%s8 + $0x50] sm:$0xff]
    %v3614 = vld [vmem:[%s8 + $0x58] sm:$0xff]
    %v3615 = vld [vmem:[%s8 + $0x60] sm:$0xff]
    %v3616 = vld [vmem:[%s8 + $0x68] sm:$0xff]
    %v3617 = vld [vmem:[%s8 + $0x70] sm:$0xff]
    %v3618 = vld [vmem:[%s8 + $0x78] sm:$0xff]
    %3619 = vmatpush.msra.mxu0 %v3618
    %3620 = vmatpush.msra.mxu0 %v3617
    %3621 = vmatpush.msra.mxu0 %v3616
    %3622 = vmatpush.msra.mxu0 %v3615
    %3623 = vmatpush.msra.mxu0 %v3614
    %3624 = vmatpush.msra.mxu0 %v3613
    %3625 = vmatpush.msra.mxu0 %v3612
    %3626 = vmatpush.msra.mxu0 %v3611
    %3627 = vmatpush.msra.mxu0 %v3610
    %3628 = vmatpush.msra.mxu0 %v3609
    %3629 = vmatpush.msra.mxu0 %v3608
    %3630 = vmatpush.msra.mxu0 %v3607
    %3631 = vmatpush.msra.mxu0 %v3606
    %3632 = vmatpush.msra.mxu0 %v3605
    %3633 = vmatpush.msra.mxu0 %v3604
    %3634 = vmatpush.msra.mxu0 %v3603
    %3635 = vmatmul.f32.gmra.mxu0 %v3599
    %v3636 = vpop.f32.mrf.mxu0
    %v3637 = vadd.f32 0.0, %v3636
    %3638 = vmatmul.f32.gmra.mxu0 %v3600
    %v3639 = vpop.f32.mrf.mxu0
    %v3640 = vadd.f32 0.0, %v3639
    %3641 = vmatmul.f32.gmra.mxu0 %v3601
    %v3642 = vpop.f32.mrf.mxu0
    %v3643 = vadd.f32 0.0, %v3642
    %3644 = vmatmul.f32.gmra.mxu0 %v3602
    %v3645 = vpop.f32.mrf.mxu0
    %v3646 = vadd.f32 0.0, %v3645
    %3647 = vdwg.mxu0
    %s3648 = scalar_lea.vmem %s8, 128
    %v3649 = vld [vmem:[%s3648] sm:$0xff]
    %v3650 = vld [vmem:[%s3648 + $0x8] sm:$0xff]
    %v3651 = vld [vmem:[%s3648 + $0x10] sm:$0xff]
    %v3652 = vld [vmem:[%s3648 + $0x18] sm:$0xff]
    %v3653 = vld [vmem:[%s3648 + $0x20] sm:$0xff]
    %v3654 = vld [vmem:[%s3648 + $0x28] sm:$0xff]
    %v3655 = vld [vmem:[%s3648 + $0x30] sm:$0xff]
    %v3656 = vld [vmem:[%s3648 + $0x38] sm:$0xff]
    %v3657 = vld [vmem:[%s3648 + $0x40] sm:$0xff]
    %v3658 = vld [vmem:[%s3648 + $0x48] sm:$0xff]
    %v3659 = vld [vmem:[%s3648 + $0x50] sm:$0xff]
    %v3660 = vld [vmem:[%s3648 + $0x58] sm:$0xff]
    %v3661 = vld [vmem:[%s3648 + $0x60] sm:$0xff]
    %v3662 = vld [vmem:[%s3648 + $0x68] sm:$0xff]
    %v3663 = vld [vmem:[%s3648 + $0x70] sm:$0xff]
    %v3664 = vld [vmem:[%s3648 + $0x78] sm:$0xff]
    %3665 = vmatpush.msra.mxu0 %v3664
    %3666 = vmatpush.msra.mxu0 %v3663
    %3667 = vmatpush.msra.mxu0 %v3662
    %3668 = vmatpush.msra.mxu0 %v3661
    %3669 = vmatpush.msra.mxu0 %v3660
    %3670 = vmatpush.msra.mxu0 %v3659
    %3671 = vmatpush.msra.mxu0 %v3658
    %3672 = vmatpush.msra.mxu0 %v3657
    %3673 = vmatpush.msra.mxu0 %v3656
    %3674 = vmatpush.msra.mxu0 %v3655
    %3675 = vmatpush.msra.mxu0 %v3654
    %3676 = vmatpush.msra.mxu0 %v3653
    %3677 = vmatpush.msra.mxu0 %v3652
    %3678 = vmatpush.msra.mxu0 %v3651
    %3679 = vmatpush.msra.mxu0 %v3650
    %3680 = vmatpush.msra.mxu0 %v3649
    %3681 = vmatmul.f32.gmra.mxu0 %v3599
    %v3682 = vpop.f32.mrf.mxu0
    %v3683 = vadd.f32 0.0, %v3682
    %3684 = vmatmul.f32.gmra.mxu0 %v3600
    %v3685 = vpop.f32.mrf.mxu0
    %v3686 = vadd.f32 0.0, %v3685
    %3687 = vmatmul.f32.gmra.mxu0 %v3601
    %v3688 = vpop.f32.mrf.mxu0
    %v3689 = vadd.f32 0.0, %v3688
    %3690 = vmatmul.f32.gmra.mxu0 %v3602
    %v3691 = vpop.f32.mrf.mxu0
    %v3692 = vadd.f32 0.0, %v3691
    %3693 = vdwg.mxu0
    %v3694 = vmax.f32 %v3637, %v3683
    %v3695 = vmax.f32 %v3640, %v3686
    %v3696 = vmax.f32 %v3643, %v3689
    %v3697 = vmax.f32 %v3646, %v3692
    %v3698 = vld [vmem:[%s10] sm:$0x1]
    %v3699 = vld [vmem:[#allocation4] sm:$0xff]
    %v3700 = vld [vmem:[#allocation4 + $0x8] sm:$0xff]
    %v3701 = vld [vmem:[#allocation4 + $0x10] sm:$0xff]
    %v3702 = vld [vmem:[#allocation4 + $0x18] sm:$0xff]
    %v3703 = vld [vmem:[#allocation4 + $0x20] sm:$0xff]
    %v3704 = vld [vmem:[#allocation4 + $0x28] sm:$0xff]
    %v3705 = vld [vmem:[#allocation4 + $0x30] sm:$0xff]
    %v3706 = vld [vmem:[#allocation4 + $0x38] sm:$0xff]
    %vm3707 = vcmask 523264
    %v3709 = vsel %vm3707, %v3694, 0
    %3711 = vmatpush.msra.mxu0 0.0
    %3712 = vmatpush.msra.mxu0 0.0
    %3713 = vmatpush.msra.mxu0 0.0
    %3714 = vmatpush.msra.mxu0 0.0
    %3715 = vmatpush.msra.mxu0 0.0
    %3716 = vmatpush.msra.mxu0 0.0
    %3717 = vmatpush.msra.mxu0 0.0
    %3718 = vmatpush.msra.mxu0 0.0
    %3719 = vmatpush.msra.mxu0 %v3706
    %3720 = vmatpush.msra.mxu0 %v3705
    %3721 = vmatpush.msra.mxu0 %v3704
    %3722 = vmatpush.msra.mxu0 %v3703
    %3723 = vmatpush.msra.mxu0 %v3702
    %3724 = vmatpush.msra.mxu0 %v3701
    %3725 = vmatpush.msra.mxu0 %v3700
    %3726 = vmatpush.msra.mxu0 %v3699
    %3727 = vmatmul.f32.gmra.mxu0 %v3709
    %v3728 = vpop.f32.mrf.mxu0
    %v3729 = vadd.f32 0.0, %v3728
    %3730 = vdwg.mxu0
    %v3732 = vperm.slane %v3698, 0
    %v3734 = vadd.f32 %v3732, %v3729
    %s3735 = scalar_lea.vmem [#allocation4], 64
    %v3736 = vld [vmem:[%s3735] sm:$0xff]
    %v3737 = vld [vmem:[%s3735 + $0x8] sm:$0xff]
    %v3738 = vld [vmem:[%s3735 + $0x10] sm:$0xff]
    %v3739 = vld [vmem:[%s3735 + $0x18] sm:$0xff]
    %v3740 = vld [vmem:[%s3735 + $0x20] sm:$0xff]
    %v3741 = vld [vmem:[%s3735 + $0x28] sm:$0xff]
    %v3742 = vld [vmem:[%s3735 + $0x30] sm:$0xff]
    %v3743 = vld [vmem:[%s3735 + $0x38] sm:$0xff]
    %v3745 = vsel %vm3707, %v3695, 0
    %3747 = vmatpush.msra.mxu0 0.0
    %3748 = vmatpush.msra.mxu0 0.0
    %3749 = vmatpush.msra.mxu0 0.0
    %3750 = vmatpush.msra.mxu0 0.0
    %3751 = vmatpush.msra.mxu0 0.0
    %3752 = vmatpush.msra.mxu0 0.0
    %3753 = vmatpush.msra.mxu0 0.0
    %3754 = vmatpush.msra.mxu0 0.0
    %3755 = vmatpush.msra.mxu0 %v3743
    %3756 = vmatpush.msra.mxu0 %v3742
    %3757 = vmatpush.msra.mxu0 %v3741
    %3758 = vmatpush.msra.mxu0 %v3740
    %3759 = vmatpush.msra.mxu0 %v3739
    %3760 = vmatpush.msra.mxu0 %v3738
    %3761 = vmatpush.msra.mxu0 %v3737
    %3762 = vmatpush.msra.mxu0 %v3736
    %3763 = vmatmul.f32.gmra.mxu0 %v3745
    %v3764 = vpop.f32.mrf.mxu0
    %v3765 = vadd.f32 0.0, %v3764
    %3766 = vdwg.mxu0
    %v3767 = vadd.f32 %v3734, %v3765
    %s3768 = scalar_lea.vmem [#allocation4], 128
    %v3769 = vld [vmem:[%s3768] sm:$0xff]
    %v3770 = vld [vmem:[%s3768 + $0x8] sm:$0xff]
    %v3771 = vld [vmem:[%s3768 + $0x10] sm:$0xff]
    %v3772 = vld [vmem:[%s3768 + $0x18] sm:$0xff]
    %v3773 = vld [vmem:[%s3768 + $0x20] sm:$0xff]
    %v3774 = vld [vmem:[%s3768 + $0x28] sm:$0xff]
    %v3775 = vld [vmem:[%s3768 + $0x30] sm:$0xff]
    %v3776 = vld [vmem:[%s3768 + $0x38] sm:$0xff]
    %v3778 = vsel %vm3707, %v3696, 0
    %3780 = vmatpush.msra.mxu0 0.0
    %3781 = vmatpush.msra.mxu0 0.0
    %3782 = vmatpush.msra.mxu0 0.0
    %3783 = vmatpush.msra.mxu0 0.0
    %3784 = vmatpush.msra.mxu0 0.0
    %3785 = vmatpush.msra.mxu0 0.0
    %3786 = vmatpush.msra.mxu0 0.0
    %3787 = vmatpush.msra.mxu0 0.0
    %3788 = vmatpush.msra.mxu0 %v3776
    %3789 = vmatpush.msra.mxu0 %v3775
    %3790 = vmatpush.msra.mxu0 %v3774
    %3791 = vmatpush.msra.mxu0 %v3773
    %3792 = vmatpush.msra.mxu0 %v3772
    %3793 = vmatpush.msra.mxu0 %v3771
    %3794 = vmatpush.msra.mxu0 %v3770
    %3795 = vmatpush.msra.mxu0 %v3769
    %3796 = vmatmul.f32.gmra.mxu0 %v3778
    %v3797 = vpop.f32.mrf.mxu0
    %v3798 = vadd.f32 0.0, %v3797
    %3799 = vdwg.mxu0
    %v3800 = vadd.f32 %v3767, %v3798
    %s3801 = scalar_lea.vmem [#allocation4], 192
    %v3802 = vld [vmem:[%s3801] sm:$0xff]
    %v3803 = vld [vmem:[%s3801 + $0x8] sm:$0xff]
    %v3804 = vld [vmem:[%s3801 + $0x10] sm:$0xff]
    %v3805 = vld [vmem:[%s3801 + $0x18] sm:$0xff]
    %v3806 = vld [vmem:[%s3801 + $0x20] sm:$0xff]
    %v3807 = vld [vmem:[%s3801 + $0x28] sm:$0xff]
    %v3808 = vld [vmem:[%s3801 + $0x30] sm:$0xff]
    %v3809 = vld [vmem:[%s3801 + $0x38] sm:$0xff]
    %v3811 = vsel %vm3707, %v3697, 0
    %3813 = vmatpush.msra.mxu0 0.0
    %3814 = vmatpush.msra.mxu0 0.0
    %3815 = vmatpush.msra.mxu0 0.0
    %3816 = vmatpush.msra.mxu0 0.0
    %3817 = vmatpush.msra.mxu0 0.0
    %3818 = vmatpush.msra.mxu0 0.0
    %3819 = vmatpush.msra.mxu0 0.0
    %3820 = vmatpush.msra.mxu0 0.0
    %3821 = vmatpush.msra.mxu0 %v3809
    %3822 = vmatpush.msra.mxu0 %v3808
    %3823 = vmatpush.msra.mxu0 %v3807
    %3824 = vmatpush.msra.mxu0 %v3806
    %3825 = vmatpush.msra.mxu0 %v3805
    %3826 = vmatpush.msra.mxu0 %v3804
    %3827 = vmatpush.msra.mxu0 %v3803
    %3828 = vmatpush.msra.mxu0 %v3802
    %3829 = vmatmul.f32.gmra.mxu0 %v3811
    %v3830 = vpop.f32.mrf.mxu0
    %v3831 = vadd.f32 0.0, %v3830
    %3832 = vdwg.mxu0
    %v3833 = vadd.f32 %v3800, %v3831
    %v3834 = vmax.f32 %v3833, 0.0
    %v3835 = vld [vmem:[%s11] sm:$0xff]
    %v3836 = vld [vmem:[%s11 + $0x8] sm:$0xff]
    %v3837 = vld [vmem:[%s11 + $0x10] sm:$0xff]
    %v3838 = vld [vmem:[%s11 + $0x18] sm:$0xff]
    %v3839 = vld [vmem:[%s11 + $0x20] sm:$0xff]
    %v3840 = vld [vmem:[%s11 + $0x28] sm:$0xff]
    %v3841 = vld [vmem:[%s11 + $0x30] sm:$0xff]
    %v3842 = vld [vmem:[%s11 + $0x38] sm:$0xff]
    %v3843 = vld [vmem:[%s11 + $0x40] sm:$0xff]
    %v3844 = vld [vmem:[%s11 + $0x48] sm:$0xff]
    %v3845 = vld [vmem:[%s11 + $0x50] sm:$0xff]
    %v3846 = vld [vmem:[%s11 + $0x58] sm:$0xff]
    %v3847 = vld [vmem:[%s11 + $0x60] sm:$0xff]
    %v3848 = vld [vmem:[%s11 + $0x68] sm:$0xff]
    %v3849 = vld [vmem:[%s11 + $0x70] sm:$0xff]
    %v3850 = vld [vmem:[%s12] sm:$0x1]
    %v3852 = vperm.slane %v3850, 0
    %vm3854 = vcmask 982016
    %v3856 = vsel %vm3854, %v3834, 0
    %3858 = vmatpush.msra.mxu0 0.0
    %3859 = vmatpush.msra.mxu0 %v3849
    %3860 = vmatpush.msra.mxu0 %v3848
    %3861 = vmatpush.msra.mxu0 %v3847
    %3862 = vmatpush.msra.mxu0 %v3846
    %3863 = vmatpush.msra.mxu0 %v3845
    %3864 = vmatpush.msra.mxu0 %v3844
    %3865 = vmatpush.msra.mxu0 %v3843
    %3866 = vmatpush.msra.mxu0 %v3842
    %3867 = vmatpush.msra.mxu0 %v3841
    %3868 = vmatpush.msra.mxu0 %v3840
    %3869 = vmatpush.msra.mxu0 %v3839
    %3870 = vmatpush.msra.mxu0 %v3838
    %3871 = vmatpush.msra.mxu0 %v3837
    %3872 = vmatpush.msra.mxu0 %v3836
    %3873 = vmatpush.msra.mxu0 %v3835
    %3874 = vmatmul.f32.gmra.mxu0 %v3856
    %v3875 = vpop.f32.mrf.mxu0
    %v3876 = vadd.f32 %v3852, %v3875
    %3877 = vdwg.mxu0
    %v3878 = vmax.f32 %v3876, 0.0
    %v3879 = vld [vmem:[#allocation6] sm:$0xff]
    %v3880 = vld [vmem:[#allocation6 + $0x8] sm:$0xff]
    %v3881 = vld [vmem:[#allocation6 + $0x10] sm:$0xff]
    %v3882 = vld [vmem:[#allocation6 + $0x18] sm:$0xff]
    %v3883 = vld [vmem:[#allocation6 + $0x20] sm:$0xff]
    %v3884 = vld [vmem:[#allocation6 + $0x28] sm:$0xff]
    %v3885 = vld [vmem:[#allocation6 + $0x30] sm:$0xff]
    %v3886 = vld [vmem:[#allocation6 + $0x38] sm:$0xff]
    %v3887 = vld [vmem:[#allocation6 + $0x40] sm:$0xff]
    %v3888 = vld [vmem:[#allocation6 + $0x48] sm:$0xff]
    %v3889 = vld [vmem:[#allocation6 + $0x50] sm:$0xf]
    %v3890 = vld [vmem:[%s14] sm:$0x1]
    %v3892 = vperm.slane %v3890, 0
    %vm3894 = vcmask 687104
    %v3896 = vsel %vm3894, %v3878, 0
    %v3899 = vsel %vm283, %v3889, 0
    %3901 = vmatpush.msra.mxu0 0.0
    %3902 = vmatpush.msra.mxu0 0.0
    %3903 = vmatpush.msra.mxu0 0.0
    %3904 = vmatpush.msra.mxu0 0.0
    %3905 = vmatpush.msra.mxu0 0.0
    %3906 = vmatpush.msra.mxu0 %v3899
    %3907 = vmatpush.msra.mxu0 %v3888
    %3908 = vmatpush.msra.mxu0 %v3887
    %3909 = vmatpush.msra.mxu0 %v3886
    %3910 = vmatpush.msra.mxu0 %v3885
    %3911 = vmatpush.msra.mxu0 %v3884
    %3912 = vmatpush.msra.mxu0 %v3883
    %3913 = vmatpush.msra.mxu0 %v3882
    %3914 = vmatpush.msra.mxu0 %v3881
    %3915 = vmatpush.msra.mxu0 %v3880
    %3916 = vmatpush.msra.mxu0 %v3879
    %3917 = vmatmul.f32.gmra.mxu0 %v3896
    %v3918 = vpop.f32.mrf.mxu0
    %v3919 = vadd.f32 %v3892, %v3918
    %3920 = vdwg.mxu0
    %3921 = vst [vmem:[%s15] sm:$0xff] %v3919
    // Predicated region
    $region74: #{net_forward.1} parent=1 // pred_check
      _
    $region75: #{net_forward.1} parent=1 // pred_check_branch
      %3923 = sbr.rel (0) target = $region77
    $region76: #{net_forward.1} parent=1 // pred_region
      _
    $region77: #{net_forward.1} parent=1 // pred_fallthru
      _
    // Predicated region
    $region78: #{net_forward.1} parent=1 // pred_check
      _
    $region79: #{net_forward.1} parent=1 // pred_check_branch
      %3925 = sbr.rel (0) target = $region81
    $region80: #{net_forward.1} parent=1 // pred_region
      _
    $region81: #{net_forward.1} parent=1 // pred_fallthru
      _
    %3926 = vsyncpa [#allocation3], 1
    %3927 = vsyncpa [#allocation5], 1

</llo_original>
